<compile_context>
chip_gen: v5e
topology: v5e:2x2
jax: 0.10.0
libtpu: 0.0.40
codegen_flags: <defaults>
</compile_context>

<pallas_src>
import math

import numpy as np
import jax
import jax.numpy as jnp
from jax.experimental import pallas as pl
from jax.experimental.pallas import tpu as pltpu


_TAPS = tuple((dy, dx) for dy in (-1, 0, 1) for dx in (-1, 0, 1))


# ----------------------------------------------------------------------------
# Fused all-layers kernel (one grid step == B_tile images)
# ----------------------------------------------------------------------------
def _make_masker_kernel(H, W, B, cins, couts):
    HW = H * W
    L = len(cins)

    def kernel(x_ref, *refs):
        # refs = (w0, b0, w1, b1, ..., w_{L-1}, b_{L-1}, o_ref)
        o_ref = refs[2 * L]

        # Flat spatial position + 9 static edge-validity masks, computed once and
        # shared by all layers.  The rolls below wrap circularly; the masks zero
        # every wrapped / out-of-image tap so zero 'same' padding is reproduced.
        pos = jax.lax.broadcasted_iota(jnp.int32, (1, 1, HW), 2)
        if W & (W - 1) == 0:
            xq = jnp.bitwise_and(pos, W - 1)      # pos % W for power-of-two W
        else:
            xq = jnp.remainder(pos, W)            # general W (not hit in demo)
        masks = {}
        for dy, dx in _TAPS:
            m = (pos >= (-dy) * W) & (pos < (H - dy) * W)   # 0 <= y+dy < H
            m = m & (xq >= -dx) & (xq < W - dx)             # 0 <= x+dx < W
            masks[(dy, dx)] = m

        # NormalizeImg (/255) fused into the first layer's input (applied once).
        a = x_ref[...].astype(jnp.float32) * (1.0 / 255.0)   # (B, Cin, HW)

        for l in range(L):
            cin, cout = cins[l], couts[l]
            wv = refs[2 * l][...]        # (cout, 9*cin) -- read once per layer
            bv = refs[2 * l + 1][...]    # (cout, 1)

            acc = jnp.zeros((B, cout, HW), jnp.float32)       # cout accumulator planes
            for t, (dy, dx) in enumerate(_TAPS):
                off = dy * W + dx
                # shifted[p] = a[p + off]  (circular; edges masked below)
                shifted = a if off == 0 else pltpu.roll(a, (-off) % HW, axis=2)
                tap = jnp.where(masks[(dy, dx)], shifted, 0.0)  # (B, cin, HW)
                for ci in range(cin):                           # VPU broadcast-MAC
                    k = t * cin + ci
                    # (1,cout,1) * (B,1,HW) -> (B,cout,HW); no MXU involved.
                    acc = acc + wv[:, k:k + 1][None, :, :] * tap[:, ci:ci + 1, :]
            acc = acc + bv[None, :, :]                          # bias
            a = jnp.maximum(acc, 0.0) if l < L - 1 else jax.nn.sigmoid(acc)

        o_ref[...] = a.astype(o_ref.dtype)                      # (B, 1, HW), lane-dense

    return kernel


def _pick_batch_tile(n, max_tile=8):
    """Largest divisor of n <= max_tile, keeping >= 2 grid steps when possible
    so both v7x TensorCores get work (grid axis is 'parallel')."""
    if n <= 1:
        return 1
    limit = max(1, min(max_tile, n // 2))
    for t in range(limit, 0, -1):
        if n % t == 0:
            return t
    return 1


def masker_forward_fused(x_nchw, params, *, batch_tile=None):
    """Whole MaskerNet conv stack (/255, L x [3x3 conv + bias], ReLU..., Sigmoid)
    as a single pallas_call.

    x_nchw: (N, Cin, H, W) raw pixels.
    params: list of (w (3,3,cin,cout) HWIO, b (cout,)); last layer has cout == 1.
    Returns the soft mask, shape (N, 1, H, W) float32.
    """
    N, Cin, H, W = x_nchw.shape
    HW = H * W
    cins = tuple(int(w.shape[2]) for (w, _) in params)
    couts = tuple(int(w.shape[3]) for (w, _) in params)
    assert cins[0] == Cin and couts[-1] == 1
    L = len(params)

    if batch_tile is None:
        batch_tile = _pick_batch_tile(N)
    assert N % batch_tile == 0
    grid = (N // batch_tile,)

    # Free reshape (no transpose, no extra HBM pass): contiguous NCHW already is
    # channel-on-sublane / spatial-on-lane once the last two dims are merged.
    x_flat = jnp.reshape(x_nchw.astype(jnp.float32), (N, Cin, HW))

    flat_inputs = [x_flat]
    in_specs = [pl.BlockSpec((batch_tile, Cin, HW), lambda n: (n, 0, 0))]
    for (w, b) in params:
        cin, cout = int(w.shape[2]), int(w.shape[3])
        # wv[co, t*cin + ci] = w[dy+1, dx+1, ci, co], t = (dy+1)*3 + (dx+1)
        wv = jnp.asarray(w, jnp.float32).reshape(9 * cin, cout).T   # (cout, 9*cin)
        bv = jnp.asarray(b, jnp.float32).reshape(cout, 1)
        flat_inputs += [wv, bv]
        in_specs += [pl.BlockSpec((cout, 9 * cin), lambda n: (0, 0)),
                     pl.BlockSpec((cout, 1), lambda n: (0, 0))]

    flops = int(N * sum(2 * HW * 9 * ci * co for ci, co in zip(cins, couts)))
    bytes_accessed = int(4 * (N * Cin * HW + N * HW
                              + sum(9 * ci * co + co for ci, co in zip(cins, couts))))

    kernel = _make_masker_kernel(H, W, batch_tile, cins, couts)
    out = pl.pallas_call(
        kernel,
        out_shape=jax.ShapeDtypeStruct((N, 1, HW), jnp.float32),
        grid=grid,
        in_specs=in_specs,
        out_specs=pl.BlockSpec((batch_tile, 1, HW), lambda n: (n, 0, 0)),
        compiler_params=pltpu.CompilerParams(dimension_semantics=("parallel",)),
        cost_estimate=pl.CostEstimate(flops=flops,
                                      transcendentals=N * HW,
                                      bytes_accessed=bytes_accessed),
    )(*flat_inputs)
    return out.reshape(N, 1, H, W)   # free reshape


# ----------------------------------------------------------------------------
# Plain-JAX reference of the conv stack (numerical validation only)
# ----------------------------------------------------------------------------
def masker_reference(x_nchw, params):
    a = x_nchw.astype(jnp.float32) / 255.0
    L = len(params)
    for l, (w, b) in enumerate(params):
        a = jax.lax.conv_general_dilated(
            a, w, window_strides=(1, 1), padding="SAME",
            dimension_numbers=("NCHW", "HWIO", "NCHW"),
            precision=jax.lax.Precision.HIGHEST)
        a = a + b.reshape(1, -1, 1, 1)
        a = jnp.maximum(a, 0.0) if l < L - 1 else jax.nn.sigmoid(a)
    return a


# ----------------------------------------------------------------------------
# Deterministic parameter init (mirrors weight_init in the PyTorch module)
# ----------------------------------------------------------------------------
def _orthogonal_np(rng, rows, cols, gain):
    a = rng.standard_normal((rows, cols)) if rows >= cols else rng.standard_normal((cols, rows))
    q, r = np.linalg.qr(a)
    d = np.sign(np.diag(r))
    d = np.where(d == 0, 1.0, d)
    q = q * d
    if rows < cols:
        q = q.T
    return (gain * q[:rows, :cols]).astype(np.float32)


def init_masker_params(in_ch, num_filters, num_layers, seed=0):
    """Conv weights: zero 3x3 kernel except the center tap = orthogonal * gain(relu)."""
    rng = np.random.default_rng(seed)
    gain = math.sqrt(2.0)  # nn.init.calculate_gain('relu')

    channel_pairs = [(in_ch, num_filters)]
    for _ in range(2, num_layers):
        channel_pairs.append((num_filters, num_filters))
    channel_pairs.append((num_filters, 1))

    params = []
    for cin, cout in channel_pairs:
        w = np.zeros((3, 3, cin, cout), np.float32)
        # PyTorch center slice weight[:, :, 1, 1] has shape (cout, cin); ours (cin, cout).
        w[1, 1] = _orthogonal_np(rng, cout, cin, gain).T
        b = np.zeros((cout,), np.float32)
        params.append((jnp.asarray(w), jnp.asarray(b)))
    return params


# ----------------------------------------------------------------------------
# MaskerNet forward (plain-JAX glue around the fused Pallas kernel)
# ----------------------------------------------------------------------------
def masker_net_forward(x_nchw, params, *, img_size, mask_type="soft",
                       threshold=0.5, threshold_type="fix", test_env=False,
                       batch_tile=None):
    # CenterCrop: pass-through when spatial size already matches img_size.
    N, C, H, W = x_nchw.shape
    if not (H == img_size and W == img_size):
        assert W == 100, f"unexpected size: {W}"
        p = 8  # img_size == 84 case
        # TODO(synk): fold this crop into the kernel's input index_map (element
        # offsets) to avoid an extra HBM pass on 100x100 inputs.
        x_nchw = x_nchw[:, :, p:-p, p:-p]

    mask = masker_forward_fused(x_nchw, params, batch_tile=batch_tile)  # (N,1,H,W)

    # Hard-mask thresholding (global reductions / sort stay as plain-JAX glue).
    if mask_type == "hard" or (mask_type == "mixed" and test_env):
        if threshold_type == "fix":
            mask = (mask > threshold).astype(jnp.float32)
        elif threshold_type == "avg":
            mask = (mask > mask.mean()).astype(jnp.float32)
        elif threshold_type == "quantile":
            # torch.kthvalue(v, k) = k-th smallest (1-indexed) -> sorted[k-1].
            k = int((1 - threshold) * mask.size) + 1
            thr = jnp.sort(mask.reshape(-1))[k - 1]
            mask = (mask > thr).astype(jnp.float32)
        else:
            raise NotImplementedError
    # TODO(synk): current_soft_mask / self._thresholds bookkeeping is Python-side
    # logging state in the reference module; not representable in the kernel.
    return mask


if __name__ == "__main__":
    # obs_shape = (9, 16, 16) with frame_stack=3 -> per-frame conv input has 3 channels
    batch, in_ch, img_size = 2, 3, 16
    num_filters, num_layers = 8, 3

    key = jax.random.PRNGKey(0)
    kx, kb = jax.random.split(key)
    x = jax.random.uniform(kx, (batch, in_ch, img_size, img_size),
                           dtype=jnp.float32, minval=0.0, maxval=255.0)

    # Module-faithful params (orthogonal center tap, zero bias).
    params = init_masker_params(in_ch, num_filters, num_layers, seed=0)

    soft_mask = masker_net_forward(x, params, img_size=img_size, mask_type="soft")
    jax.block_until_ready(soft_mask)
    assert soft_mask.shape == (batch, 1, img_size, img_size)
    assert bool(jnp.all((soft_mask >= 0.0) & (soft_mask <= 1.0)))
    np.testing.assert_allclose(np.asarray(soft_mask),
                               np.asarray(masker_reference(x, params)),
                               rtol=2e-4, atol=2e-4)

    hard_mask = masker_net_forward(x, params, img_size=img_size,
                                   mask_type="hard", threshold=0.5,
                                   threshold_type="fix")
    jax.block_until_ready(hard_mask)
    assert hard_mask.shape == (batch, 1, img_size, img_size)
    assert bool(jnp.all((hard_mask == 0.0) | (hard_mask == 1.0)))

    # Dense-random-weight check vs. the plain-JAX conv reference: the module init
    # zeroes every off-center tap, which would not exercise the roll/mask 'same'
    # padding path; this one does, and also exercises batch_tile=4 / grid=2.
    rng = np.random.default_rng(0)
    chans = [in_ch] + [num_filters] * (num_layers - 1) + [1]
    dense_params = []
    for cin, cout in zip(chans[:-1], chans[1:]):
        w = jnp.asarray(rng.standard_normal((3, 3, cin, cout)) * 0.3, jnp.float32)
        b = jnp.asarray(rng.standard_normal((cout,)) * 0.1, jnp.float32)
        dense_params.append((w, b))
    xb = jax.random.uniform(kb, (8, in_ch, img_size, img_size),
                            dtype=jnp.float32, minval=0.0, maxval=255.0)
    got = masker_forward_fused(xb, dense_params)
    want = masker_reference(xb, dense_params)
    jax.block_until_ready(got)
    np.testing.assert_allclose(np.asarray(got), np.asarray(want),
                               rtol=2e-4, atol=2e-4)

    print("KERNEL_OK")
</pallas_src>

<mosaic_0001>
module attributes {stable_mosaic.version = 11 : i64} {
  func.func @kernel(%arg0: i32, %arg1: memref<1x3x256xf32, #tpu.memory_space<vmem>>, %arg2: memref<8x27xf32, #tpu.memory_space<vmem>>, %arg3: memref<8x1xf32, #tpu.memory_space<vmem>>, %arg4: memref<8x72xf32, #tpu.memory_space<vmem>>, %arg5: memref<8x1xf32, #tpu.memory_space<vmem>>, %arg6: memref<1x72xf32, #tpu.memory_space<vmem>>, %arg7: memref<1x1xf32, #tpu.memory_space<vmem>>, %arg8: memref<1x1x256xf32, #tpu.memory_space<vmem>>) attributes {dimension_semantics = [#tpu.dimension_semantics<parallel>], iteration_bounds = array<i64: 2>, scalar_prefetch = 0 : i64, scratch_operands = 0 : i64, tpu.core_type = #tpu.core_type<tc>, window_params = [{transform_indices = @transform_0, window_bounds = array<i64: 1, 3, 256>}, {pipeline_mode = #tpu.pipeline_mode<synchronous>, transform_indices = @transform_1, window_bounds = array<i64: 8, 27>}, {pipeline_mode = #tpu.pipeline_mode<synchronous>, transform_indices = @transform_2, window_bounds = array<i64: 8, 1>}, {pipeline_mode = #tpu.pipeline_mode<synchronous>, transform_indices = @transform_3, window_bounds = array<i64: 8, 72>}, {pipeline_mode = #tpu.pipeline_mode<synchronous>, transform_indices = @transform_4, window_bounds = array<i64: 8, 1>}, {pipeline_mode = #tpu.pipeline_mode<synchronous>, transform_indices = @transform_5, window_bounds = array<i64: 1, 72>}, {pipeline_mode = #tpu.pipeline_mode<synchronous>, transform_indices = @transform_6, window_bounds = array<i64: 1, 1>}, {transform_indices = @transform_7, window_bounds = array<i64: 1, 1, 256>}]} {
    %0 = tpu.iota {dimensions = array<i32: 2>} : vector<1x1x256xi32>
    %c15_i32 = arith.constant 15 : i32
    %1 = vector.broadcast %c15_i32 : i32 to vector<1x1x256xi32>
    %2 = arith.andi %0, %1 : vector<1x1x256xi32>
    %c16_i32 = arith.constant 16 : i32
    %3 = vector.broadcast %c16_i32 : i32 to vector<1x1x256xi32>
    %4 = arith.cmpi sge, %0, %3 : vector<1x1x256xi32>
    %c272_i32 = arith.constant 272 : i32
    %5 = vector.broadcast %c272_i32 : i32 to vector<1x1x256xi32>
    %6 = arith.cmpi slt, %0, %5 : vector<1x1x256xi32>
    %7 = arith.andi %4, %6 : vector<1x1x256xi1>
    %c1_i32 = arith.constant 1 : i32
    %8 = vector.broadcast %c1_i32 : i32 to vector<1x1x256xi32>
    %9 = arith.cmpi sge, %2, %8 : vector<1x1x256xi32>
    %10 = arith.andi %7, %9 : vector<1x1x256xi1>
    %c17_i32 = arith.constant 17 : i32
    %11 = vector.broadcast %c17_i32 : i32 to vector<1x1x256xi32>
    %12 = arith.cmpi slt, %2, %11 : vector<1x1x256xi32>
    %13 = arith.andi %10, %12 : vector<1x1x256xi1>
    %c16_i32_0 = arith.constant 16 : i32
    %14 = vector.broadcast %c16_i32_0 : i32 to vector<1x1x256xi32>
    %15 = arith.cmpi sge, %0, %14 : vector<1x1x256xi32>
    %c272_i32_1 = arith.constant 272 : i32
    %16 = vector.broadcast %c272_i32_1 : i32 to vector<1x1x256xi32>
    %17 = arith.cmpi slt, %0, %16 : vector<1x1x256xi32>
    %18 = arith.andi %15, %17 : vector<1x1x256xi1>
    %c0_i32 = arith.constant 0 : i32
    %19 = vector.broadcast %c0_i32 : i32 to vector<1x1x256xi32>
    %20 = arith.cmpi sge, %2, %19 : vector<1x1x256xi32>
    %21 = arith.andi %18, %20 : vector<1x1x256xi1>
    %c16_i32_2 = arith.constant 16 : i32
    %22 = vector.broadcast %c16_i32_2 : i32 to vector<1x1x256xi32>
    %23 = arith.cmpi slt, %2, %22 : vector<1x1x256xi32>
    %24 = arith.andi %21, %23 : vector<1x1x256xi1>
    %c16_i32_3 = arith.constant 16 : i32
    %25 = vector.broadcast %c16_i32_3 : i32 to vector<1x1x256xi32>
    %26 = arith.cmpi sge, %0, %25 : vector<1x1x256xi32>
    %c272_i32_4 = arith.constant 272 : i32
    %27 = vector.broadcast %c272_i32_4 : i32 to vector<1x1x256xi32>
    %28 = arith.cmpi slt, %0, %27 : vector<1x1x256xi32>
    %29 = arith.andi %26, %28 : vector<1x1x256xi1>
    %c-1_i32 = arith.constant -1 : i32
    %30 = vector.broadcast %c-1_i32 : i32 to vector<1x1x256xi32>
    %31 = arith.cmpi sge, %2, %30 : vector<1x1x256xi32>
    %32 = arith.andi %29, %31 : vector<1x1x256xi1>
    %c15_i32_5 = arith.constant 15 : i32
    %33 = vector.broadcast %c15_i32_5 : i32 to vector<1x1x256xi32>
    %34 = arith.cmpi slt, %2, %33 : vector<1x1x256xi32>
    %35 = arith.andi %32, %34 : vector<1x1x256xi1>
    %c0_i32_6 = arith.constant 0 : i32
    %36 = vector.broadcast %c0_i32_6 : i32 to vector<1x1x256xi32>
    %37 = arith.cmpi sge, %0, %36 : vector<1x1x256xi32>
    %c256_i32 = arith.constant 256 : i32
    %38 = vector.broadcast %c256_i32 : i32 to vector<1x1x256xi32>
    %39 = arith.cmpi slt, %0, %38 : vector<1x1x256xi32>
    %40 = arith.andi %37, %39 : vector<1x1x256xi1>
    %c1_i32_7 = arith.constant 1 : i32
    %41 = vector.broadcast %c1_i32_7 : i32 to vector<1x1x256xi32>
    %42 = arith.cmpi sge, %2, %41 : vector<1x1x256xi32>
    %43 = arith.andi %40, %42 : vector<1x1x256xi1>
    %c17_i32_8 = arith.constant 17 : i32
    %44 = vector.broadcast %c17_i32_8 : i32 to vector<1x1x256xi32>
    %45 = arith.cmpi slt, %2, %44 : vector<1x1x256xi32>
    %46 = arith.andi %43, %45 : vector<1x1x256xi1>
    %c0_i32_9 = arith.constant 0 : i32
    %47 = vector.broadcast %c0_i32_9 : i32 to vector<1x1x256xi32>
    %48 = arith.cmpi sge, %0, %47 : vector<1x1x256xi32>
    %c256_i32_10 = arith.constant 256 : i32
    %49 = vector.broadcast %c256_i32_10 : i32 to vector<1x1x256xi32>
    %50 = arith.cmpi slt, %0, %49 : vector<1x1x256xi32>
    %51 = arith.andi %48, %50 : vector<1x1x256xi1>
    %c0_i32_11 = arith.constant 0 : i32
    %52 = vector.broadcast %c0_i32_11 : i32 to vector<1x1x256xi32>
    %53 = arith.cmpi sge, %2, %52 : vector<1x1x256xi32>
    %54 = arith.andi %51, %53 : vector<1x1x256xi1>
    %c16_i32_12 = arith.constant 16 : i32
    %55 = vector.broadcast %c16_i32_12 : i32 to vector<1x1x256xi32>
    %56 = arith.cmpi slt, %2, %55 : vector<1x1x256xi32>
    %57 = arith.andi %54, %56 : vector<1x1x256xi1>
    %c0_i32_13 = arith.constant 0 : i32
    %58 = vector.broadcast %c0_i32_13 : i32 to vector<1x1x256xi32>
    %59 = arith.cmpi sge, %0, %58 : vector<1x1x256xi32>
    %c256_i32_14 = arith.constant 256 : i32
    %60 = vector.broadcast %c256_i32_14 : i32 to vector<1x1x256xi32>
    %61 = arith.cmpi slt, %0, %60 : vector<1x1x256xi32>
    %62 = arith.andi %59, %61 : vector<1x1x256xi1>
    %c-1_i32_15 = arith.constant -1 : i32
    %63 = vector.broadcast %c-1_i32_15 : i32 to vector<1x1x256xi32>
    %64 = arith.cmpi sge, %2, %63 : vector<1x1x256xi32>
    %65 = arith.andi %62, %64 : vector<1x1x256xi1>
    %c15_i32_16 = arith.constant 15 : i32
    %66 = vector.broadcast %c15_i32_16 : i32 to vector<1x1x256xi32>
    %67 = arith.cmpi slt, %2, %66 : vector<1x1x256xi32>
    %68 = arith.andi %65, %67 : vector<1x1x256xi1>
    %c-16_i32 = arith.constant -16 : i32
    %69 = vector.broadcast %c-16_i32 : i32 to vector<1x1x256xi32>
    %70 = arith.cmpi sge, %0, %69 : vector<1x1x256xi32>
    %c240_i32 = arith.constant 240 : i32
    %71 = vector.broadcast %c240_i32 : i32 to vector<1x1x256xi32>
    %72 = arith.cmpi slt, %0, %71 : vector<1x1x256xi32>
    %73 = arith.andi %70, %72 : vector<1x1x256xi1>
    %c1_i32_17 = arith.constant 1 : i32
    %74 = vector.broadcast %c1_i32_17 : i32 to vector<1x1x256xi32>
    %75 = arith.cmpi sge, %2, %74 : vector<1x1x256xi32>
    %76 = arith.andi %73, %75 : vector<1x1x256xi1>
    %c17_i32_18 = arith.constant 17 : i32
    %77 = vector.broadcast %c17_i32_18 : i32 to vector<1x1x256xi32>
    %78 = arith.cmpi slt, %2, %77 : vector<1x1x256xi32>
    %79 = arith.andi %76, %78 : vector<1x1x256xi1>
    %c-16_i32_19 = arith.constant -16 : i32
    %80 = vector.broadcast %c-16_i32_19 : i32 to vector<1x1x256xi32>
    %81 = arith.cmpi sge, %0, %80 : vector<1x1x256xi32>
    %c240_i32_20 = arith.constant 240 : i32
    %82 = vector.broadcast %c240_i32_20 : i32 to vector<1x1x256xi32>
    %83 = arith.cmpi slt, %0, %82 : vector<1x1x256xi32>
    %84 = arith.andi %81, %83 : vector<1x1x256xi1>
    %c0_i32_21 = arith.constant 0 : i32
    %85 = vector.broadcast %c0_i32_21 : i32 to vector<1x1x256xi32>
    %86 = arith.cmpi sge, %2, %85 : vector<1x1x256xi32>
    %87 = arith.andi %84, %86 : vector<1x1x256xi1>
    %c16_i32_22 = arith.constant 16 : i32
    %88 = vector.broadcast %c16_i32_22 : i32 to vector<1x1x256xi32>
    %89 = arith.cmpi slt, %2, %88 : vector<1x1x256xi32>
    %90 = arith.andi %87, %89 : vector<1x1x256xi1>
    %c-16_i32_23 = arith.constant -16 : i32
    %91 = vector.broadcast %c-16_i32_23 : i32 to vector<1x1x256xi32>
    %92 = arith.cmpi sge, %0, %91 : vector<1x1x256xi32>
    %c240_i32_24 = arith.constant 240 : i32
    %93 = vector.broadcast %c240_i32_24 : i32 to vector<1x1x256xi32>
    %94 = arith.cmpi slt, %0, %93 : vector<1x1x256xi32>
    %95 = arith.andi %92, %94 : vector<1x1x256xi1>
    %c-1_i32_25 = arith.constant -1 : i32
    %96 = vector.broadcast %c-1_i32_25 : i32 to vector<1x1x256xi32>
    %97 = arith.cmpi sge, %2, %96 : vector<1x1x256xi32>
    %98 = arith.andi %95, %97 : vector<1x1x256xi1>
    %c15_i32_26 = arith.constant 15 : i32
    %99 = vector.broadcast %c15_i32_26 : i32 to vector<1x1x256xi32>
    %100 = arith.cmpi slt, %2, %99 : vector<1x1x256xi32>
    %101 = arith.andi %98, %100 : vector<1x1x256xi1>
    %c0 = arith.constant 0 : index
    %c0_27 = arith.constant 0 : index
    %c0_28 = arith.constant 0 : index
    %102 = vector.load %arg1[%c0, %c0_27, %c0_28] : memref<1x3x256xf32, #tpu.memory_space<vmem>>, vector<1x3x256xf32>
    %cst = arith.constant 0.00392156886 : f32
    %103 = vector.broadcast %cst : f32 to vector<1x3x256xf32>
    %104 = arith.mulf %102, %103 : vector<1x3x256xf32>
    %c0_29 = arith.constant 0 : index
    %c0_30 = arith.constant 0 : index
    %105 = vector.load %arg2[%c0_29, %c0_30] : memref<8x27xf32, #tpu.memory_space<vmem>>, vector<8x27xf32>
    %c0_31 = arith.constant 0 : index
    %c0_32 = arith.constant 0 : index
    %106 = vector.load %arg3[%c0_31, %c0_32] : memref<8x1xf32, #tpu.memory_space<vmem>>, vector<8x1xf32>
    %cst_33 = arith.constant 0.000000e+00 : f32
    %107 = vector.broadcast %cst_33 : f32 to vector<1x8x256xf32>
    %c17_i32_34 = arith.constant 17 : i32
    %108 = tpu.dynamic_rotate %104 by %c17_i32_34 dim 2 : vector<1x3x256xf32>, i32 -> vector<1x3x256xf32>
    %cst_35 = arith.constant 0.000000e+00 : f32
    %109 = vector.shape_cast %13 : vector<1x1x256xi1> to vector<1x1x256xi1>
    %110 = vector.broadcast %109 : vector<1x1x256xi1> to vector<1x3x256xi1>
    %111 = vector.broadcast %cst_35 : f32 to vector<1x3x256xf32>
    %112 = arith.select %110, %108, %111 : vector<1x3x256xi1>, vector<1x3x256xf32>
    %113 = vector.extract_strided_slice %105 {offsets = [0, 0], sizes = [8, 1], strides = [1, 1]} : vector<8x27xf32> to vector<8x1xf32>
    %114 = vector.shape_cast %113 : vector<8x1xf32> to vector<1x8x1xf32>
    %115 = vector.extract_strided_slice %112 {offsets = [0, 0, 0], sizes = [1, 1, 256], strides = [1, 1, 1]} : vector<1x3x256xf32> to vector<1x1x256xf32>
    %116 = vector.broadcast %114 : vector<1x8x1xf32> to vector<1x8x256xf32>
    %117 = vector.broadcast %115 : vector<1x1x256xf32> to vector<1x8x256xf32>
    %118 = arith.mulf %116, %117 : vector<1x8x256xf32>
    %119 = arith.addf %107, %118 : vector<1x8x256xf32>
    %120 = vector.extract_strided_slice %105 {offsets = [0, 1], sizes = [8, 1], strides = [1, 1]} : vector<8x27xf32> to vector<8x1xf32>
    %121 = vector.shape_cast %120 : vector<8x1xf32> to vector<1x8x1xf32>
    %122 = vector.extract_strided_slice %112 {offsets = [0, 1, 0], sizes = [1, 1, 256], strides = [1, 1, 1]} : vector<1x3x256xf32> to vector<1x1x256xf32>
    %123 = vector.broadcast %121 : vector<1x8x1xf32> to vector<1x8x256xf32>
    %124 = vector.broadcast %122 : vector<1x1x256xf32> to vector<1x8x256xf32>
    %125 = arith.mulf %123, %124 : vector<1x8x256xf32>
    %126 = arith.addf %119, %125 : vector<1x8x256xf32>
    %127 = vector.extract_strided_slice %105 {offsets = [0, 2], sizes = [8, 1], strides = [1, 1]} : vector<8x27xf32> to vector<8x1xf32>
    %128 = vector.shape_cast %127 : vector<8x1xf32> to vector<1x8x1xf32>
    %129 = vector.extract_strided_slice %112 {offsets = [0, 2, 0], sizes = [1, 1, 256], strides = [1, 1, 1]} : vector<1x3x256xf32> to vector<1x1x256xf32>
    %130 = vector.broadcast %128 : vector<1x8x1xf32> to vector<1x8x256xf32>
    %131 = vector.broadcast %129 : vector<1x1x256xf32> to vector<1x8x256xf32>
    %132 = arith.mulf %130, %131 : vector<1x8x256xf32>
    %133 = arith.addf %126, %132 : vector<1x8x256xf32>
    %c16_i32_36 = arith.constant 16 : i32
    %134 = tpu.dynamic_rotate %104 by %c16_i32_36 dim 2 : vector<1x3x256xf32>, i32 -> vector<1x3x256xf32>
    %cst_37 = arith.constant 0.000000e+00 : f32
    %135 = vector.shape_cast %24 : vector<1x1x256xi1> to vector<1x1x256xi1>
    %136 = vector.broadcast %135 : vector<1x1x256xi1> to vector<1x3x256xi1>
    %137 = vector.broadcast %cst_37 : f32 to vector<1x3x256xf32>
    %138 = arith.select %136, %134, %137 : vector<1x3x256xi1>, vector<1x3x256xf32>
    %139 = vector.extract_strided_slice %105 {offsets = [0, 3], sizes = [8, 1], strides = [1, 1]} : vector<8x27xf32> to vector<8x1xf32>
    %140 = vector.shape_cast %139 : vector<8x1xf32> to vector<1x8x1xf32>
    %141 = vector.extract_strided_slice %138 {offsets = [0, 0, 0], sizes = [1, 1, 256], strides = [1, 1, 1]} : vector<1x3x256xf32> to vector<1x1x256xf32>
    %142 = vector.broadcast %140 : vector<1x8x1xf32> to vector<1x8x256xf32>
    %143 = vector.broadcast %141 : vector<1x1x256xf32> to vector<1x8x256xf32>
    %144 = arith.mulf %142, %143 : vector<1x8x256xf32>
    %145 = arith.addf %133, %144 : vector<1x8x256xf32>
    %146 = vector.extract_strided_slice %105 {offsets = [0, 4], sizes = [8, 1], strides = [1, 1]} : vector<8x27xf32> to vector<8x1xf32>
    %147 = vector.shape_cast %146 : vector<8x1xf32> to vector<1x8x1xf32>
    %148 = vector.extract_strided_slice %138 {offsets = [0, 1, 0], sizes = [1, 1, 256], strides = [1, 1, 1]} : vector<1x3x256xf32> to vector<1x1x256xf32>
    %149 = vector.broadcast %147 : vector<1x8x1xf32> to vector<1x8x256xf32>
    %150 = vector.broadcast %148 : vector<1x1x256xf32> to vector<1x8x256xf32>
    %151 = arith.mulf %149, %150 : vector<1x8x256xf32>
    %152 = arith.addf %145, %151 : vector<1x8x256xf32>
    %153 = vector.extract_strided_slice %105 {offsets = [0, 5], sizes = [8, 1], strides = [1, 1]} : vector<8x27xf32> to vector<8x1xf32>
    %154 = vector.shape_cast %153 : vector<8x1xf32> to vector<1x8x1xf32>
    %155 = vector.extract_strided_slice %138 {offsets = [0, 2, 0], sizes = [1, 1, 256], strides = [1, 1, 1]} : vector<1x3x256xf32> to vector<1x1x256xf32>
    %156 = vector.broadcast %154 : vector<1x8x1xf32> to vector<1x8x256xf32>
    %157 = vector.broadcast %155 : vector<1x1x256xf32> to vector<1x8x256xf32>
    %158 = arith.mulf %156, %157 : vector<1x8x256xf32>
    %159 = arith.addf %152, %158 : vector<1x8x256xf32>
    %c15_i32_38 = arith.constant 15 : i32
    %160 = tpu.dynamic_rotate %104 by %c15_i32_38 dim 2 : vector<1x3x256xf32>, i32 -> vector<1x3x256xf32>
    %cst_39 = arith.constant 0.000000e+00 : f32
    %161 = vector.shape_cast %35 : vector<1x1x256xi1> to vector<1x1x256xi1>
    %162 = vector.broadcast %161 : vector<1x1x256xi1> to vector<1x3x256xi1>
    %163 = vector.broadcast %cst_39 : f32 to vector<1x3x256xf32>
    %164 = arith.select %162, %160, %163 : vector<1x3x256xi1>, vector<1x3x256xf32>
    %165 = vector.extract_strided_slice %105 {offsets = [0, 6], sizes = [8, 1], strides = [1, 1]} : vector<8x27xf32> to vector<8x1xf32>
    %166 = vector.shape_cast %165 : vector<8x1xf32> to vector<1x8x1xf32>
    %167 = vector.extract_strided_slice %164 {offsets = [0, 0, 0], sizes = [1, 1, 256], strides = [1, 1, 1]} : vector<1x3x256xf32> to vector<1x1x256xf32>
    %168 = vector.broadcast %166 : vector<1x8x1xf32> to vector<1x8x256xf32>
    %169 = vector.broadcast %167 : vector<1x1x256xf32> to vector<1x8x256xf32>
    %170 = arith.mulf %168, %169 : vector<1x8x256xf32>
    %171 = arith.addf %159, %170 : vector<1x8x256xf32>
    %172 = vector.extract_strided_slice %105 {offsets = [0, 7], sizes = [8, 1], strides = [1, 1]} : vector<8x27xf32> to vector<8x1xf32>
    %173 = vector.shape_cast %172 : vector<8x1xf32> to vector<1x8x1xf32>
    %174 = vector.extract_strided_slice %164 {offsets = [0, 1, 0], sizes = [1, 1, 256], strides = [1, 1, 1]} : vector<1x3x256xf32> to vector<1x1x256xf32>
    %175 = vector.broadcast %173 : vector<1x8x1xf32> to vector<1x8x256xf32>
    %176 = vector.broadcast %174 : vector<1x1x256xf32> to vector<1x8x256xf32>
    %177 = arith.mulf %175, %176 : vector<1x8x256xf32>
    %178 = arith.addf %171, %177 : vector<1x8x256xf32>
    %179 = vector.extract_strided_slice %105 {offsets = [0, 8], sizes = [8, 1], strides = [1, 1]} : vector<8x27xf32> to vector<8x1xf32>
    %180 = vector.shape_cast %179 : vector<8x1xf32> to vector<1x8x1xf32>
    %181 = vector.extract_strided_slice %164 {offsets = [0, 2, 0], sizes = [1, 1, 256], strides = [1, 1, 1]} : vector<1x3x256xf32> to vector<1x1x256xf32>
    %182 = vector.broadcast %180 : vector<1x8x1xf32> to vector<1x8x256xf32>
    %183 = vector.broadcast %181 : vector<1x1x256xf32> to vector<1x8x256xf32>
    %184 = arith.mulf %182, %183 : vector<1x8x256xf32>
    %185 = arith.addf %178, %184 : vector<1x8x256xf32>
    %c1_i32_40 = arith.constant 1 : i32
    %186 = tpu.dynamic_rotate %104 by %c1_i32_40 dim 2 : vector<1x3x256xf32>, i32 -> vector<1x3x256xf32>
    %cst_41 = arith.constant 0.000000e+00 : f32
    %187 = vector.shape_cast %46 : vector<1x1x256xi1> to vector<1x1x256xi1>
    %188 = vector.broadcast %187 : vector<1x1x256xi1> to vector<1x3x256xi1>
    %189 = vector.broadcast %cst_41 : f32 to vector<1x3x256xf32>
    %190 = arith.select %188, %186, %189 : vector<1x3x256xi1>, vector<1x3x256xf32>
    %191 = vector.extract_strided_slice %105 {offsets = [0, 9], sizes = [8, 1], strides = [1, 1]} : vector<8x27xf32> to vector<8x1xf32>
    %192 = vector.shape_cast %191 : vector<8x1xf32> to vector<1x8x1xf32>
    %193 = vector.extract_strided_slice %190 {offsets = [0, 0, 0], sizes = [1, 1, 256], strides = [1, 1, 1]} : vector<1x3x256xf32> to vector<1x1x256xf32>
    %194 = vector.broadcast %192 : vector<1x8x1xf32> to vector<1x8x256xf32>
    %195 = vector.broadcast %193 : vector<1x1x256xf32> to vector<1x8x256xf32>
    %196 = arith.mulf %194, %195 : vector<1x8x256xf32>
    %197 = arith.addf %185, %196 : vector<1x8x256xf32>
    %198 = vector.extract_strided_slice %105 {offsets = [0, 10], sizes = [8, 1], strides = [1, 1]} : vector<8x27xf32> to vector<8x1xf32>
    %199 = vector.shape_cast %198 : vector<8x1xf32> to vector<1x8x1xf32>
    %200 = vector.extract_strided_slice %190 {offsets = [0, 1, 0], sizes = [1, 1, 256], strides = [1, 1, 1]} : vector<1x3x256xf32> to vector<1x1x256xf32>
    %201 = vector.broadcast %199 : vector<1x8x1xf32> to vector<1x8x256xf32>
    %202 = vector.broadcast %200 : vector<1x1x256xf32> to vector<1x8x256xf32>
    %203 = arith.mulf %201, %202 : vector<1x8x256xf32>
    %204 = arith.addf %197, %203 : vector<1x8x256xf32>
    %205 = vector.extract_strided_slice %105 {offsets = [0, 11], sizes = [8, 1], strides = [1, 1]} : vector<8x27xf32> to vector<8x1xf32>
    %206 = vector.shape_cast %205 : vector<8x1xf32> to vector<1x8x1xf32>
    %207 = vector.extract_strided_slice %190 {offsets = [0, 2, 0], sizes = [1, 1, 256], strides = [1, 1, 1]} : vector<1x3x256xf32> to vector<1x1x256xf32>
    %208 = vector.broadcast %206 : vector<1x8x1xf32> to vector<1x8x256xf32>
    %209 = vector.broadcast %207 : vector<1x1x256xf32> to vector<1x8x256xf32>
    %210 = arith.mulf %208, %209 : vector<1x8x256xf32>
    %211 = arith.addf %204, %210 : vector<1x8x256xf32>
    %cst_42 = arith.constant 0.000000e+00 : f32
    %212 = vector.shape_cast %57 : vector<1x1x256xi1> to vector<1x1x256xi1>
    %213 = vector.broadcast %212 : vector<1x1x256xi1> to vector<1x3x256xi1>
    %214 = vector.broadcast %cst_42 : f32 to vector<1x3x256xf32>
    %215 = arith.select %213, %104, %214 : vector<1x3x256xi1>, vector<1x3x256xf32>
    %216 = vector.extract_strided_slice %105 {offsets = [0, 12], sizes = [8, 1], strides = [1, 1]} : vector<8x27xf32> to vector<8x1xf32>
    %217 = vector.shape_cast %216 : vector<8x1xf32> to vector<1x8x1xf32>
    %218 = vector.extract_strided_slice %215 {offsets = [0, 0, 0], sizes = [1, 1, 256], strides = [1, 1, 1]} : vector<1x3x256xf32> to vector<1x1x256xf32>
    %219 = vector.broadcast %217 : vector<1x8x1xf32> to vector<1x8x256xf32>
    %220 = vector.broadcast %218 : vector<1x1x256xf32> to vector<1x8x256xf32>
    %221 = arith.mulf %219, %220 : vector<1x8x256xf32>
    %222 = arith.addf %211, %221 : vector<1x8x256xf32>
    %223 = vector.extract_strided_slice %105 {offsets = [0, 13], sizes = [8, 1], strides = [1, 1]} : vector<8x27xf32> to vector<8x1xf32>
    %224 = vector.shape_cast %223 : vector<8x1xf32> to vector<1x8x1xf32>
    %225 = vector.extract_strided_slice %215 {offsets = [0, 1, 0], sizes = [1, 1, 256], strides = [1, 1, 1]} : vector<1x3x256xf32> to vector<1x1x256xf32>
    %226 = vector.broadcast %224 : vector<1x8x1xf32> to vector<1x8x256xf32>
    %227 = vector.broadcast %225 : vector<1x1x256xf32> to vector<1x8x256xf32>
    %228 = arith.mulf %226, %227 : vector<1x8x256xf32>
    %229 = arith.addf %222, %228 : vector<1x8x256xf32>
    %230 = vector.extract_strided_slice %105 {offsets = [0, 14], sizes = [8, 1], strides = [1, 1]} : vector<8x27xf32> to vector<8x1xf32>
    %231 = vector.shape_cast %230 : vector<8x1xf32> to vector<1x8x1xf32>
    %232 = vector.extract_strided_slice %215 {offsets = [0, 2, 0], sizes = [1, 1, 256], strides = [1, 1, 1]} : vector<1x3x256xf32> to vector<1x1x256xf32>
    %233 = vector.broadcast %231 : vector<1x8x1xf32> to vector<1x8x256xf32>
    %234 = vector.broadcast %232 : vector<1x1x256xf32> to vector<1x8x256xf32>
    %235 = arith.mulf %233, %234 : vector<1x8x256xf32>
    %236 = arith.addf %229, %235 : vector<1x8x256xf32>
    %c255_i32 = arith.constant 255 : i32
    %237 = tpu.dynamic_rotate %104 by %c255_i32 dim 2 : vector<1x3x256xf32>, i32 -> vector<1x3x256xf32>
    %cst_43 = arith.constant 0.000000e+00 : f32
    %238 = vector.shape_cast %68 : vector<1x1x256xi1> to vector<1x1x256xi1>
    %239 = vector.broadcast %238 : vector<1x1x256xi1> to vector<1x3x256xi1>
    %240 = vector.broadcast %cst_43 : f32 to vector<1x3x256xf32>
    %241 = arith.select %239, %237, %240 : vector<1x3x256xi1>, vector<1x3x256xf32>
    %242 = vector.extract_strided_slice %105 {offsets = [0, 15], sizes = [8, 1], strides = [1, 1]} : vector<8x27xf32> to vector<8x1xf32>
    %243 = vector.shape_cast %242 : vector<8x1xf32> to vector<1x8x1xf32>
    %244 = vector.extract_strided_slice %241 {offsets = [0, 0, 0], sizes = [1, 1, 256], strides = [1, 1, 1]} : vector<1x3x256xf32> to vector<1x1x256xf32>
    %245 = vector.broadcast %243 : vector<1x8x1xf32> to vector<1x8x256xf32>
    %246 = vector.broadcast %244 : vector<1x1x256xf32> to vector<1x8x256xf32>
    %247 = arith.mulf %245, %246 : vector<1x8x256xf32>
    %248 = arith.addf %236, %247 : vector<1x8x256xf32>
    %249 = vector.extract_strided_slice %105 {offsets = [0, 16], sizes = [8, 1], strides = [1, 1]} : vector<8x27xf32> to vector<8x1xf32>
    %250 = vector.shape_cast %249 : vector<8x1xf32> to vector<1x8x1xf32>
    %251 = vector.extract_strided_slice %241 {offsets = [0, 1, 0], sizes = [1, 1, 256], strides = [1, 1, 1]} : vector<1x3x256xf32> to vector<1x1x256xf32>
    %252 = vector.broadcast %250 : vector<1x8x1xf32> to vector<1x8x256xf32>
    %253 = vector.broadcast %251 : vector<1x1x256xf32> to vector<1x8x256xf32>
    %254 = arith.mulf %252, %253 : vector<1x8x256xf32>
    %255 = arith.addf %248, %254 : vector<1x8x256xf32>
    %256 = vector.extract_strided_slice %105 {offsets = [0, 17], sizes = [8, 1], strides = [1, 1]} : vector<8x27xf32> to vector<8x1xf32>
    %257 = vector.shape_cast %256 : vector<8x1xf32> to vector<1x8x1xf32>
    %258 = vector.extract_strided_slice %241 {offsets = [0, 2, 0], sizes = [1, 1, 256], strides = [1, 1, 1]} : vector<1x3x256xf32> to vector<1x1x256xf32>
    %259 = vector.broadcast %257 : vector<1x8x1xf32> to vector<1x8x256xf32>
    %260 = vector.broadcast %258 : vector<1x1x256xf32> to vector<1x8x256xf32>
    %261 = arith.mulf %259, %260 : vector<1x8x256xf32>
    %262 = arith.addf %255, %261 : vector<1x8x256xf32>
    %c241_i32 = arith.constant 241 : i32
    %263 = tpu.dynamic_rotate %104 by %c241_i32 dim 2 : vector<1x3x256xf32>, i32 -> vector<1x3x256xf32>
    %cst_44 = arith.constant 0.000000e+00 : f32
    %264 = vector.shape_cast %79 : vector<1x1x256xi1> to vector<1x1x256xi1>
    %265 = vector.broadcast %264 : vector<1x1x256xi1> to vector<1x3x256xi1>
    %266 = vector.broadcast %cst_44 : f32 to vector<1x3x256xf32>
    %267 = arith.select %265, %263, %266 : vector<1x3x256xi1>, vector<1x3x256xf32>
    %268 = vector.extract_strided_slice %105 {offsets = [0, 18], sizes = [8, 1], strides = [1, 1]} : vector<8x27xf32> to vector<8x1xf32>
    %269 = vector.shape_cast %268 : vector<8x1xf32> to vector<1x8x1xf32>
    %270 = vector.extract_strided_slice %267 {offsets = [0, 0, 0], sizes = [1, 1, 256], strides = [1, 1, 1]} : vector<1x3x256xf32> to vector<1x1x256xf32>
    %271 = vector.broadcast %269 : vector<1x8x1xf32> to vector<1x8x256xf32>
    %272 = vector.broadcast %270 : vector<1x1x256xf32> to vector<1x8x256xf32>
    %273 = arith.mulf %271, %272 : vector<1x8x256xf32>
    %274 = arith.addf %262, %273 : vector<1x8x256xf32>
    %275 = vector.extract_strided_slice %105 {offsets = [0, 19], sizes = [8, 1], strides = [1, 1]} : vector<8x27xf32> to vector<8x1xf32>
    %276 = vector.shape_cast %275 : vector<8x1xf32> to vector<1x8x1xf32>
    %277 = vector.extract_strided_slice %267 {offsets = [0, 1, 0], sizes = [1, 1, 256], strides = [1, 1, 1]} : vector<1x3x256xf32> to vector<1x1x256xf32>
    %278 = vector.broadcast %276 : vector<1x8x1xf32> to vector<1x8x256xf32>
    %279 = vector.broadcast %277 : vector<1x1x256xf32> to vector<1x8x256xf32>
    %280 = arith.mulf %278, %279 : vector<1x8x256xf32>
    %281 = arith.addf %274, %280 : vector<1x8x256xf32>
    %282 = vector.extract_strided_slice %105 {offsets = [0, 20], sizes = [8, 1], strides = [1, 1]} : vector<8x27xf32> to vector<8x1xf32>
    %283 = vector.shape_cast %282 : vector<8x1xf32> to vector<1x8x1xf32>
    %284 = vector.extract_strided_slice %267 {offsets = [0, 2, 0], sizes = [1, 1, 256], strides = [1, 1, 1]} : vector<1x3x256xf32> to vector<1x1x256xf32>
    %285 = vector.broadcast %283 : vector<1x8x1xf32> to vector<1x8x256xf32>
    %286 = vector.broadcast %284 : vector<1x1x256xf32> to vector<1x8x256xf32>
    %287 = arith.mulf %285, %286 : vector<1x8x256xf32>
    %288 = arith.addf %281, %287 : vector<1x8x256xf32>
    %c240_i32_45 = arith.constant 240 : i32
    %289 = tpu.dynamic_rotate %104 by %c240_i32_45 dim 2 : vector<1x3x256xf32>, i32 -> vector<1x3x256xf32>
    %cst_46 = arith.constant 0.000000e+00 : f32
    %290 = vector.shape_cast %90 : vector<1x1x256xi1> to vector<1x1x256xi1>
    %291 = vector.broadcast %290 : vector<1x1x256xi1> to vector<1x3x256xi1>
    %292 = vector.broadcast %cst_46 : f32 to vector<1x3x256xf32>
    %293 = arith.select %291, %289, %292 : vector<1x3x256xi1>, vector<1x3x256xf32>
    %294 = vector.extract_strided_slice %105 {offsets = [0, 21], sizes = [8, 1], strides = [1, 1]} : vector<8x27xf32> to vector<8x1xf32>
    %295 = vector.shape_cast %294 : vector<8x1xf32> to vector<1x8x1xf32>
    %296 = vector.extract_strided_slice %293 {offsets = [0, 0, 0], sizes = [1, 1, 256], strides = [1, 1, 1]} : vector<1x3x256xf32> to vector<1x1x256xf32>
    %297 = vector.broadcast %295 : vector<1x8x1xf32> to vector<1x8x256xf32>
    %298 = vector.broadcast %296 : vector<1x1x256xf32> to vector<1x8x256xf32>
    %299 = arith.mulf %297, %298 : vector<1x8x256xf32>
    %300 = arith.addf %288, %299 : vector<1x8x256xf32>
    %301 = vector.extract_strided_slice %105 {offsets = [0, 22], sizes = [8, 1], strides = [1, 1]} : vector<8x27xf32> to vector<8x1xf32>
    %302 = vector.shape_cast %301 : vector<8x1xf32> to vector<1x8x1xf32>
    %303 = vector.extract_strided_slice %293 {offsets = [0, 1, 0], sizes = [1, 1, 256], strides = [1, 1, 1]} : vector<1x3x256xf32> to vector<1x1x256xf32>
    %304 = vector.broadcast %302 : vector<1x8x1xf32> to vector<1x8x256xf32>
    %305 = vector.broadcast %303 : vector<1x1x256xf32> to vector<1x8x256xf32>
    %306 = arith.mulf %304, %305 : vector<1x8x256xf32>
    %307 = arith.addf %300, %306 : vector<1x8x256xf32>
    %308 = vector.extract_strided_slice %105 {offsets = [0, 23], sizes = [8, 1], strides = [1, 1]} : vector<8x27xf32> to vector<8x1xf32>
    %309 = vector.shape_cast %308 : vector<8x1xf32> to vector<1x8x1xf32>
    %310 = vector.extract_strided_slice %293 {offsets = [0, 2, 0], sizes = [1, 1, 256], strides = [1, 1, 1]} : vector<1x3x256xf32> to vector<1x1x256xf32>
    %311 = vector.broadcast %309 : vector<1x8x1xf32> to vector<1x8x256xf32>
    %312 = vector.broadcast %310 : vector<1x1x256xf32> to vector<1x8x256xf32>
    %313 = arith.mulf %311, %312 : vector<1x8x256xf32>
    %314 = arith.addf %307, %313 : vector<1x8x256xf32>
    %c239_i32 = arith.constant 239 : i32
    %315 = tpu.dynamic_rotate %104 by %c239_i32 dim 2 : vector<1x3x256xf32>, i32 -> vector<1x3x256xf32>
    %cst_47 = arith.constant 0.000000e+00 : f32
    %316 = vector.shape_cast %101 : vector<1x1x256xi1> to vector<1x1x256xi1>
    %317 = vector.broadcast %316 : vector<1x1x256xi1> to vector<1x3x256xi1>
    %318 = vector.broadcast %cst_47 : f32 to vector<1x3x256xf32>
    %319 = arith.select %317, %315, %318 : vector<1x3x256xi1>, vector<1x3x256xf32>
    %320 = vector.extract_strided_slice %105 {offsets = [0, 24], sizes = [8, 1], strides = [1, 1]} : vector<8x27xf32> to vector<8x1xf32>
    %321 = vector.shape_cast %320 : vector<8x1xf32> to vector<1x8x1xf32>
    %322 = vector.extract_strided_slice %319 {offsets = [0, 0, 0], sizes = [1, 1, 256], strides = [1, 1, 1]} : vector<1x3x256xf32> to vector<1x1x256xf32>
    %323 = vector.broadcast %321 : vector<1x8x1xf32> to vector<1x8x256xf32>
    %324 = vector.broadcast %322 : vector<1x1x256xf32> to vector<1x8x256xf32>
    %325 = arith.mulf %323, %324 : vector<1x8x256xf32>
    %326 = arith.addf %314, %325 : vector<1x8x256xf32>
    %327 = vector.extract_strided_slice %105 {offsets = [0, 25], sizes = [8, 1], strides = [1, 1]} : vector<8x27xf32> to vector<8x1xf32>
    %328 = vector.shape_cast %327 : vector<8x1xf32> to vector<1x8x1xf32>
    %329 = vector.extract_strided_slice %319 {offsets = [0, 1, 0], sizes = [1, 1, 256], strides = [1, 1, 1]} : vector<1x3x256xf32> to vector<1x1x256xf32>
    %330 = vector.broadcast %328 : vector<1x8x1xf32> to vector<1x8x256xf32>
    %331 = vector.broadcast %329 : vector<1x1x256xf32> to vector<1x8x256xf32>
    %332 = arith.mulf %330, %331 : vector<1x8x256xf32>
    %333 = arith.addf %326, %332 : vector<1x8x256xf32>
    %334 = vector.extract_strided_slice %105 {offsets = [0, 26], sizes = [8, 1], strides = [1, 1]} : vector<8x27xf32> to vector<8x1xf32>
    %335 = vector.shape_cast %334 : vector<8x1xf32> to vector<1x8x1xf32>
    %336 = vector.extract_strided_slice %319 {offsets = [0, 2, 0], sizes = [1, 1, 256], strides = [1, 1, 1]} : vector<1x3x256xf32> to vector<1x1x256xf32>
    %337 = vector.broadcast %335 : vector<1x8x1xf32> to vector<1x8x256xf32>
    %338 = vector.broadcast %336 : vector<1x1x256xf32> to vector<1x8x256xf32>
    %339 = arith.mulf %337, %338 : vector<1x8x256xf32>
    %340 = arith.addf %333, %339 : vector<1x8x256xf32>
    %341 = vector.shape_cast %106 : vector<8x1xf32> to vector<1x8x1xf32>
    %342 = vector.broadcast %341 : vector<1x8x1xf32> to vector<1x8x256xf32>
    %343 = arith.addf %340, %342 : vector<1x8x256xf32>
    %cst_48 = arith.constant 0.000000e+00 : f32
    %344 = vector.broadcast %cst_48 : f32 to vector<1x8x256xf32>
    %345 = arith.maximumf %343, %344 : vector<1x8x256xf32>
    %c0_49 = arith.constant 0 : index
    %c0_50 = arith.constant 0 : index
    %346 = vector.load %arg4[%c0_49, %c0_50] : memref<8x72xf32, #tpu.memory_space<vmem>>, vector<8x72xf32>
    %c0_51 = arith.constant 0 : index
    %c0_52 = arith.constant 0 : index
    %347 = vector.load %arg5[%c0_51, %c0_52] : memref<8x1xf32, #tpu.memory_space<vmem>>, vector<8x1xf32>
    %cst_53 = arith.constant 0.000000e+00 : f32
    %348 = vector.broadcast %cst_53 : f32 to vector<1x8x256xf32>
    %c17_i32_54 = arith.constant 17 : i32
    %349 = tpu.dynamic_rotate %345 by %c17_i32_54 dim 2 : vector<1x8x256xf32>, i32 -> vector<1x8x256xf32>
    %cst_55 = arith.constant 0.000000e+00 : f32
    %350 = vector.shape_cast %13 : vector<1x1x256xi1> to vector<1x1x256xi1>
    %351 = vector.broadcast %350 : vector<1x1x256xi1> to vector<1x8x256xi1>
    %352 = vector.broadcast %cst_55 : f32 to vector<1x8x256xf32>
    %353 = arith.select %351, %349, %352 : vector<1x8x256xi1>, vector<1x8x256xf32>
    %354 = vector.extract_strided_slice %346 {offsets = [0, 0], sizes = [8, 1], strides = [1, 1]} : vector<8x72xf32> to vector<8x1xf32>
    %355 = vector.shape_cast %354 : vector<8x1xf32> to vector<1x8x1xf32>
    %356 = vector.extract_strided_slice %353 {offsets = [0, 0, 0], sizes = [1, 1, 256], strides = [1, 1, 1]} : vector<1x8x256xf32> to vector<1x1x256xf32>
    %357 = vector.broadcast %355 : vector<1x8x1xf32> to vector<1x8x256xf32>
    %358 = vector.broadcast %356 : vector<1x1x256xf32> to vector<1x8x256xf32>
    %359 = arith.mulf %357, %358 : vector<1x8x256xf32>
    %360 = arith.addf %348, %359 : vector<1x8x256xf32>
    %361 = vector.extract_strided_slice %346 {offsets = [0, 1], sizes = [8, 1], strides = [1, 1]} : vector<8x72xf32> to vector<8x1xf32>
    %362 = vector.shape_cast %361 : vector<8x1xf32> to vector<1x8x1xf32>
    %363 = vector.extract_strided_slice %353 {offsets = [0, 1, 0], sizes = [1, 1, 256], strides = [1, 1, 1]} : vector<1x8x256xf32> to vector<1x1x256xf32>
    %364 = vector.broadcast %362 : vector<1x8x1xf32> to vector<1x8x256xf32>
    %365 = vector.broadcast %363 : vector<1x1x256xf32> to vector<1x8x256xf32>
    %366 = arith.mulf %364, %365 : vector<1x8x256xf32>
    %367 = arith.addf %360, %366 : vector<1x8x256xf32>
    %368 = vector.extract_strided_slice %346 {offsets = [0, 2], sizes = [8, 1], strides = [1, 1]} : vector<8x72xf32> to vector<8x1xf32>
    %369 = vector.shape_cast %368 : vector<8x1xf32> to vector<1x8x1xf32>
    %370 = vector.extract_strided_slice %353 {offsets = [0, 2, 0], sizes = [1, 1, 256], strides = [1, 1, 1]} : vector<1x8x256xf32> to vector<1x1x256xf32>
    %371 = vector.broadcast %369 : vector<1x8x1xf32> to vector<1x8x256xf32>
    %372 = vector.broadcast %370 : vector<1x1x256xf32> to vector<1x8x256xf32>
    %373 = arith.mulf %371, %372 : vector<1x8x256xf32>
    %374 = arith.addf %367, %373 : vector<1x8x256xf32>
    %375 = vector.extract_strided_slice %346 {offsets = [0, 3], sizes = [8, 1], strides = [1, 1]} : vector<8x72xf32> to vector<8x1xf32>
    %376 = vector.shape_cast %375 : vector<8x1xf32> to vector<1x8x1xf32>
    %377 = vector.extract_strided_slice %353 {offsets = [0, 3, 0], sizes = [1, 1, 256], strides = [1, 1, 1]} : vector<1x8x256xf32> to vector<1x1x256xf32>
    %378 = vector.broadcast %376 : vector<1x8x1xf32> to vector<1x8x256xf32>
    %379 = vector.broadcast %377 : vector<1x1x256xf32> to vector<1x8x256xf32>
    %380 = arith.mulf %378, %379 : vector<1x8x256xf32>
    %381 = arith.addf %374, %380 : vector<1x8x256xf32>
    %382 = vector.extract_strided_slice %346 {offsets = [0, 4], sizes = [8, 1], strides = [1, 1]} : vector<8x72xf32> to vector<8x1xf32>
    %383 = vector.shape_cast %382 : vector<8x1xf32> to vector<1x8x1xf32>
    %384 = vector.extract_strided_slice %353 {offsets = [0, 4, 0], sizes = [1, 1, 256], strides = [1, 1, 1]} : vector<1x8x256xf32> to vector<1x1x256xf32>
    %385 = vector.broadcast %383 : vector<1x8x1xf32> to vector<1x8x256xf32>
    %386 = vector.broadcast %384 : vector<1x1x256xf32> to vector<1x8x256xf32>
    %387 = arith.mulf %385, %386 : vector<1x8x256xf32>
    %388 = arith.addf %381, %387 : vector<1x8x256xf32>
    %389 = vector.extract_strided_slice %346 {offsets = [0, 5], sizes = [8, 1], strides = [1, 1]} : vector<8x72xf32> to vector<8x1xf32>
    %390 = vector.shape_cast %389 : vector<8x1xf32> to vector<1x8x1xf32>
    %391 = vector.extract_strided_slice %353 {offsets = [0, 5, 0], sizes = [1, 1, 256], strides = [1, 1, 1]} : vector<1x8x256xf32> to vector<1x1x256xf32>
    %392 = vector.broadcast %390 : vector<1x8x1xf32> to vector<1x8x256xf32>
    %393 = vector.broadcast %391 : vector<1x1x256xf32> to vector<1x8x256xf32>
    %394 = arith.mulf %392, %393 : vector<1x8x256xf32>
    %395 = arith.addf %388, %394 : vector<1x8x256xf32>
    %396 = vector.extract_strided_slice %346 {offsets = [0, 6], sizes = [8, 1], strides = [1, 1]} : vector<8x72xf32> to vector<8x1xf32>
    %397 = vector.shape_cast %396 : vector<8x1xf32> to vector<1x8x1xf32>
    %398 = vector.extract_strided_slice %353 {offsets = [0, 6, 0], sizes = [1, 1, 256], strides = [1, 1, 1]} : vector<1x8x256xf32> to vector<1x1x256xf32>
    %399 = vector.broadcast %397 : vector<1x8x1xf32> to vector<1x8x256xf32>
    %400 = vector.broadcast %398 : vector<1x1x256xf32> to vector<1x8x256xf32>
    %401 = arith.mulf %399, %400 : vector<1x8x256xf32>
    %402 = arith.addf %395, %401 : vector<1x8x256xf32>
    %403 = vector.extract_strided_slice %346 {offsets = [0, 7], sizes = [8, 1], strides = [1, 1]} : vector<8x72xf32> to vector<8x1xf32>
    %404 = vector.shape_cast %403 : vector<8x1xf32> to vector<1x8x1xf32>
    %405 = vector.extract_strided_slice %353 {offsets = [0, 7, 0], sizes = [1, 1, 256], strides = [1, 1, 1]} : vector<1x8x256xf32> to vector<1x1x256xf32>
    %406 = vector.broadcast %404 : vector<1x8x1xf32> to vector<1x8x256xf32>
    %407 = vector.broadcast %405 : vector<1x1x256xf32> to vector<1x8x256xf32>
    %408 = arith.mulf %406, %407 : vector<1x8x256xf32>
    %409 = arith.addf %402, %408 : vector<1x8x256xf32>
    %c16_i32_56 = arith.constant 16 : i32
    %410 = tpu.dynamic_rotate %345 by %c16_i32_56 dim 2 : vector<1x8x256xf32>, i32 -> vector<1x8x256xf32>
    %cst_57 = arith.constant 0.000000e+00 : f32
    %411 = vector.shape_cast %24 : vector<1x1x256xi1> to vector<1x1x256xi1>
    %412 = vector.broadcast %411 : vector<1x1x256xi1> to vector<1x8x256xi1>
    %413 = vector.broadcast %cst_57 : f32 to vector<1x8x256xf32>
    %414 = arith.select %412, %410, %413 : vector<1x8x256xi1>, vector<1x8x256xf32>
    %415 = vector.extract_strided_slice %346 {offsets = [0, 8], sizes = [8, 1], strides = [1, 1]} : vector<8x72xf32> to vector<8x1xf32>
    %416 = vector.shape_cast %415 : vector<8x1xf32> to vector<1x8x1xf32>
    %417 = vector.extract_strided_slice %414 {offsets = [0, 0, 0], sizes = [1, 1, 256], strides = [1, 1, 1]} : vector<1x8x256xf32> to vector<1x1x256xf32>
    %418 = vector.broadcast %416 : vector<1x8x1xf32> to vector<1x8x256xf32>
    %419 = vector.broadcast %417 : vector<1x1x256xf32> to vector<1x8x256xf32>
    %420 = arith.mulf %418, %419 : vector<1x8x256xf32>
    %421 = arith.addf %409, %420 : vector<1x8x256xf32>
    %422 = vector.extract_strided_slice %346 {offsets = [0, 9], sizes = [8, 1], strides = [1, 1]} : vector<8x72xf32> to vector<8x1xf32>
    %423 = vector.shape_cast %422 : vector<8x1xf32> to vector<1x8x1xf32>
    %424 = vector.extract_strided_slice %414 {offsets = [0, 1, 0], sizes = [1, 1, 256], strides = [1, 1, 1]} : vector<1x8x256xf32> to vector<1x1x256xf32>
    %425 = vector.broadcast %423 : vector<1x8x1xf32> to vector<1x8x256xf32>
    %426 = vector.broadcast %424 : vector<1x1x256xf32> to vector<1x8x256xf32>
    %427 = arith.mulf %425, %426 : vector<1x8x256xf32>
    %428 = arith.addf %421, %427 : vector<1x8x256xf32>
    %429 = vector.extract_strided_slice %346 {offsets = [0, 10], sizes = [8, 1], strides = [1, 1]} : vector<8x72xf32> to vector<8x1xf32>
    %430 = vector.shape_cast %429 : vector<8x1xf32> to vector<1x8x1xf32>
    %431 = vector.extract_strided_slice %414 {offsets = [0, 2, 0], sizes = [1, 1, 256], strides = [1, 1, 1]} : vector<1x8x256xf32> to vector<1x1x256xf32>
    %432 = vector.broadcast %430 : vector<1x8x1xf32> to vector<1x8x256xf32>
    %433 = vector.broadcast %431 : vector<1x1x256xf32> to vector<1x8x256xf32>
    %434 = arith.mulf %432, %433 : vector<1x8x256xf32>
    %435 = arith.addf %428, %434 : vector<1x8x256xf32>
    %436 = vector.extract_strided_slice %346 {offsets = [0, 11], sizes = [8, 1], strides = [1, 1]} : vector<8x72xf32> to vector<8x1xf32>
    %437 = vector.shape_cast %436 : vector<8x1xf32> to vector<1x8x1xf32>
    %438 = vector.extract_strided_slice %414 {offsets = [0, 3, 0], sizes = [1, 1, 256], strides = [1, 1, 1]} : vector<1x8x256xf32> to vector<1x1x256xf32>
    %439 = vector.broadcast %437 : vector<1x8x1xf32> to vector<1x8x256xf32>
    %440 = vector.broadcast %438 : vector<1x1x256xf32> to vector<1x8x256xf32>
    %441 = arith.mulf %439, %440 : vector<1x8x256xf32>
    %442 = arith.addf %435, %441 : vector<1x8x256xf32>
    %443 = vector.extract_strided_slice %346 {offsets = [0, 12], sizes = [8, 1], strides = [1, 1]} : vector<8x72xf32> to vector<8x1xf32>
    %444 = vector.shape_cast %443 : vector<8x1xf32> to vector<1x8x1xf32>
    %445 = vector.extract_strided_slice %414 {offsets = [0, 4, 0], sizes = [1, 1, 256], strides = [1, 1, 1]} : vector<1x8x256xf32> to vector<1x1x256xf32>
    %446 = vector.broadcast %444 : vector<1x8x1xf32> to vector<1x8x256xf32>
    %447 = vector.broadcast %445 : vector<1x1x256xf32> to vector<1x8x256xf32>
    %448 = arith.mulf %446, %447 : vector<1x8x256xf32>
    %449 = arith.addf %442, %448 : vector<1x8x256xf32>
    %450 = vector.extract_strided_slice %346 {offsets = [0, 13], sizes = [8, 1], strides = [1, 1]} : vector<8x72xf32> to vector<8x1xf32>
    %451 = vector.shape_cast %450 : vector<8x1xf32> to vector<1x8x1xf32>
    %452 = vector.extract_strided_slice %414 {offsets = [0, 5, 0], sizes = [1, 1, 256], strides = [1, 1, 1]} : vector<1x8x256xf32> to vector<1x1x256xf32>
    %453 = vector.broadcast %451 : vector<1x8x1xf32> to vector<1x8x256xf32>
    %454 = vector.broadcast %452 : vector<1x1x256xf32> to vector<1x8x256xf32>
    %455 = arith.mulf %453, %454 : vector<1x8x256xf32>
    %456 = arith.addf %449, %455 : vector<1x8x256xf32>
    %457 = vector.extract_strided_slice %346 {offsets = [0, 14], sizes = [8, 1], strides = [1, 1]} : vector<8x72xf32> to vector<8x1xf32>
    %458 = vector.shape_cast %457 : vector<8x1xf32> to vector<1x8x1xf32>
    %459 = vector.extract_strided_slice %414 {offsets = [0, 6, 0], sizes = [1, 1, 256], strides = [1, 1, 1]} : vector<1x8x256xf32> to vector<1x1x256xf32>
    %460 = vector.broadcast %458 : vector<1x8x1xf32> to vector<1x8x256xf32>
    %461 = vector.broadcast %459 : vector<1x1x256xf32> to vector<1x8x256xf32>
    %462 = arith.mulf %460, %461 : vector<1x8x256xf32>
    %463 = arith.addf %456, %462 : vector<1x8x256xf32>
    %464 = vector.extract_strided_slice %346 {offsets = [0, 15], sizes = [8, 1], strides = [1, 1]} : vector<8x72xf32> to vector<8x1xf32>
    %465 = vector.shape_cast %464 : vector<8x1xf32> to vector<1x8x1xf32>
    %466 = vector.extract_strided_slice %414 {offsets = [0, 7, 0], sizes = [1, 1, 256], strides = [1, 1, 1]} : vector<1x8x256xf32> to vector<1x1x256xf32>
    %467 = vector.broadcast %465 : vector<1x8x1xf32> to vector<1x8x256xf32>
    %468 = vector.broadcast %466 : vector<1x1x256xf32> to vector<1x8x256xf32>
    %469 = arith.mulf %467, %468 : vector<1x8x256xf32>
    %470 = arith.addf %463, %469 : vector<1x8x256xf32>
    %c15_i32_58 = arith.constant 15 : i32
    %471 = tpu.dynamic_rotate %345 by %c15_i32_58 dim 2 : vector<1x8x256xf32>, i32 -> vector<1x8x256xf32>
    %cst_59 = arith.constant 0.000000e+00 : f32
    %472 = vector.shape_cast %35 : vector<1x1x256xi1> to vector<1x1x256xi1>
    %473 = vector.broadcast %472 : vector<1x1x256xi1> to vector<1x8x256xi1>
    %474 = vector.broadcast %cst_59 : f32 to vector<1x8x256xf32>
    %475 = arith.select %473, %471, %474 : vector<1x8x256xi1>, vector<1x8x256xf32>
    %476 = vector.extract_strided_slice %346 {offsets = [0, 16], sizes = [8, 1], strides = [1, 1]} : vector<8x72xf32> to vector<8x1xf32>
    %477 = vector.shape_cast %476 : vector<8x1xf32> to vector<1x8x1xf32>
    %478 = vector.extract_strided_slice %475 {offsets = [0, 0, 0], sizes = [1, 1, 256], strides = [1, 1, 1]} : vector<1x8x256xf32> to vector<1x1x256xf32>
    %479 = vector.broadcast %477 : vector<1x8x1xf32> to vector<1x8x256xf32>
    %480 = vector.broadcast %478 : vector<1x1x256xf32> to vector<1x8x256xf32>
    %481 = arith.mulf %479, %480 : vector<1x8x256xf32>
    %482 = arith.addf %470, %481 : vector<1x8x256xf32>
    %483 = vector.extract_strided_slice %346 {offsets = [0, 17], sizes = [8, 1], strides = [1, 1]} : vector<8x72xf32> to vector<8x1xf32>
    %484 = vector.shape_cast %483 : vector<8x1xf32> to vector<1x8x1xf32>
    %485 = vector.extract_strided_slice %475 {offsets = [0, 1, 0], sizes = [1, 1, 256], strides = [1, 1, 1]} : vector<1x8x256xf32> to vector<1x1x256xf32>
    %486 = vector.broadcast %484 : vector<1x8x1xf32> to vector<1x8x256xf32>
    %487 = vector.broadcast %485 : vector<1x1x256xf32> to vector<1x8x256xf32>
    %488 = arith.mulf %486, %487 : vector<1x8x256xf32>
    %489 = arith.addf %482, %488 : vector<1x8x256xf32>
    %490 = vector.extract_strided_slice %346 {offsets = [0, 18], sizes = [8, 1], strides = [1, 1]} : vector<8x72xf32> to vector<8x1xf32>
    %491 = vector.shape_cast %490 : vector<8x1xf32> to vector<1x8x1xf32>
    %492 = vector.extract_strided_slice %475 {offsets = [0, 2, 0], sizes = [1, 1, 256], strides = [1, 1, 1]} : vector<1x8x256xf32> to vector<1x1x256xf32>
    %493 = vector.broadcast %491 : vector<1x8x1xf32> to vector<1x8x256xf32>
    %494 = vector.broadcast %492 : vector<1x1x256xf32> to vector<1x8x256xf32>
    %495 = arith.mulf %493, %494 : vector<1x8x256xf32>
    %496 = arith.addf %489, %495 : vector<1x8x256xf32>
    %497 = vector.extract_strided_slice %346 {offsets = [0, 19], sizes = [8, 1], strides = [1, 1]} : vector<8x72xf32> to vector<8x1xf32>
    %498 = vector.shape_cast %497 : vector<8x1xf32> to vector<1x8x1xf32>
    %499 = vector.extract_strided_slice %475 {offsets = [0, 3, 0], sizes = [1, 1, 256], strides = [1, 1, 1]} : vector<1x8x256xf32> to vector<1x1x256xf32>
    %500 = vector.broadcast %498 : vector<1x8x1xf32> to vector<1x8x256xf32>
    %501 = vector.broadcast %499 : vector<1x1x256xf32> to vector<1x8x256xf32>
    %502 = arith.mulf %500, %501 : vector<1x8x256xf32>
    %503 = arith.addf %496, %502 : vector<1x8x256xf32>
    %504 = vector.extract_strided_slice %346 {offsets = [0, 20], sizes = [8, 1], strides = [1, 1]} : vector<8x72xf32> to vector<8x1xf32>
    %505 = vector.shape_cast %504 : vector<8x1xf32> to vector<1x8x1xf32>
    %506 = vector.extract_strided_slice %475 {offsets = [0, 4, 0], sizes = [1, 1, 256], strides = [1, 1, 1]} : vector<1x8x256xf32> to vector<1x1x256xf32>
    %507 = vector.broadcast %505 : vector<1x8x1xf32> to vector<1x8x256xf32>
    %508 = vector.broadcast %506 : vector<1x1x256xf32> to vector<1x8x256xf32>
    %509 = arith.mulf %507, %508 : vector<1x8x256xf32>
    %510 = arith.addf %503, %509 : vector<1x8x256xf32>
    %511 = vector.extract_strided_slice %346 {offsets = [0, 21], sizes = [8, 1], strides = [1, 1]} : vector<8x72xf32> to vector<8x1xf32>
    %512 = vector.shape_cast %511 : vector<8x1xf32> to vector<1x8x1xf32>
    %513 = vector.extract_strided_slice %475 {offsets = [0, 5, 0], sizes = [1, 1, 256], strides = [1, 1, 1]} : vector<1x8x256xf32> to vector<1x1x256xf32>
    %514 = vector.broadcast %512 : vector<1x8x1xf32> to vector<1x8x256xf32>
    %515 = vector.broadcast %513 : vector<1x1x256xf32> to vector<1x8x256xf32>
    %516 = arith.mulf %514, %515 : vector<1x8x256xf32>
    %517 = arith.addf %510, %516 : vector<1x8x256xf32>
    %518 = vector.extract_strided_slice %346 {offsets = [0, 22], sizes = [8, 1], strides = [1, 1]} : vector<8x72xf32> to vector<8x1xf32>
    %519 = vector.shape_cast %518 : vector<8x1xf32> to vector<1x8x1xf32>
    %520 = vector.extract_strided_slice %475 {offsets = [0, 6, 0], sizes = [1, 1, 256], strides = [1, 1, 1]} : vector<1x8x256xf32> to vector<1x1x256xf32>
    %521 = vector.broadcast %519 : vector<1x8x1xf32> to vector<1x8x256xf32>
    %522 = vector.broadcast %520 : vector<1x1x256xf32> to vector<1x8x256xf32>
    %523 = arith.mulf %521, %522 : vector<1x8x256xf32>
    %524 = arith.addf %517, %523 : vector<1x8x256xf32>
    %525 = vector.extract_strided_slice %346 {offsets = [0, 23], sizes = [8, 1], strides = [1, 1]} : vector<8x72xf32> to vector<8x1xf32>
    %526 = vector.shape_cast %525 : vector<8x1xf32> to vector<1x8x1xf32>
    %527 = vector.extract_strided_slice %475 {offsets = [0, 7, 0], sizes = [1, 1, 256], strides = [1, 1, 1]} : vector<1x8x256xf32> to vector<1x1x256xf32>
    %528 = vector.broadcast %526 : vector<1x8x1xf32> to vector<1x8x256xf32>
    %529 = vector.broadcast %527 : vector<1x1x256xf32> to vector<1x8x256xf32>
    %530 = arith.mulf %528, %529 : vector<1x8x256xf32>
    %531 = arith.addf %524, %530 : vector<1x8x256xf32>
    %c1_i32_60 = arith.constant 1 : i32
    %532 = tpu.dynamic_rotate %345 by %c1_i32_60 dim 2 : vector<1x8x256xf32>, i32 -> vector<1x8x256xf32>
    %cst_61 = arith.constant 0.000000e+00 : f32
    %533 = vector.shape_cast %46 : vector<1x1x256xi1> to vector<1x1x256xi1>
    %534 = vector.broadcast %533 : vector<1x1x256xi1> to vector<1x8x256xi1>
    %535 = vector.broadcast %cst_61 : f32 to vector<1x8x256xf32>
    %536 = arith.select %534, %532, %535 : vector<1x8x256xi1>, vector<1x8x256xf32>
    %537 = vector.extract_strided_slice %346 {offsets = [0, 24], sizes = [8, 1], strides = [1, 1]} : vector<8x72xf32> to vector<8x1xf32>
    %538 = vector.shape_cast %537 : vector<8x1xf32> to vector<1x8x1xf32>
    %539 = vector.extract_strided_slice %536 {offsets = [0, 0, 0], sizes = [1, 1, 256], strides = [1, 1, 1]} : vector<1x8x256xf32> to vector<1x1x256xf32>
    %540 = vector.broadcast %538 : vector<1x8x1xf32> to vector<1x8x256xf32>
    %541 = vector.broadcast %539 : vector<1x1x256xf32> to vector<1x8x256xf32>
    %542 = arith.mulf %540, %541 : vector<1x8x256xf32>
    %543 = arith.addf %531, %542 : vector<1x8x256xf32>
    %544 = vector.extract_strided_slice %346 {offsets = [0, 25], sizes = [8, 1], strides = [1, 1]} : vector<8x72xf32> to vector<8x1xf32>
    %545 = vector.shape_cast %544 : vector<8x1xf32> to vector<1x8x1xf32>
    %546 = vector.extract_strided_slice %536 {offsets = [0, 1, 0], sizes = [1, 1, 256], strides = [1, 1, 1]} : vector<1x8x256xf32> to vector<1x1x256xf32>
    %547 = vector.broadcast %545 : vector<1x8x1xf32> to vector<1x8x256xf32>
    %548 = vector.broadcast %546 : vector<1x1x256xf32> to vector<1x8x256xf32>
    %549 = arith.mulf %547, %548 : vector<1x8x256xf32>
    %550 = arith.addf %543, %549 : vector<1x8x256xf32>
    %551 = vector.extract_strided_slice %346 {offsets = [0, 26], sizes = [8, 1], strides = [1, 1]} : vector<8x72xf32> to vector<8x1xf32>
    %552 = vector.shape_cast %551 : vector<8x1xf32> to vector<1x8x1xf32>
    %553 = vector.extract_strided_slice %536 {offsets = [0, 2, 0], sizes = [1, 1, 256], strides = [1, 1, 1]} : vector<1x8x256xf32> to vector<1x1x256xf32>
    %554 = vector.broadcast %552 : vector<1x8x1xf32> to vector<1x8x256xf32>
    %555 = vector.broadcast %553 : vector<1x1x256xf32> to vector<1x8x256xf32>
    %556 = arith.mulf %554, %555 : vector<1x8x256xf32>
    %557 = arith.addf %550, %556 : vector<1x8x256xf32>
    %558 = vector.extract_strided_slice %346 {offsets = [0, 27], sizes = [8, 1], strides = [1, 1]} : vector<8x72xf32> to vector<8x1xf32>
    %559 = vector.shape_cast %558 : vector<8x1xf32> to vector<1x8x1xf32>
    %560 = vector.extract_strided_slice %536 {offsets = [0, 3, 0], sizes = [1, 1, 256], strides = [1, 1, 1]} : vector<1x8x256xf32> to vector<1x1x256xf32>
    %561 = vector.broadcast %559 : vector<1x8x1xf32> to vector<1x8x256xf32>
    %562 = vector.broadcast %560 : vector<1x1x256xf32> to vector<1x8x256xf32>
    %563 = arith.mulf %561, %562 : vector<1x8x256xf32>
    %564 = arith.addf %557, %563 : vector<1x8x256xf32>
    %565 = vector.extract_strided_slice %346 {offsets = [0, 28], sizes = [8, 1], strides = [1, 1]} : vector<8x72xf32> to vector<8x1xf32>
    %566 = vector.shape_cast %565 : vector<8x1xf32> to vector<1x8x1xf32>
    %567 = vector.extract_strided_slice %536 {offsets = [0, 4, 0], sizes = [1, 1, 256], strides = [1, 1, 1]} : vector<1x8x256xf32> to vector<1x1x256xf32>
    %568 = vector.broadcast %566 : vector<1x8x1xf32> to vector<1x8x256xf32>
    %569 = vector.broadcast %567 : vector<1x1x256xf32> to vector<1x8x256xf32>
    %570 = arith.mulf %568, %569 : vector<1x8x256xf32>
    %571 = arith.addf %564, %570 : vector<1x8x256xf32>
    %572 = vector.extract_strided_slice %346 {offsets = [0, 29], sizes = [8, 1], strides = [1, 1]} : vector<8x72xf32> to vector<8x1xf32>
    %573 = vector.shape_cast %572 : vector<8x1xf32> to vector<1x8x1xf32>
    %574 = vector.extract_strided_slice %536 {offsets = [0, 5, 0], sizes = [1, 1, 256], strides = [1, 1, 1]} : vector<1x8x256xf32> to vector<1x1x256xf32>
    %575 = vector.broadcast %573 : vector<1x8x1xf32> to vector<1x8x256xf32>
    %576 = vector.broadcast %574 : vector<1x1x256xf32> to vector<1x8x256xf32>
    %577 = arith.mulf %575, %576 : vector<1x8x256xf32>
    %578 = arith.addf %571, %577 : vector<1x8x256xf32>
    %579 = vector.extract_strided_slice %346 {offsets = [0, 30], sizes = [8, 1], strides = [1, 1]} : vector<8x72xf32> to vector<8x1xf32>
    %580 = vector.shape_cast %579 : vector<8x1xf32> to vector<1x8x1xf32>
    %581 = vector.extract_strided_slice %536 {offsets = [0, 6, 0], sizes = [1, 1, 256], strides = [1, 1, 1]} : vector<1x8x256xf32> to vector<1x1x256xf32>
    %582 = vector.broadcast %580 : vector<1x8x1xf32> to vector<1x8x256xf32>
    %583 = vector.broadcast %581 : vector<1x1x256xf32> to vector<1x8x256xf32>
    %584 = arith.mulf %582, %583 : vector<1x8x256xf32>
    %585 = arith.addf %578, %584 : vector<1x8x256xf32>
    %586 = vector.extract_strided_slice %346 {offsets = [0, 31], sizes = [8, 1], strides = [1, 1]} : vector<8x72xf32> to vector<8x1xf32>
    %587 = vector.shape_cast %586 : vector<8x1xf32> to vector<1x8x1xf32>
    %588 = vector.extract_strided_slice %536 {offsets = [0, 7, 0], sizes = [1, 1, 256], strides = [1, 1, 1]} : vector<1x8x256xf32> to vector<1x1x256xf32>
    %589 = vector.broadcast %587 : vector<1x8x1xf32> to vector<1x8x256xf32>
    %590 = vector.broadcast %588 : vector<1x1x256xf32> to vector<1x8x256xf32>
    %591 = arith.mulf %589, %590 : vector<1x8x256xf32>
    %592 = arith.addf %585, %591 : vector<1x8x256xf32>
    %cst_62 = arith.constant 0.000000e+00 : f32
    %593 = vector.shape_cast %57 : vector<1x1x256xi1> to vector<1x1x256xi1>
    %594 = vector.broadcast %593 : vector<1x1x256xi1> to vector<1x8x256xi1>
    %595 = vector.broadcast %cst_62 : f32 to vector<1x8x256xf32>
    %596 = arith.select %594, %345, %595 : vector<1x8x256xi1>, vector<1x8x256xf32>
    %597 = vector.extract_strided_slice %346 {offsets = [0, 32], sizes = [8, 1], strides = [1, 1]} : vector<8x72xf32> to vector<8x1xf32>
    %598 = vector.shape_cast %597 : vector<8x1xf32> to vector<1x8x1xf32>
    %599 = vector.extract_strided_slice %596 {offsets = [0, 0, 0], sizes = [1, 1, 256], strides = [1, 1, 1]} : vector<1x8x256xf32> to vector<1x1x256xf32>
    %600 = vector.broadcast %598 : vector<1x8x1xf32> to vector<1x8x256xf32>
    %601 = vector.broadcast %599 : vector<1x1x256xf32> to vector<1x8x256xf32>
    %602 = arith.mulf %600, %601 : vector<1x8x256xf32>
    %603 = arith.addf %592, %602 : vector<1x8x256xf32>
    %604 = vector.extract_strided_slice %346 {offsets = [0, 33], sizes = [8, 1], strides = [1, 1]} : vector<8x72xf32> to vector<8x1xf32>
    %605 = vector.shape_cast %604 : vector<8x1xf32> to vector<1x8x1xf32>
    %606 = vector.extract_strided_slice %596 {offsets = [0, 1, 0], sizes = [1, 1, 256], strides = [1, 1, 1]} : vector<1x8x256xf32> to vector<1x1x256xf32>
    %607 = vector.broadcast %605 : vector<1x8x1xf32> to vector<1x8x256xf32>
    %608 = vector.broadcast %606 : vector<1x1x256xf32> to vector<1x8x256xf32>
    %609 = arith.mulf %607, %608 : vector<1x8x256xf32>
    %610 = arith.addf %603, %609 : vector<1x8x256xf32>
    %611 = vector.extract_strided_slice %346 {offsets = [0, 34], sizes = [8, 1], strides = [1, 1]} : vector<8x72xf32> to vector<8x1xf32>
    %612 = vector.shape_cast %611 : vector<8x1xf32> to vector<1x8x1xf32>
    %613 = vector.extract_strided_slice %596 {offsets = [0, 2, 0], sizes = [1, 1, 256], strides = [1, 1, 1]} : vector<1x8x256xf32> to vector<1x1x256xf32>
    %614 = vector.broadcast %612 : vector<1x8x1xf32> to vector<1x8x256xf32>
    %615 = vector.broadcast %613 : vector<1x1x256xf32> to vector<1x8x256xf32>
    %616 = arith.mulf %614, %615 : vector<1x8x256xf32>
    %617 = arith.addf %610, %616 : vector<1x8x256xf32>
    %618 = vector.extract_strided_slice %346 {offsets = [0, 35], sizes = [8, 1], strides = [1, 1]} : vector<8x72xf32> to vector<8x1xf32>
    %619 = vector.shape_cast %618 : vector<8x1xf32> to vector<1x8x1xf32>
    %620 = vector.extract_strided_slice %596 {offsets = [0, 3, 0], sizes = [1, 1, 256], strides = [1, 1, 1]} : vector<1x8x256xf32> to vector<1x1x256xf32>
    %621 = vector.broadcast %619 : vector<1x8x1xf32> to vector<1x8x256xf32>
    %622 = vector.broadcast %620 : vector<1x1x256xf32> to vector<1x8x256xf32>
    %623 = arith.mulf %621, %622 : vector<1x8x256xf32>
    %624 = arith.addf %617, %623 : vector<1x8x256xf32>
    %625 = vector.extract_strided_slice %346 {offsets = [0, 36], sizes = [8, 1], strides = [1, 1]} : vector<8x72xf32> to vector<8x1xf32>
    %626 = vector.shape_cast %625 : vector<8x1xf32> to vector<1x8x1xf32>
    %627 = vector.extract_strided_slice %596 {offsets = [0, 4, 0], sizes = [1, 1, 256], strides = [1, 1, 1]} : vector<1x8x256xf32> to vector<1x1x256xf32>
    %628 = vector.broadcast %626 : vector<1x8x1xf32> to vector<1x8x256xf32>
    %629 = vector.broadcast %627 : vector<1x1x256xf32> to vector<1x8x256xf32>
    %630 = arith.mulf %628, %629 : vector<1x8x256xf32>
    %631 = arith.addf %624, %630 : vector<1x8x256xf32>
    %632 = vector.extract_strided_slice %346 {offsets = [0, 37], sizes = [8, 1], strides = [1, 1]} : vector<8x72xf32> to vector<8x1xf32>
    %633 = vector.shape_cast %632 : vector<8x1xf32> to vector<1x8x1xf32>
    %634 = vector.extract_strided_slice %596 {offsets = [0, 5, 0], sizes = [1, 1, 256], strides = [1, 1, 1]} : vector<1x8x256xf32> to vector<1x1x256xf32>
    %635 = vector.broadcast %633 : vector<1x8x1xf32> to vector<1x8x256xf32>
    %636 = vector.broadcast %634 : vector<1x1x256xf32> to vector<1x8x256xf32>
    %637 = arith.mulf %635, %636 : vector<1x8x256xf32>
    %638 = arith.addf %631, %637 : vector<1x8x256xf32>
    %639 = vector.extract_strided_slice %346 {offsets = [0, 38], sizes = [8, 1], strides = [1, 1]} : vector<8x72xf32> to vector<8x1xf32>
    %640 = vector.shape_cast %639 : vector<8x1xf32> to vector<1x8x1xf32>
    %641 = vector.extract_strided_slice %596 {offsets = [0, 6, 0], sizes = [1, 1, 256], strides = [1, 1, 1]} : vector<1x8x256xf32> to vector<1x1x256xf32>
    %642 = vector.broadcast %640 : vector<1x8x1xf32> to vector<1x8x256xf32>
    %643 = vector.broadcast %641 : vector<1x1x256xf32> to vector<1x8x256xf32>
    %644 = arith.mulf %642, %643 : vector<1x8x256xf32>
    %645 = arith.addf %638, %644 : vector<1x8x256xf32>
    %646 = vector.extract_strided_slice %346 {offsets = [0, 39], sizes = [8, 1], strides = [1, 1]} : vector<8x72xf32> to vector<8x1xf32>
    %647 = vector.shape_cast %646 : vector<8x1xf32> to vector<1x8x1xf32>
    %648 = vector.extract_strided_slice %596 {offsets = [0, 7, 0], sizes = [1, 1, 256], strides = [1, 1, 1]} : vector<1x8x256xf32> to vector<1x1x256xf32>
    %649 = vector.broadcast %647 : vector<1x8x1xf32> to vector<1x8x256xf32>
    %650 = vector.broadcast %648 : vector<1x1x256xf32> to vector<1x8x256xf32>
    %651 = arith.mulf %649, %650 : vector<1x8x256xf32>
    %652 = arith.addf %645, %651 : vector<1x8x256xf32>
    %c255_i32_63 = arith.constant 255 : i32
    %653 = tpu.dynamic_rotate %345 by %c255_i32_63 dim 2 : vector<1x8x256xf32>, i32 -> vector<1x8x256xf32>
    %cst_64 = arith.constant 0.000000e+00 : f32
    %654 = vector.shape_cast %68 : vector<1x1x256xi1> to vector<1x1x256xi1>
    %655 = vector.broadcast %654 : vector<1x1x256xi1> to vector<1x8x256xi1>
    %656 = vector.broadcast %cst_64 : f32 to vector<1x8x256xf32>
    %657 = arith.select %655, %653, %656 : vector<1x8x256xi1>, vector<1x8x256xf32>
    %658 = vector.extract_strided_slice %346 {offsets = [0, 40], sizes = [8, 1], strides = [1, 1]} : vector<8x72xf32> to vector<8x1xf32>
    %659 = vector.shape_cast %658 : vector<8x1xf32> to vector<1x8x1xf32>
    %660 = vector.extract_strided_slice %657 {offsets = [0, 0, 0], sizes = [1, 1, 256], strides = [1, 1, 1]} : vector<1x8x256xf32> to vector<1x1x256xf32>
    %661 = vector.broadcast %659 : vector<1x8x1xf32> to vector<1x8x256xf32>
    %662 = vector.broadcast %660 : vector<1x1x256xf32> to vector<1x8x256xf32>
    %663 = arith.mulf %661, %662 : vector<1x8x256xf32>
    %664 = arith.addf %652, %663 : vector<1x8x256xf32>
    %665 = vector.extract_strided_slice %346 {offsets = [0, 41], sizes = [8, 1], strides = [1, 1]} : vector<8x72xf32> to vector<8x1xf32>
    %666 = vector.shape_cast %665 : vector<8x1xf32> to vector<1x8x1xf32>
    %667 = vector.extract_strided_slice %657 {offsets = [0, 1, 0], sizes = [1, 1, 256], strides = [1, 1, 1]} : vector<1x8x256xf32> to vector<1x1x256xf32>
    %668 = vector.broadcast %666 : vector<1x8x1xf32> to vector<1x8x256xf32>
    %669 = vector.broadcast %667 : vector<1x1x256xf32> to vector<1x8x256xf32>
    %670 = arith.mulf %668, %669 : vector<1x8x256xf32>
    %671 = arith.addf %664, %670 : vector<1x8x256xf32>
    %672 = vector.extract_strided_slice %346 {offsets = [0, 42], sizes = [8, 1], strides = [1, 1]} : vector<8x72xf32> to vector<8x1xf32>
    %673 = vector.shape_cast %672 : vector<8x1xf32> to vector<1x8x1xf32>
    %674 = vector.extract_strided_slice %657 {offsets = [0, 2, 0], sizes = [1, 1, 256], strides = [1, 1, 1]} : vector<1x8x256xf32> to vector<1x1x256xf32>
    %675 = vector.broadcast %673 : vector<1x8x1xf32> to vector<1x8x256xf32>
    %676 = vector.broadcast %674 : vector<1x1x256xf32> to vector<1x8x256xf32>
    %677 = arith.mulf %675, %676 : vector<1x8x256xf32>
    %678 = arith.addf %671, %677 : vector<1x8x256xf32>
    %679 = vector.extract_strided_slice %346 {offsets = [0, 43], sizes = [8, 1], strides = [1, 1]} : vector<8x72xf32> to vector<8x1xf32>
    %680 = vector.shape_cast %679 : vector<8x1xf32> to vector<1x8x1xf32>
    %681 = vector.extract_strided_slice %657 {offsets = [0, 3, 0], sizes = [1, 1, 256], strides = [1, 1, 1]} : vector<1x8x256xf32> to vector<1x1x256xf32>
    %682 = vector.broadcast %680 : vector<1x8x1xf32> to vector<1x8x256xf32>
    %683 = vector.broadcast %681 : vector<1x1x256xf32> to vector<1x8x256xf32>
    %684 = arith.mulf %682, %683 : vector<1x8x256xf32>
    %685 = arith.addf %678, %684 : vector<1x8x256xf32>
    %686 = vector.extract_strided_slice %346 {offsets = [0, 44], sizes = [8, 1], strides = [1, 1]} : vector<8x72xf32> to vector<8x1xf32>
    %687 = vector.shape_cast %686 : vector<8x1xf32> to vector<1x8x1xf32>
    %688 = vector.extract_strided_slice %657 {offsets = [0, 4, 0], sizes = [1, 1, 256], strides = [1, 1, 1]} : vector<1x8x256xf32> to vector<1x1x256xf32>
    %689 = vector.broadcast %687 : vector<1x8x1xf32> to vector<1x8x256xf32>
    %690 = vector.broadcast %688 : vector<1x1x256xf32> to vector<1x8x256xf32>
    %691 = arith.mulf %689, %690 : vector<1x8x256xf32>
    %692 = arith.addf %685, %691 : vector<1x8x256xf32>
    %693 = vector.extract_strided_slice %346 {offsets = [0, 45], sizes = [8, 1], strides = [1, 1]} : vector<8x72xf32> to vector<8x1xf32>
    %694 = vector.shape_cast %693 : vector<8x1xf32> to vector<1x8x1xf32>
    %695 = vector.extract_strided_slice %657 {offsets = [0, 5, 0], sizes = [1, 1, 256], strides = [1, 1, 1]} : vector<1x8x256xf32> to vector<1x1x256xf32>
    %696 = vector.broadcast %694 : vector<1x8x1xf32> to vector<1x8x256xf32>
    %697 = vector.broadcast %695 : vector<1x1x256xf32> to vector<1x8x256xf32>
    %698 = arith.mulf %696, %697 : vector<1x8x256xf32>
    %699 = arith.addf %692, %698 : vector<1x8x256xf32>
    %700 = vector.extract_strided_slice %346 {offsets = [0, 46], sizes = [8, 1], strides = [1, 1]} : vector<8x72xf32> to vector<8x1xf32>
    %701 = vector.shape_cast %700 : vector<8x1xf32> to vector<1x8x1xf32>
    %702 = vector.extract_strided_slice %657 {offsets = [0, 6, 0], sizes = [1, 1, 256], strides = [1, 1, 1]} : vector<1x8x256xf32> to vector<1x1x256xf32>
    %703 = vector.broadcast %701 : vector<1x8x1xf32> to vector<1x8x256xf32>
    %704 = vector.broadcast %702 : vector<1x1x256xf32> to vector<1x8x256xf32>
    %705 = arith.mulf %703, %704 : vector<1x8x256xf32>
    %706 = arith.addf %699, %705 : vector<1x8x256xf32>
    %707 = vector.extract_strided_slice %346 {offsets = [0, 47], sizes = [8, 1], strides = [1, 1]} : vector<8x72xf32> to vector<8x1xf32>
    %708 = vector.shape_cast %707 : vector<8x1xf32> to vector<1x8x1xf32>
    %709 = vector.extract_strided_slice %657 {offsets = [0, 7, 0], sizes = [1, 1, 256], strides = [1, 1, 1]} : vector<1x8x256xf32> to vector<1x1x256xf32>
    %710 = vector.broadcast %708 : vector<1x8x1xf32> to vector<1x8x256xf32>
    %711 = vector.broadcast %709 : vector<1x1x256xf32> to vector<1x8x256xf32>
    %712 = arith.mulf %710, %711 : vector<1x8x256xf32>
    %713 = arith.addf %706, %712 : vector<1x8x256xf32>
    %c241_i32_65 = arith.constant 241 : i32
    %714 = tpu.dynamic_rotate %345 by %c241_i32_65 dim 2 : vector<1x8x256xf32>, i32 -> vector<1x8x256xf32>
    %cst_66 = arith.constant 0.000000e+00 : f32
    %715 = vector.shape_cast %79 : vector<1x1x256xi1> to vector<1x1x256xi1>
    %716 = vector.broadcast %715 : vector<1x1x256xi1> to vector<1x8x256xi1>
    %717 = vector.broadcast %cst_66 : f32 to vector<1x8x256xf32>
    %718 = arith.select %716, %714, %717 : vector<1x8x256xi1>, vector<1x8x256xf32>
    %719 = vector.extract_strided_slice %346 {offsets = [0, 48], sizes = [8, 1], strides = [1, 1]} : vector<8x72xf32> to vector<8x1xf32>
    %720 = vector.shape_cast %719 : vector<8x1xf32> to vector<1x8x1xf32>
    %721 = vector.extract_strided_slice %718 {offsets = [0, 0, 0], sizes = [1, 1, 256], strides = [1, 1, 1]} : vector<1x8x256xf32> to vector<1x1x256xf32>
    %722 = vector.broadcast %720 : vector<1x8x1xf32> to vector<1x8x256xf32>
    %723 = vector.broadcast %721 : vector<1x1x256xf32> to vector<1x8x256xf32>
    %724 = arith.mulf %722, %723 : vector<1x8x256xf32>
    %725 = arith.addf %713, %724 : vector<1x8x256xf32>
    %726 = vector.extract_strided_slice %346 {offsets = [0, 49], sizes = [8, 1], strides = [1, 1]} : vector<8x72xf32> to vector<8x1xf32>
    %727 = vector.shape_cast %726 : vector<8x1xf32> to vector<1x8x1xf32>
    %728 = vector.extract_strided_slice %718 {offsets = [0, 1, 0], sizes = [1, 1, 256], strides = [1, 1, 1]} : vector<1x8x256xf32> to vector<1x1x256xf32>
    %729 = vector.broadcast %727 : vector<1x8x1xf32> to vector<1x8x256xf32>
    %730 = vector.broadcast %728 : vector<1x1x256xf32> to vector<1x8x256xf32>
    %731 = arith.mulf %729, %730 : vector<1x8x256xf32>
    %732 = arith.addf %725, %731 : vector<1x8x256xf32>
    %733 = vector.extract_strided_slice %346 {offsets = [0, 50], sizes = [8, 1], strides = [1, 1]} : vector<8x72xf32> to vector<8x1xf32>
    %734 = vector.shape_cast %733 : vector<8x1xf32> to vector<1x8x1xf32>
    %735 = vector.extract_strided_slice %718 {offsets = [0, 2, 0], sizes = [1, 1, 256], strides = [1, 1, 1]} : vector<1x8x256xf32> to vector<1x1x256xf32>
    %736 = vector.broadcast %734 : vector<1x8x1xf32> to vector<1x8x256xf32>
    %737 = vector.broadcast %735 : vector<1x1x256xf32> to vector<1x8x256xf32>
    %738 = arith.mulf %736, %737 : vector<1x8x256xf32>
    %739 = arith.addf %732, %738 : vector<1x8x256xf32>
    %740 = vector.extract_strided_slice %346 {offsets = [0, 51], sizes = [8, 1], strides = [1, 1]} : vector<8x72xf32> to vector<8x1xf32>
    %741 = vector.shape_cast %740 : vector<8x1xf32> to vector<1x8x1xf32>
    %742 = vector.extract_strided_slice %718 {offsets = [0, 3, 0], sizes = [1, 1, 256], strides = [1, 1, 1]} : vector<1x8x256xf32> to vector<1x1x256xf32>
    %743 = vector.broadcast %741 : vector<1x8x1xf32> to vector<1x8x256xf32>
    %744 = vector.broadcast %742 : vector<1x1x256xf32> to vector<1x8x256xf32>
    %745 = arith.mulf %743, %744 : vector<1x8x256xf32>
    %746 = arith.addf %739, %745 : vector<1x8x256xf32>
    %747 = vector.extract_strided_slice %346 {offsets = [0, 52], sizes = [8, 1], strides = [1, 1]} : vector<8x72xf32> to vector<8x1xf32>
    %748 = vector.shape_cast %747 : vector<8x1xf32> to vector<1x8x1xf32>
    %749 = vector.extract_strided_slice %718 {offsets = [0, 4, 0], sizes = [1, 1, 256], strides = [1, 1, 1]} : vector<1x8x256xf32> to vector<1x1x256xf32>
    %750 = vector.broadcast %748 : vector<1x8x1xf32> to vector<1x8x256xf32>
    %751 = vector.broadcast %749 : vector<1x1x256xf32> to vector<1x8x256xf32>
    %752 = arith.mulf %750, %751 : vector<1x8x256xf32>
    %753 = arith.addf %746, %752 : vector<1x8x256xf32>
    %754 = vector.extract_strided_slice %346 {offsets = [0, 53], sizes = [8, 1], strides = [1, 1]} : vector<8x72xf32> to vector<8x1xf32>
    %755 = vector.shape_cast %754 : vector<8x1xf32> to vector<1x8x1xf32>
    %756 = vector.extract_strided_slice %718 {offsets = [0, 5, 0], sizes = [1, 1, 256], strides = [1, 1, 1]} : vector<1x8x256xf32> to vector<1x1x256xf32>
    %757 = vector.broadcast %755 : vector<1x8x1xf32> to vector<1x8x256xf32>
    %758 = vector.broadcast %756 : vector<1x1x256xf32> to vector<1x8x256xf32>
    %759 = arith.mulf %757, %758 : vector<1x8x256xf32>
    %760 = arith.addf %753, %759 : vector<1x8x256xf32>
    %761 = vector.extract_strided_slice %346 {offsets = [0, 54], sizes = [8, 1], strides = [1, 1]} : vector<8x72xf32> to vector<8x1xf32>
    %762 = vector.shape_cast %761 : vector<8x1xf32> to vector<1x8x1xf32>
    %763 = vector.extract_strided_slice %718 {offsets = [0, 6, 0], sizes = [1, 1, 256], strides = [1, 1, 1]} : vector<1x8x256xf32> to vector<1x1x256xf32>
    %764 = vector.broadcast %762 : vector<1x8x1xf32> to vector<1x8x256xf32>
    %765 = vector.broadcast %763 : vector<1x1x256xf32> to vector<1x8x256xf32>
    %766 = arith.mulf %764, %765 : vector<1x8x256xf32>
    %767 = arith.addf %760, %766 : vector<1x8x256xf32>
    %768 = vector.extract_strided_slice %346 {offsets = [0, 55], sizes = [8, 1], strides = [1, 1]} : vector<8x72xf32> to vector<8x1xf32>
    %769 = vector.shape_cast %768 : vector<8x1xf32> to vector<1x8x1xf32>
    %770 = vector.extract_strided_slice %718 {offsets = [0, 7, 0], sizes = [1, 1, 256], strides = [1, 1, 1]} : vector<1x8x256xf32> to vector<1x1x256xf32>
    %771 = vector.broadcast %769 : vector<1x8x1xf32> to vector<1x8x256xf32>
    %772 = vector.broadcast %770 : vector<1x1x256xf32> to vector<1x8x256xf32>
    %773 = arith.mulf %771, %772 : vector<1x8x256xf32>
    %774 = arith.addf %767, %773 : vector<1x8x256xf32>
    %c240_i32_67 = arith.constant 240 : i32
    %775 = tpu.dynamic_rotate %345 by %c240_i32_67 dim 2 : vector<1x8x256xf32>, i32 -> vector<1x8x256xf32>
    %cst_68 = arith.constant 0.000000e+00 : f32
    %776 = vector.shape_cast %90 : vector<1x1x256xi1> to vector<1x1x256xi1>
    %777 = vector.broadcast %776 : vector<1x1x256xi1> to vector<1x8x256xi1>
    %778 = vector.broadcast %cst_68 : f32 to vector<1x8x256xf32>
    %779 = arith.select %777, %775, %778 : vector<1x8x256xi1>, vector<1x8x256xf32>
    %780 = vector.extract_strided_slice %346 {offsets = [0, 56], sizes = [8, 1], strides = [1, 1]} : vector<8x72xf32> to vector<8x1xf32>
    %781 = vector.shape_cast %780 : vector<8x1xf32> to vector<1x8x1xf32>
    %782 = vector.extract_strided_slice %779 {offsets = [0, 0, 0], sizes = [1, 1, 256], strides = [1, 1, 1]} : vector<1x8x256xf32> to vector<1x1x256xf32>
    %783 = vector.broadcast %781 : vector<1x8x1xf32> to vector<1x8x256xf32>
    %784 = vector.broadcast %782 : vector<1x1x256xf32> to vector<1x8x256xf32>
    %785 = arith.mulf %783, %784 : vector<1x8x256xf32>
    %786 = arith.addf %774, %785 : vector<1x8x256xf32>
    %787 = vector.extract_strided_slice %346 {offsets = [0, 57], sizes = [8, 1], strides = [1, 1]} : vector<8x72xf32> to vector<8x1xf32>
    %788 = vector.shape_cast %787 : vector<8x1xf32> to vector<1x8x1xf32>
    %789 = vector.extract_strided_slice %779 {offsets = [0, 1, 0], sizes = [1, 1, 256], strides = [1, 1, 1]} : vector<1x8x256xf32> to vector<1x1x256xf32>
    %790 = vector.broadcast %788 : vector<1x8x1xf32> to vector<1x8x256xf32>
    %791 = vector.broadcast %789 : vector<1x1x256xf32> to vector<1x8x256xf32>
    %792 = arith.mulf %790, %791 : vector<1x8x256xf32>
    %793 = arith.addf %786, %792 : vector<1x8x256xf32>
    %794 = vector.extract_strided_slice %346 {offsets = [0, 58], sizes = [8, 1], strides = [1, 1]} : vector<8x72xf32> to vector<8x1xf32>
    %795 = vector.shape_cast %794 : vector<8x1xf32> to vector<1x8x1xf32>
    %796 = vector.extract_strided_slice %779 {offsets = [0, 2, 0], sizes = [1, 1, 256], strides = [1, 1, 1]} : vector<1x8x256xf32> to vector<1x1x256xf32>
    %797 = vector.broadcast %795 : vector<1x8x1xf32> to vector<1x8x256xf32>
    %798 = vector.broadcast %796 : vector<1x1x256xf32> to vector<1x8x256xf32>
    %799 = arith.mulf %797, %798 : vector<1x8x256xf32>
    %800 = arith.addf %793, %799 : vector<1x8x256xf32>
    %801 = vector.extract_strided_slice %346 {offsets = [0, 59], sizes = [8, 1], strides = [1, 1]} : vector<8x72xf32> to vector<8x1xf32>
    %802 = vector.shape_cast %801 : vector<8x1xf32> to vector<1x8x1xf32>
    %803 = vector.extract_strided_slice %779 {offsets = [0, 3, 0], sizes = [1, 1, 256], strides = [1, 1, 1]} : vector<1x8x256xf32> to vector<1x1x256xf32>
    %804 = vector.broadcast %802 : vector<1x8x1xf32> to vector<1x8x256xf32>
    %805 = vector.broadcast %803 : vector<1x1x256xf32> to vector<1x8x256xf32>
    %806 = arith.mulf %804, %805 : vector<1x8x256xf32>
    %807 = arith.addf %800, %806 : vector<1x8x256xf32>
    %808 = vector.extract_strided_slice %346 {offsets = [0, 60], sizes = [8, 1], strides = [1, 1]} : vector<8x72xf32> to vector<8x1xf32>
    %809 = vector.shape_cast %808 : vector<8x1xf32> to vector<1x8x1xf32>
    %810 = vector.extract_strided_slice %779 {offsets = [0, 4, 0], sizes = [1, 1, 256], strides = [1, 1, 1]} : vector<1x8x256xf32> to vector<1x1x256xf32>
    %811 = vector.broadcast %809 : vector<1x8x1xf32> to vector<1x8x256xf32>
    %812 = vector.broadcast %810 : vector<1x1x256xf32> to vector<1x8x256xf32>
    %813 = arith.mulf %811, %812 : vector<1x8x256xf32>
    %814 = arith.addf %807, %813 : vector<1x8x256xf32>
    %815 = vector.extract_strided_slice %346 {offsets = [0, 61], sizes = [8, 1], strides = [1, 1]} : vector<8x72xf32> to vector<8x1xf32>
    %816 = vector.shape_cast %815 : vector<8x1xf32> to vector<1x8x1xf32>
    %817 = vector.extract_strided_slice %779 {offsets = [0, 5, 0], sizes = [1, 1, 256], strides = [1, 1, 1]} : vector<1x8x256xf32> to vector<1x1x256xf32>
    %818 = vector.broadcast %816 : vector<1x8x1xf32> to vector<1x8x256xf32>
    %819 = vector.broadcast %817 : vector<1x1x256xf32> to vector<1x8x256xf32>
    %820 = arith.mulf %818, %819 : vector<1x8x256xf32>
    %821 = arith.addf %814, %820 : vector<1x8x256xf32>
    %822 = vector.extract_strided_slice %346 {offsets = [0, 62], sizes = [8, 1], strides = [1, 1]} : vector<8x72xf32> to vector<8x1xf32>
    %823 = vector.shape_cast %822 : vector<8x1xf32> to vector<1x8x1xf32>
    %824 = vector.extract_strided_slice %779 {offsets = [0, 6, 0], sizes = [1, 1, 256], strides = [1, 1, 1]} : vector<1x8x256xf32> to vector<1x1x256xf32>
    %825 = vector.broadcast %823 : vector<1x8x1xf32> to vector<1x8x256xf32>
    %826 = vector.broadcast %824 : vector<1x1x256xf32> to vector<1x8x256xf32>
    %827 = arith.mulf %825, %826 : vector<1x8x256xf32>
    %828 = arith.addf %821, %827 : vector<1x8x256xf32>
    %829 = vector.extract_strided_slice %346 {offsets = [0, 63], sizes = [8, 1], strides = [1, 1]} : vector<8x72xf32> to vector<8x1xf32>
    %830 = vector.shape_cast %829 : vector<8x1xf32> to vector<1x8x1xf32>
    %831 = vector.extract_strided_slice %779 {offsets = [0, 7, 0], sizes = [1, 1, 256], strides = [1, 1, 1]} : vector<1x8x256xf32> to vector<1x1x256xf32>
    %832 = vector.broadcast %830 : vector<1x8x1xf32> to vector<1x8x256xf32>
    %833 = vector.broadcast %831 : vector<1x1x256xf32> to vector<1x8x256xf32>
    %834 = arith.mulf %832, %833 : vector<1x8x256xf32>
    %835 = arith.addf %828, %834 : vector<1x8x256xf32>
    %c239_i32_69 = arith.constant 239 : i32
    %836 = tpu.dynamic_rotate %345 by %c239_i32_69 dim 2 : vector<1x8x256xf32>, i32 -> vector<1x8x256xf32>
    %cst_70 = arith.constant 0.000000e+00 : f32
    %837 = vector.shape_cast %101 : vector<1x1x256xi1> to vector<1x1x256xi1>
    %838 = vector.broadcast %837 : vector<1x1x256xi1> to vector<1x8x256xi1>
    %839 = vector.broadcast %cst_70 : f32 to vector<1x8x256xf32>
    %840 = arith.select %838, %836, %839 : vector<1x8x256xi1>, vector<1x8x256xf32>
    %841 = vector.extract_strided_slice %346 {offsets = [0, 64], sizes = [8, 1], strides = [1, 1]} : vector<8x72xf32> to vector<8x1xf32>
    %842 = vector.shape_cast %841 : vector<8x1xf32> to vector<1x8x1xf32>
    %843 = vector.extract_strided_slice %840 {offsets = [0, 0, 0], sizes = [1, 1, 256], strides = [1, 1, 1]} : vector<1x8x256xf32> to vector<1x1x256xf32>
    %844 = vector.broadcast %842 : vector<1x8x1xf32> to vector<1x8x256xf32>
    %845 = vector.broadcast %843 : vector<1x1x256xf32> to vector<1x8x256xf32>
    %846 = arith.mulf %844, %845 : vector<1x8x256xf32>
    %847 = arith.addf %835, %846 : vector<1x8x256xf32>
    %848 = vector.extract_strided_slice %346 {offsets = [0, 65], sizes = [8, 1], strides = [1, 1]} : vector<8x72xf32> to vector<8x1xf32>
    %849 = vector.shape_cast %848 : vector<8x1xf32> to vector<1x8x1xf32>
    %850 = vector.extract_strided_slice %840 {offsets = [0, 1, 0], sizes = [1, 1, 256], strides = [1, 1, 1]} : vector<1x8x256xf32> to vector<1x1x256xf32>
    %851 = vector.broadcast %849 : vector<1x8x1xf32> to vector<1x8x256xf32>
    %852 = vector.broadcast %850 : vector<1x1x256xf32> to vector<1x8x256xf32>
    %853 = arith.mulf %851, %852 : vector<1x8x256xf32>
    %854 = arith.addf %847, %853 : vector<1x8x256xf32>
    %855 = vector.extract_strided_slice %346 {offsets = [0, 66], sizes = [8, 1], strides = [1, 1]} : vector<8x72xf32> to vector<8x1xf32>
    %856 = vector.shape_cast %855 : vector<8x1xf32> to vector<1x8x1xf32>
    %857 = vector.extract_strided_slice %840 {offsets = [0, 2, 0], sizes = [1, 1, 256], strides = [1, 1, 1]} : vector<1x8x256xf32> to vector<1x1x256xf32>
    %858 = vector.broadcast %856 : vector<1x8x1xf32> to vector<1x8x256xf32>
    %859 = vector.broadcast %857 : vector<1x1x256xf32> to vector<1x8x256xf32>
    %860 = arith.mulf %858, %859 : vector<1x8x256xf32>
    %861 = arith.addf %854, %860 : vector<1x8x256xf32>
    %862 = vector.extract_strided_slice %346 {offsets = [0, 67], sizes = [8, 1], strides = [1, 1]} : vector<8x72xf32> to vector<8x1xf32>
    %863 = vector.shape_cast %862 : vector<8x1xf32> to vector<1x8x1xf32>
    %864 = vector.extract_strided_slice %840 {offsets = [0, 3, 0], sizes = [1, 1, 256], strides = [1, 1, 1]} : vector<1x8x256xf32> to vector<1x1x256xf32>
    %865 = vector.broadcast %863 : vector<1x8x1xf32> to vector<1x8x256xf32>
    %866 = vector.broadcast %864 : vector<1x1x256xf32> to vector<1x8x256xf32>
    %867 = arith.mulf %865, %866 : vector<1x8x256xf32>
    %868 = arith.addf %861, %867 : vector<1x8x256xf32>
    %869 = vector.extract_strided_slice %346 {offsets = [0, 68], sizes = [8, 1], strides = [1, 1]} : vector<8x72xf32> to vector<8x1xf32>
    %870 = vector.shape_cast %869 : vector<8x1xf32> to vector<1x8x1xf32>
    %871 = vector.extract_strided_slice %840 {offsets = [0, 4, 0], sizes = [1, 1, 256], strides = [1, 1, 1]} : vector<1x8x256xf32> to vector<1x1x256xf32>
    %872 = vector.broadcast %870 : vector<1x8x1xf32> to vector<1x8x256xf32>
    %873 = vector.broadcast %871 : vector<1x1x256xf32> to vector<1x8x256xf32>
    %874 = arith.mulf %872, %873 : vector<1x8x256xf32>
    %875 = arith.addf %868, %874 : vector<1x8x256xf32>
    %876 = vector.extract_strided_slice %346 {offsets = [0, 69], sizes = [8, 1], strides = [1, 1]} : vector<8x72xf32> to vector<8x1xf32>
    %877 = vector.shape_cast %876 : vector<8x1xf32> to vector<1x8x1xf32>
    %878 = vector.extract_strided_slice %840 {offsets = [0, 5, 0], sizes = [1, 1, 256], strides = [1, 1, 1]} : vector<1x8x256xf32> to vector<1x1x256xf32>
    %879 = vector.broadcast %877 : vector<1x8x1xf32> to vector<1x8x256xf32>
    %880 = vector.broadcast %878 : vector<1x1x256xf32> to vector<1x8x256xf32>
    %881 = arith.mulf %879, %880 : vector<1x8x256xf32>
    %882 = arith.addf %875, %881 : vector<1x8x256xf32>
    %883 = vector.extract_strided_slice %346 {offsets = [0, 70], sizes = [8, 1], strides = [1, 1]} : vector<8x72xf32> to vector<8x1xf32>
    %884 = vector.shape_cast %883 : vector<8x1xf32> to vector<1x8x1xf32>
    %885 = vector.extract_strided_slice %840 {offsets = [0, 6, 0], sizes = [1, 1, 256], strides = [1, 1, 1]} : vector<1x8x256xf32> to vector<1x1x256xf32>
    %886 = vector.broadcast %884 : vector<1x8x1xf32> to vector<1x8x256xf32>
    %887 = vector.broadcast %885 : vector<1x1x256xf32> to vector<1x8x256xf32>
    %888 = arith.mulf %886, %887 : vector<1x8x256xf32>
    %889 = arith.addf %882, %888 : vector<1x8x256xf32>
    %890 = vector.extract_strided_slice %346 {offsets = [0, 71], sizes = [8, 1], strides = [1, 1]} : vector<8x72xf32> to vector<8x1xf32>
    %891 = vector.shape_cast %890 : vector<8x1xf32> to vector<1x8x1xf32>
    %892 = vector.extract_strided_slice %840 {offsets = [0, 7, 0], sizes = [1, 1, 256], strides = [1, 1, 1]} : vector<1x8x256xf32> to vector<1x1x256xf32>
    %893 = vector.broadcast %891 : vector<1x8x1xf32> to vector<1x8x256xf32>
    %894 = vector.broadcast %892 : vector<1x1x256xf32> to vector<1x8x256xf32>
    %895 = arith.mulf %893, %894 : vector<1x8x256xf32>
    %896 = arith.addf %889, %895 : vector<1x8x256xf32>
    %897 = vector.shape_cast %347 : vector<8x1xf32> to vector<1x8x1xf32>
    %898 = vector.broadcast %897 : vector<1x8x1xf32> to vector<1x8x256xf32>
    %899 = arith.addf %896, %898 : vector<1x8x256xf32>
    %cst_71 = arith.constant 0.000000e+00 : f32
    %900 = vector.broadcast %cst_71 : f32 to vector<1x8x256xf32>
    %901 = arith.maximumf %899, %900 : vector<1x8x256xf32>
    %c0_72 = arith.constant 0 : index
    %c0_73 = arith.constant 0 : index
    %902 = vector.load %arg6[%c0_72, %c0_73] : memref<1x72xf32, #tpu.memory_space<vmem>>, vector<1x72xf32>
    %c0_74 = arith.constant 0 : index
    %c0_75 = arith.constant 0 : index
    %903 = vector.load %arg7[%c0_74, %c0_75] : memref<1x1xf32, #tpu.memory_space<vmem>>, vector<1x1xf32>
    %cst_76 = arith.constant 0.000000e+00 : f32
    %904 = vector.broadcast %cst_76 : f32 to vector<1x1x256xf32>
    %c17_i32_77 = arith.constant 17 : i32
    %905 = tpu.dynamic_rotate %901 by %c17_i32_77 dim 2 : vector<1x8x256xf32>, i32 -> vector<1x8x256xf32>
    %cst_78 = arith.constant 0.000000e+00 : f32
    %906 = vector.shape_cast %13 : vector<1x1x256xi1> to vector<1x1x256xi1>
    %907 = vector.broadcast %906 : vector<1x1x256xi1> to vector<1x8x256xi1>
    %908 = vector.broadcast %cst_78 : f32 to vector<1x8x256xf32>
    %909 = arith.select %907, %905, %908 : vector<1x8x256xi1>, vector<1x8x256xf32>
    %910 = vector.extract_strided_slice %902 {offsets = [0, 0], sizes = [1, 1], strides = [1, 1]} : vector<1x72xf32> to vector<1x1xf32>
    %911 = vector.shape_cast %910 : vector<1x1xf32> to vector<1x1x1xf32>
    %912 = vector.extract_strided_slice %909 {offsets = [0, 0, 0], sizes = [1, 1, 256], strides = [1, 1, 1]} : vector<1x8x256xf32> to vector<1x1x256xf32>
    %913 = vector.broadcast %911 : vector<1x1x1xf32> to vector<1x1x256xf32>
    %914 = arith.mulf %913, %912 : vector<1x1x256xf32>
    %915 = arith.addf %904, %914 : vector<1x1x256xf32>
    %916 = vector.extract_strided_slice %902 {offsets = [0, 1], sizes = [1, 1], strides = [1, 1]} : vector<1x72xf32> to vector<1x1xf32>
    %917 = vector.shape_cast %916 : vector<1x1xf32> to vector<1x1x1xf32>
    %918 = vector.extract_strided_slice %909 {offsets = [0, 1, 0], sizes = [1, 1, 256], strides = [1, 1, 1]} : vector<1x8x256xf32> to vector<1x1x256xf32>
    %919 = vector.broadcast %917 : vector<1x1x1xf32> to vector<1x1x256xf32>
    %920 = arith.mulf %919, %918 : vector<1x1x256xf32>
    %921 = arith.addf %915, %920 : vector<1x1x256xf32>
    %922 = vector.extract_strided_slice %902 {offsets = [0, 2], sizes = [1, 1], strides = [1, 1]} : vector<1x72xf32> to vector<1x1xf32>
    %923 = vector.shape_cast %922 : vector<1x1xf32> to vector<1x1x1xf32>
    %924 = vector.extract_strided_slice %909 {offsets = [0, 2, 0], sizes = [1, 1, 256], strides = [1, 1, 1]} : vector<1x8x256xf32> to vector<1x1x256xf32>
    %925 = vector.broadcast %923 : vector<1x1x1xf32> to vector<1x1x256xf32>
    %926 = arith.mulf %925, %924 : vector<1x1x256xf32>
    %927 = arith.addf %921, %926 : vector<1x1x256xf32>
    %928 = vector.extract_strided_slice %902 {offsets = [0, 3], sizes = [1, 1], strides = [1, 1]} : vector<1x72xf32> to vector<1x1xf32>
    %929 = vector.shape_cast %928 : vector<1x1xf32> to vector<1x1x1xf32>
    %930 = vector.extract_strided_slice %909 {offsets = [0, 3, 0], sizes = [1, 1, 256], strides = [1, 1, 1]} : vector<1x8x256xf32> to vector<1x1x256xf32>
    %931 = vector.broadcast %929 : vector<1x1x1xf32> to vector<1x1x256xf32>
    %932 = arith.mulf %931, %930 : vector<1x1x256xf32>
    %933 = arith.addf %927, %932 : vector<1x1x256xf32>
    %934 = vector.extract_strided_slice %902 {offsets = [0, 4], sizes = [1, 1], strides = [1, 1]} : vector<1x72xf32> to vector<1x1xf32>
    %935 = vector.shape_cast %934 : vector<1x1xf32> to vector<1x1x1xf32>
    %936 = vector.extract_strided_slice %909 {offsets = [0, 4, 0], sizes = [1, 1, 256], strides = [1, 1, 1]} : vector<1x8x256xf32> to vector<1x1x256xf32>
    %937 = vector.broadcast %935 : vector<1x1x1xf32> to vector<1x1x256xf32>
    %938 = arith.mulf %937, %936 : vector<1x1x256xf32>
    %939 = arith.addf %933, %938 : vector<1x1x256xf32>
    %940 = vector.extract_strided_slice %902 {offsets = [0, 5], sizes = [1, 1], strides = [1, 1]} : vector<1x72xf32> to vector<1x1xf32>
    %941 = vector.shape_cast %940 : vector<1x1xf32> to vector<1x1x1xf32>
    %942 = vector.extract_strided_slice %909 {offsets = [0, 5, 0], sizes = [1, 1, 256], strides = [1, 1, 1]} : vector<1x8x256xf32> to vector<1x1x256xf32>
    %943 = vector.broadcast %941 : vector<1x1x1xf32> to vector<1x1x256xf32>
    %944 = arith.mulf %943, %942 : vector<1x1x256xf32>
    %945 = arith.addf %939, %944 : vector<1x1x256xf32>
    %946 = vector.extract_strided_slice %902 {offsets = [0, 6], sizes = [1, 1], strides = [1, 1]} : vector<1x72xf32> to vector<1x1xf32>
    %947 = vector.shape_cast %946 : vector<1x1xf32> to vector<1x1x1xf32>
    %948 = vector.extract_strided_slice %909 {offsets = [0, 6, 0], sizes = [1, 1, 256], strides = [1, 1, 1]} : vector<1x8x256xf32> to vector<1x1x256xf32>
    %949 = vector.broadcast %947 : vector<1x1x1xf32> to vector<1x1x256xf32>
    %950 = arith.mulf %949, %948 : vector<1x1x256xf32>
    %951 = arith.addf %945, %950 : vector<1x1x256xf32>
    %952 = vector.extract_strided_slice %902 {offsets = [0, 7], sizes = [1, 1], strides = [1, 1]} : vector<1x72xf32> to vector<1x1xf32>
    %953 = vector.shape_cast %952 : vector<1x1xf32> to vector<1x1x1xf32>
    %954 = vector.extract_strided_slice %909 {offsets = [0, 7, 0], sizes = [1, 1, 256], strides = [1, 1, 1]} : vector<1x8x256xf32> to vector<1x1x256xf32>
    %955 = vector.broadcast %953 : vector<1x1x1xf32> to vector<1x1x256xf32>
    %956 = arith.mulf %955, %954 : vector<1x1x256xf32>
    %957 = arith.addf %951, %956 : vector<1x1x256xf32>
    %c16_i32_79 = arith.constant 16 : i32
    %958 = tpu.dynamic_rotate %901 by %c16_i32_79 dim 2 : vector<1x8x256xf32>, i32 -> vector<1x8x256xf32>
    %cst_80 = arith.constant 0.000000e+00 : f32
    %959 = vector.shape_cast %24 : vector<1x1x256xi1> to vector<1x1x256xi1>
    %960 = vector.broadcast %959 : vector<1x1x256xi1> to vector<1x8x256xi1>
    %961 = vector.broadcast %cst_80 : f32 to vector<1x8x256xf32>
    %962 = arith.select %960, %958, %961 : vector<1x8x256xi1>, vector<1x8x256xf32>
    %963 = vector.extract_strided_slice %902 {offsets = [0, 8], sizes = [1, 1], strides = [1, 1]} : vector<1x72xf32> to vector<1x1xf32>
    %964 = vector.shape_cast %963 : vector<1x1xf32> to vector<1x1x1xf32>
    %965 = vector.extract_strided_slice %962 {offsets = [0, 0, 0], sizes = [1, 1, 256], strides = [1, 1, 1]} : vector<1x8x256xf32> to vector<1x1x256xf32>
    %966 = vector.broadcast %964 : vector<1x1x1xf32> to vector<1x1x256xf32>
    %967 = arith.mulf %966, %965 : vector<1x1x256xf32>
    %968 = arith.addf %957, %967 : vector<1x1x256xf32>
    %969 = vector.extract_strided_slice %902 {offsets = [0, 9], sizes = [1, 1], strides = [1, 1]} : vector<1x72xf32> to vector<1x1xf32>
    %970 = vector.shape_cast %969 : vector<1x1xf32> to vector<1x1x1xf32>
    %971 = vector.extract_strided_slice %962 {offsets = [0, 1, 0], sizes = [1, 1, 256], strides = [1, 1, 1]} : vector<1x8x256xf32> to vector<1x1x256xf32>
    %972 = vector.broadcast %970 : vector<1x1x1xf32> to vector<1x1x256xf32>
    %973 = arith.mulf %972, %971 : vector<1x1x256xf32>
    %974 = arith.addf %968, %973 : vector<1x1x256xf32>
    %975 = vector.extract_strided_slice %902 {offsets = [0, 10], sizes = [1, 1], strides = [1, 1]} : vector<1x72xf32> to vector<1x1xf32>
    %976 = vector.shape_cast %975 : vector<1x1xf32> to vector<1x1x1xf32>
    %977 = vector.extract_strided_slice %962 {offsets = [0, 2, 0], sizes = [1, 1, 256], strides = [1, 1, 1]} : vector<1x8x256xf32> to vector<1x1x256xf32>
    %978 = vector.broadcast %976 : vector<1x1x1xf32> to vector<1x1x256xf32>
    %979 = arith.mulf %978, %977 : vector<1x1x256xf32>
    %980 = arith.addf %974, %979 : vector<1x1x256xf32>
    %981 = vector.extract_strided_slice %902 {offsets = [0, 11], sizes = [1, 1], strides = [1, 1]} : vector<1x72xf32> to vector<1x1xf32>
    %982 = vector.shape_cast %981 : vector<1x1xf32> to vector<1x1x1xf32>
    %983 = vector.extract_strided_slice %962 {offsets = [0, 3, 0], sizes = [1, 1, 256], strides = [1, 1, 1]} : vector<1x8x256xf32> to vector<1x1x256xf32>
    %984 = vector.broadcast %982 : vector<1x1x1xf32> to vector<1x1x256xf32>
    %985 = arith.mulf %984, %983 : vector<1x1x256xf32>
    %986 = arith.addf %980, %985 : vector<1x1x256xf32>
    %987 = vector.extract_strided_slice %902 {offsets = [0, 12], sizes = [1, 1], strides = [1, 1]} : vector<1x72xf32> to vector<1x1xf32>
    %988 = vector.shape_cast %987 : vector<1x1xf32> to vector<1x1x1xf32>
    %989 = vector.extract_strided_slice %962 {offsets = [0, 4, 0], sizes = [1, 1, 256], strides = [1, 1, 1]} : vector<1x8x256xf32> to vector<1x1x256xf32>
    %990 = vector.broadcast %988 : vector<1x1x1xf32> to vector<1x1x256xf32>
    %991 = arith.mulf %990, %989 : vector<1x1x256xf32>
    %992 = arith.addf %986, %991 : vector<1x1x256xf32>
    %993 = vector.extract_strided_slice %902 {offsets = [0, 13], sizes = [1, 1], strides = [1, 1]} : vector<1x72xf32> to vector<1x1xf32>
    %994 = vector.shape_cast %993 : vector<1x1xf32> to vector<1x1x1xf32>
    %995 = vector.extract_strided_slice %962 {offsets = [0, 5, 0], sizes = [1, 1, 256], strides = [1, 1, 1]} : vector<1x8x256xf32> to vector<1x1x256xf32>
    %996 = vector.broadcast %994 : vector<1x1x1xf32> to vector<1x1x256xf32>
    %997 = arith.mulf %996, %995 : vector<1x1x256xf32>
    %998 = arith.addf %992, %997 : vector<1x1x256xf32>
    %999 = vector.extract_strided_slice %902 {offsets = [0, 14], sizes = [1, 1], strides = [1, 1]} : vector<1x72xf32> to vector<1x1xf32>
    %1000 = vector.shape_cast %999 : vector<1x1xf32> to vector<1x1x1xf32>
    %1001 = vector.extract_strided_slice %962 {offsets = [0, 6, 0], sizes = [1, 1, 256], strides = [1, 1, 1]} : vector<1x8x256xf32> to vector<1x1x256xf32>
    %1002 = vector.broadcast %1000 : vector<1x1x1xf32> to vector<1x1x256xf32>
    %1003 = arith.mulf %1002, %1001 : vector<1x1x256xf32>
    %1004 = arith.addf %998, %1003 : vector<1x1x256xf32>
    %1005 = vector.extract_strided_slice %902 {offsets = [0, 15], sizes = [1, 1], strides = [1, 1]} : vector<1x72xf32> to vector<1x1xf32>
    %1006 = vector.shape_cast %1005 : vector<1x1xf32> to vector<1x1x1xf32>
    %1007 = vector.extract_strided_slice %962 {offsets = [0, 7, 0], sizes = [1, 1, 256], strides = [1, 1, 1]} : vector<1x8x256xf32> to vector<1x1x256xf32>
    %1008 = vector.broadcast %1006 : vector<1x1x1xf32> to vector<1x1x256xf32>
    %1009 = arith.mulf %1008, %1007 : vector<1x1x256xf32>
    %1010 = arith.addf %1004, %1009 : vector<1x1x256xf32>
    %c15_i32_81 = arith.constant 15 : i32
    %1011 = tpu.dynamic_rotate %901 by %c15_i32_81 dim 2 : vector<1x8x256xf32>, i32 -> vector<1x8x256xf32>
    %cst_82 = arith.constant 0.000000e+00 : f32
    %1012 = vector.shape_cast %35 : vector<1x1x256xi1> to vector<1x1x256xi1>
    %1013 = vector.broadcast %1012 : vector<1x1x256xi1> to vector<1x8x256xi1>
    %1014 = vector.broadcast %cst_82 : f32 to vector<1x8x256xf32>
    %1015 = arith.select %1013, %1011, %1014 : vector<1x8x256xi1>, vector<1x8x256xf32>
    %1016 = vector.extract_strided_slice %902 {offsets = [0, 16], sizes = [1, 1], strides = [1, 1]} : vector<1x72xf32> to vector<1x1xf32>
    %1017 = vector.shape_cast %1016 : vector<1x1xf32> to vector<1x1x1xf32>
    %1018 = vector.extract_strided_slice %1015 {offsets = [0, 0, 0], sizes = [1, 1, 256], strides = [1, 1, 1]} : vector<1x8x256xf32> to vector<1x1x256xf32>
    %1019 = vector.broadcast %1017 : vector<1x1x1xf32> to vector<1x1x256xf32>
    %1020 = arith.mulf %1019, %1018 : vector<1x1x256xf32>
    %1021 = arith.addf %1010, %1020 : vector<1x1x256xf32>
    %1022 = vector.extract_strided_slice %902 {offsets = [0, 17], sizes = [1, 1], strides = [1, 1]} : vector<1x72xf32> to vector<1x1xf32>
    %1023 = vector.shape_cast %1022 : vector<1x1xf32> to vector<1x1x1xf32>
    %1024 = vector.extract_strided_slice %1015 {offsets = [0, 1, 0], sizes = [1, 1, 256], strides = [1, 1, 1]} : vector<1x8x256xf32> to vector<1x1x256xf32>
    %1025 = vector.broadcast %1023 : vector<1x1x1xf32> to vector<1x1x256xf32>
    %1026 = arith.mulf %1025, %1024 : vector<1x1x256xf32>
    %1027 = arith.addf %1021, %1026 : vector<1x1x256xf32>
    %1028 = vector.extract_strided_slice %902 {offsets = [0, 18], sizes = [1, 1], strides = [1, 1]} : vector<1x72xf32> to vector<1x1xf32>
    %1029 = vector.shape_cast %1028 : vector<1x1xf32> to vector<1x1x1xf32>
    %1030 = vector.extract_strided_slice %1015 {offsets = [0, 2, 0], sizes = [1, 1, 256], strides = [1, 1, 1]} : vector<1x8x256xf32> to vector<1x1x256xf32>
    %1031 = vector.broadcast %1029 : vector<1x1x1xf32> to vector<1x1x256xf32>
    %1032 = arith.mulf %1031, %1030 : vector<1x1x256xf32>
    %1033 = arith.addf %1027, %1032 : vector<1x1x256xf32>
    %1034 = vector.extract_strided_slice %902 {offsets = [0, 19], sizes = [1, 1], strides = [1, 1]} : vector<1x72xf32> to vector<1x1xf32>
    %1035 = vector.shape_cast %1034 : vector<1x1xf32> to vector<1x1x1xf32>
    %1036 = vector.extract_strided_slice %1015 {offsets = [0, 3, 0], sizes = [1, 1, 256], strides = [1, 1, 1]} : vector<1x8x256xf32> to vector<1x1x256xf32>
    %1037 = vector.broadcast %1035 : vector<1x1x1xf32> to vector<1x1x256xf32>
    %1038 = arith.mulf %1037, %1036 : vector<1x1x256xf32>
    %1039 = arith.addf %1033, %1038 : vector<1x1x256xf32>
    %1040 = vector.extract_strided_slice %902 {offsets = [0, 20], sizes = [1, 1], strides = [1, 1]} : vector<1x72xf32> to vector<1x1xf32>
    %1041 = vector.shape_cast %1040 : vector<1x1xf32> to vector<1x1x1xf32>
    %1042 = vector.extract_strided_slice %1015 {offsets = [0, 4, 0], sizes = [1, 1, 256], strides = [1, 1, 1]} : vector<1x8x256xf32> to vector<1x1x256xf32>
    %1043 = vector.broadcast %1041 : vector<1x1x1xf32> to vector<1x1x256xf32>
    %1044 = arith.mulf %1043, %1042 : vector<1x1x256xf32>
    %1045 = arith.addf %1039, %1044 : vector<1x1x256xf32>
    %1046 = vector.extract_strided_slice %902 {offsets = [0, 21], sizes = [1, 1], strides = [1, 1]} : vector<1x72xf32> to vector<1x1xf32>
    %1047 = vector.shape_cast %1046 : vector<1x1xf32> to vector<1x1x1xf32>
    %1048 = vector.extract_strided_slice %1015 {offsets = [0, 5, 0], sizes = [1, 1, 256], strides = [1, 1, 1]} : vector<1x8x256xf32> to vector<1x1x256xf32>
    %1049 = vector.broadcast %1047 : vector<1x1x1xf32> to vector<1x1x256xf32>
    %1050 = arith.mulf %1049, %1048 : vector<1x1x256xf32>
    %1051 = arith.addf %1045, %1050 : vector<1x1x256xf32>
    %1052 = vector.extract_strided_slice %902 {offsets = [0, 22], sizes = [1, 1], strides = [1, 1]} : vector<1x72xf32> to vector<1x1xf32>
    %1053 = vector.shape_cast %1052 : vector<1x1xf32> to vector<1x1x1xf32>
    %1054 = vector.extract_strided_slice %1015 {offsets = [0, 6, 0], sizes = [1, 1, 256], strides = [1, 1, 1]} : vector<1x8x256xf32> to vector<1x1x256xf32>
    %1055 = vector.broadcast %1053 : vector<1x1x1xf32> to vector<1x1x256xf32>
    %1056 = arith.mulf %1055, %1054 : vector<1x1x256xf32>
    %1057 = arith.addf %1051, %1056 : vector<1x1x256xf32>
    %1058 = vector.extract_strided_slice %902 {offsets = [0, 23], sizes = [1, 1], strides = [1, 1]} : vector<1x72xf32> to vector<1x1xf32>
    %1059 = vector.shape_cast %1058 : vector<1x1xf32> to vector<1x1x1xf32>
    %1060 = vector.extract_strided_slice %1015 {offsets = [0, 7, 0], sizes = [1, 1, 256], strides = [1, 1, 1]} : vector<1x8x256xf32> to vector<1x1x256xf32>
    %1061 = vector.broadcast %1059 : vector<1x1x1xf32> to vector<1x1x256xf32>
    %1062 = arith.mulf %1061, %1060 : vector<1x1x256xf32>
    %1063 = arith.addf %1057, %1062 : vector<1x1x256xf32>
    %c1_i32_83 = arith.constant 1 : i32
    %1064 = tpu.dynamic_rotate %901 by %c1_i32_83 dim 2 : vector<1x8x256xf32>, i32 -> vector<1x8x256xf32>
    %cst_84 = arith.constant 0.000000e+00 : f32
    %1065 = vector.shape_cast %46 : vector<1x1x256xi1> to vector<1x1x256xi1>
    %1066 = vector.broadcast %1065 : vector<1x1x256xi1> to vector<1x8x256xi1>
    %1067 = vector.broadcast %cst_84 : f32 to vector<1x8x256xf32>
    %1068 = arith.select %1066, %1064, %1067 : vector<1x8x256xi1>, vector<1x8x256xf32>
    %1069 = vector.extract_strided_slice %902 {offsets = [0, 24], sizes = [1, 1], strides = [1, 1]} : vector<1x72xf32> to vector<1x1xf32>
    %1070 = vector.shape_cast %1069 : vector<1x1xf32> to vector<1x1x1xf32>
    %1071 = vector.extract_strided_slice %1068 {offsets = [0, 0, 0], sizes = [1, 1, 256], strides = [1, 1, 1]} : vector<1x8x256xf32> to vector<1x1x256xf32>
    %1072 = vector.broadcast %1070 : vector<1x1x1xf32> to vector<1x1x256xf32>
    %1073 = arith.mulf %1072, %1071 : vector<1x1x256xf32>
    %1074 = arith.addf %1063, %1073 : vector<1x1x256xf32>
    %1075 = vector.extract_strided_slice %902 {offsets = [0, 25], sizes = [1, 1], strides = [1, 1]} : vector<1x72xf32> to vector<1x1xf32>
    %1076 = vector.shape_cast %1075 : vector<1x1xf32> to vector<1x1x1xf32>
    %1077 = vector.extract_strided_slice %1068 {offsets = [0, 1, 0], sizes = [1, 1, 256], strides = [1, 1, 1]} : vector<1x8x256xf32> to vector<1x1x256xf32>
    %1078 = vector.broadcast %1076 : vector<1x1x1xf32> to vector<1x1x256xf32>
    %1079 = arith.mulf %1078, %1077 : vector<1x1x256xf32>
    %1080 = arith.addf %1074, %1079 : vector<1x1x256xf32>
    %1081 = vector.extract_strided_slice %902 {offsets = [0, 26], sizes = [1, 1], strides = [1, 1]} : vector<1x72xf32> to vector<1x1xf32>
    %1082 = vector.shape_cast %1081 : vector<1x1xf32> to vector<1x1x1xf32>
    %1083 = vector.extract_strided_slice %1068 {offsets = [0, 2, 0], sizes = [1, 1, 256], strides = [1, 1, 1]} : vector<1x8x256xf32> to vector<1x1x256xf32>
    %1084 = vector.broadcast %1082 : vector<1x1x1xf32> to vector<1x1x256xf32>
    %1085 = arith.mulf %1084, %1083 : vector<1x1x256xf32>
    %1086 = arith.addf %1080, %1085 : vector<1x1x256xf32>
    %1087 = vector.extract_strided_slice %902 {offsets = [0, 27], sizes = [1, 1], strides = [1, 1]} : vector<1x72xf32> to vector<1x1xf32>
    %1088 = vector.shape_cast %1087 : vector<1x1xf32> to vector<1x1x1xf32>
    %1089 = vector.extract_strided_slice %1068 {offsets = [0, 3, 0], sizes = [1, 1, 256], strides = [1, 1, 1]} : vector<1x8x256xf32> to vector<1x1x256xf32>
    %1090 = vector.broadcast %1088 : vector<1x1x1xf32> to vector<1x1x256xf32>
    %1091 = arith.mulf %1090, %1089 : vector<1x1x256xf32>
    %1092 = arith.addf %1086, %1091 : vector<1x1x256xf32>
    %1093 = vector.extract_strided_slice %902 {offsets = [0, 28], sizes = [1, 1], strides = [1, 1]} : vector<1x72xf32> to vector<1x1xf32>
    %1094 = vector.shape_cast %1093 : vector<1x1xf32> to vector<1x1x1xf32>
    %1095 = vector.extract_strided_slice %1068 {offsets = [0, 4, 0], sizes = [1, 1, 256], strides = [1, 1, 1]} : vector<1x8x256xf32> to vector<1x1x256xf32>
    %1096 = vector.broadcast %1094 : vector<1x1x1xf32> to vector<1x1x256xf32>
    %1097 = arith.mulf %1096, %1095 : vector<1x1x256xf32>
    %1098 = arith.addf %1092, %1097 : vector<1x1x256xf32>
    %1099 = vector.extract_strided_slice %902 {offsets = [0, 29], sizes = [1, 1], strides = [1, 1]} : vector<1x72xf32> to vector<1x1xf32>
    %1100 = vector.shape_cast %1099 : vector<1x1xf32> to vector<1x1x1xf32>
    %1101 = vector.extract_strided_slice %1068 {offsets = [0, 5, 0], sizes = [1, 1, 256], strides = [1, 1, 1]} : vector<1x8x256xf32> to vector<1x1x256xf32>
    %1102 = vector.broadcast %1100 : vector<1x1x1xf32> to vector<1x1x256xf32>
    %1103 = arith.mulf %1102, %1101 : vector<1x1x256xf32>
    %1104 = arith.addf %1098, %1103 : vector<1x1x256xf32>
    %1105 = vector.extract_strided_slice %902 {offsets = [0, 30], sizes = [1, 1], strides = [1, 1]} : vector<1x72xf32> to vector<1x1xf32>
    %1106 = vector.shape_cast %1105 : vector<1x1xf32> to vector<1x1x1xf32>
    %1107 = vector.extract_strided_slice %1068 {offsets = [0, 6, 0], sizes = [1, 1, 256], strides = [1, 1, 1]} : vector<1x8x256xf32> to vector<1x1x256xf32>
    %1108 = vector.broadcast %1106 : vector<1x1x1xf32> to vector<1x1x256xf32>
    %1109 = arith.mulf %1108, %1107 : vector<1x1x256xf32>
    %1110 = arith.addf %1104, %1109 : vector<1x1x256xf32>
    %1111 = vector.extract_strided_slice %902 {offsets = [0, 31], sizes = [1, 1], strides = [1, 1]} : vector<1x72xf32> to vector<1x1xf32>
    %1112 = vector.shape_cast %1111 : vector<1x1xf32> to vector<1x1x1xf32>
    %1113 = vector.extract_strided_slice %1068 {offsets = [0, 7, 0], sizes = [1, 1, 256], strides = [1, 1, 1]} : vector<1x8x256xf32> to vector<1x1x256xf32>
    %1114 = vector.broadcast %1112 : vector<1x1x1xf32> to vector<1x1x256xf32>
    %1115 = arith.mulf %1114, %1113 : vector<1x1x256xf32>
    %1116 = arith.addf %1110, %1115 : vector<1x1x256xf32>
    %cst_85 = arith.constant 0.000000e+00 : f32
    %1117 = vector.shape_cast %57 : vector<1x1x256xi1> to vector<1x1x256xi1>
    %1118 = vector.broadcast %1117 : vector<1x1x256xi1> to vector<1x8x256xi1>
    %1119 = vector.broadcast %cst_85 : f32 to vector<1x8x256xf32>
    %1120 = arith.select %1118, %901, %1119 : vector<1x8x256xi1>, vector<1x8x256xf32>
    %1121 = vector.extract_strided_slice %902 {offsets = [0, 32], sizes = [1, 1], strides = [1, 1]} : vector<1x72xf32> to vector<1x1xf32>
    %1122 = vector.shape_cast %1121 : vector<1x1xf32> to vector<1x1x1xf32>
    %1123 = vector.extract_strided_slice %1120 {offsets = [0, 0, 0], sizes = [1, 1, 256], strides = [1, 1, 1]} : vector<1x8x256xf32> to vector<1x1x256xf32>
    %1124 = vector.broadcast %1122 : vector<1x1x1xf32> to vector<1x1x256xf32>
    %1125 = arith.mulf %1124, %1123 : vector<1x1x256xf32>
    %1126 = arith.addf %1116, %1125 : vector<1x1x256xf32>
    %1127 = vector.extract_strided_slice %902 {offsets = [0, 33], sizes = [1, 1], strides = [1, 1]} : vector<1x72xf32> to vector<1x1xf32>
    %1128 = vector.shape_cast %1127 : vector<1x1xf32> to vector<1x1x1xf32>
    %1129 = vector.extract_strided_slice %1120 {offsets = [0, 1, 0], sizes = [1, 1, 256], strides = [1, 1, 1]} : vector<1x8x256xf32> to vector<1x1x256xf32>
    %1130 = vector.broadcast %1128 : vector<1x1x1xf32> to vector<1x1x256xf32>
    %1131 = arith.mulf %1130, %1129 : vector<1x1x256xf32>
    %1132 = arith.addf %1126, %1131 : vector<1x1x256xf32>
    %1133 = vector.extract_strided_slice %902 {offsets = [0, 34], sizes = [1, 1], strides = [1, 1]} : vector<1x72xf32> to vector<1x1xf32>
    %1134 = vector.shape_cast %1133 : vector<1x1xf32> to vector<1x1x1xf32>
    %1135 = vector.extract_strided_slice %1120 {offsets = [0, 2, 0], sizes = [1, 1, 256], strides = [1, 1, 1]} : vector<1x8x256xf32> to vector<1x1x256xf32>
    %1136 = vector.broadcast %1134 : vector<1x1x1xf32> to vector<1x1x256xf32>
    %1137 = arith.mulf %1136, %1135 : vector<1x1x256xf32>
    %1138 = arith.addf %1132, %1137 : vector<1x1x256xf32>
    %1139 = vector.extract_strided_slice %902 {offsets = [0, 35], sizes = [1, 1], strides = [1, 1]} : vector<1x72xf32> to vector<1x1xf32>
    %1140 = vector.shape_cast %1139 : vector<1x1xf32> to vector<1x1x1xf32>
    %1141 = vector.extract_strided_slice %1120 {offsets = [0, 3, 0], sizes = [1, 1, 256], strides = [1, 1, 1]} : vector<1x8x256xf32> to vector<1x1x256xf32>
    %1142 = vector.broadcast %1140 : vector<1x1x1xf32> to vector<1x1x256xf32>
    %1143 = arith.mulf %1142, %1141 : vector<1x1x256xf32>
    %1144 = arith.addf %1138, %1143 : vector<1x1x256xf32>
    %1145 = vector.extract_strided_slice %902 {offsets = [0, 36], sizes = [1, 1], strides = [1, 1]} : vector<1x72xf32> to vector<1x1xf32>
    %1146 = vector.shape_cast %1145 : vector<1x1xf32> to vector<1x1x1xf32>
    %1147 = vector.extract_strided_slice %1120 {offsets = [0, 4, 0], sizes = [1, 1, 256], strides = [1, 1, 1]} : vector<1x8x256xf32> to vector<1x1x256xf32>
    %1148 = vector.broadcast %1146 : vector<1x1x1xf32> to vector<1x1x256xf32>
    %1149 = arith.mulf %1148, %1147 : vector<1x1x256xf32>
    %1150 = arith.addf %1144, %1149 : vector<1x1x256xf32>
    %1151 = vector.extract_strided_slice %902 {offsets = [0, 37], sizes = [1, 1], strides = [1, 1]} : vector<1x72xf32> to vector<1x1xf32>
    %1152 = vector.shape_cast %1151 : vector<1x1xf32> to vector<1x1x1xf32>
    %1153 = vector.extract_strided_slice %1120 {offsets = [0, 5, 0], sizes = [1, 1, 256], strides = [1, 1, 1]} : vector<1x8x256xf32> to vector<1x1x256xf32>
    %1154 = vector.broadcast %1152 : vector<1x1x1xf32> to vector<1x1x256xf32>
    %1155 = arith.mulf %1154, %1153 : vector<1x1x256xf32>
    %1156 = arith.addf %1150, %1155 : vector<1x1x256xf32>
    %1157 = vector.extract_strided_slice %902 {offsets = [0, 38], sizes = [1, 1], strides = [1, 1]} : vector<1x72xf32> to vector<1x1xf32>
    %1158 = vector.shape_cast %1157 : vector<1x1xf32> to vector<1x1x1xf32>
    %1159 = vector.extract_strided_slice %1120 {offsets = [0, 6, 0], sizes = [1, 1, 256], strides = [1, 1, 1]} : vector<1x8x256xf32> to vector<1x1x256xf32>
    %1160 = vector.broadcast %1158 : vector<1x1x1xf32> to vector<1x1x256xf32>
    %1161 = arith.mulf %1160, %1159 : vector<1x1x256xf32>
    %1162 = arith.addf %1156, %1161 : vector<1x1x256xf32>
    %1163 = vector.extract_strided_slice %902 {offsets = [0, 39], sizes = [1, 1], strides = [1, 1]} : vector<1x72xf32> to vector<1x1xf32>
    %1164 = vector.shape_cast %1163 : vector<1x1xf32> to vector<1x1x1xf32>
    %1165 = vector.extract_strided_slice %1120 {offsets = [0, 7, 0], sizes = [1, 1, 256], strides = [1, 1, 1]} : vector<1x8x256xf32> to vector<1x1x256xf32>
    %1166 = vector.broadcast %1164 : vector<1x1x1xf32> to vector<1x1x256xf32>
    %1167 = arith.mulf %1166, %1165 : vector<1x1x256xf32>
    %1168 = arith.addf %1162, %1167 : vector<1x1x256xf32>
    %c255_i32_86 = arith.constant 255 : i32
    %1169 = tpu.dynamic_rotate %901 by %c255_i32_86 dim 2 : vector<1x8x256xf32>, i32 -> vector<1x8x256xf32>
    %cst_87 = arith.constant 0.000000e+00 : f32
    %1170 = vector.shape_cast %68 : vector<1x1x256xi1> to vector<1x1x256xi1>
    %1171 = vector.broadcast %1170 : vector<1x1x256xi1> to vector<1x8x256xi1>
    %1172 = vector.broadcast %cst_87 : f32 to vector<1x8x256xf32>
    %1173 = arith.select %1171, %1169, %1172 : vector<1x8x256xi1>, vector<1x8x256xf32>
    %1174 = vector.extract_strided_slice %902 {offsets = [0, 40], sizes = [1, 1], strides = [1, 1]} : vector<1x72xf32> to vector<1x1xf32>
    %1175 = vector.shape_cast %1174 : vector<1x1xf32> to vector<1x1x1xf32>
    %1176 = vector.extract_strided_slice %1173 {offsets = [0, 0, 0], sizes = [1, 1, 256], strides = [1, 1, 1]} : vector<1x8x256xf32> to vector<1x1x256xf32>
    %1177 = vector.broadcast %1175 : vector<1x1x1xf32> to vector<1x1x256xf32>
    %1178 = arith.mulf %1177, %1176 : vector<1x1x256xf32>
    %1179 = arith.addf %1168, %1178 : vector<1x1x256xf32>
    %1180 = vector.extract_strided_slice %902 {offsets = [0, 41], sizes = [1, 1], strides = [1, 1]} : vector<1x72xf32> to vector<1x1xf32>
    %1181 = vector.shape_cast %1180 : vector<1x1xf32> to vector<1x1x1xf32>
    %1182 = vector.extract_strided_slice %1173 {offsets = [0, 1, 0], sizes = [1, 1, 256], strides = [1, 1, 1]} : vector<1x8x256xf32> to vector<1x1x256xf32>
    %1183 = vector.broadcast %1181 : vector<1x1x1xf32> to vector<1x1x256xf32>
    %1184 = arith.mulf %1183, %1182 : vector<1x1x256xf32>
    %1185 = arith.addf %1179, %1184 : vector<1x1x256xf32>
    %1186 = vector.extract_strided_slice %902 {offsets = [0, 42], sizes = [1, 1], strides = [1, 1]} : vector<1x72xf32> to vector<1x1xf32>
    %1187 = vector.shape_cast %1186 : vector<1x1xf32> to vector<1x1x1xf32>
    %1188 = vector.extract_strided_slice %1173 {offsets = [0, 2, 0], sizes = [1, 1, 256], strides = [1, 1, 1]} : vector<1x8x256xf32> to vector<1x1x256xf32>
    %1189 = vector.broadcast %1187 : vector<1x1x1xf32> to vector<1x1x256xf32>
    %1190 = arith.mulf %1189, %1188 : vector<1x1x256xf32>
    %1191 = arith.addf %1185, %1190 : vector<1x1x256xf32>
    %1192 = vector.extract_strided_slice %902 {offsets = [0, 43], sizes = [1, 1], strides = [1, 1]} : vector<1x72xf32> to vector<1x1xf32>
    %1193 = vector.shape_cast %1192 : vector<1x1xf32> to vector<1x1x1xf32>
    %1194 = vector.extract_strided_slice %1173 {offsets = [0, 3, 0], sizes = [1, 1, 256], strides = [1, 1, 1]} : vector<1x8x256xf32> to vector<1x1x256xf32>
    %1195 = vector.broadcast %1193 : vector<1x1x1xf32> to vector<1x1x256xf32>
    %1196 = arith.mulf %1195, %1194 : vector<1x1x256xf32>
    %1197 = arith.addf %1191, %1196 : vector<1x1x256xf32>
    %1198 = vector.extract_strided_slice %902 {offsets = [0, 44], sizes = [1, 1], strides = [1, 1]} : vector<1x72xf32> to vector<1x1xf32>
    %1199 = vector.shape_cast %1198 : vector<1x1xf32> to vector<1x1x1xf32>
    %1200 = vector.extract_strided_slice %1173 {offsets = [0, 4, 0], sizes = [1, 1, 256], strides = [1, 1, 1]} : vector<1x8x256xf32> to vector<1x1x256xf32>
    %1201 = vector.broadcast %1199 : vector<1x1x1xf32> to vector<1x1x256xf32>
    %1202 = arith.mulf %1201, %1200 : vector<1x1x256xf32>
    %1203 = arith.addf %1197, %1202 : vector<1x1x256xf32>
    %1204 = vector.extract_strided_slice %902 {offsets = [0, 45], sizes = [1, 1], strides = [1, 1]} : vector<1x72xf32> to vector<1x1xf32>
    %1205 = vector.shape_cast %1204 : vector<1x1xf32> to vector<1x1x1xf32>
    %1206 = vector.extract_strided_slice %1173 {offsets = [0, 5, 0], sizes = [1, 1, 256], strides = [1, 1, 1]} : vector<1x8x256xf32> to vector<1x1x256xf32>
    %1207 = vector.broadcast %1205 : vector<1x1x1xf32> to vector<1x1x256xf32>
    %1208 = arith.mulf %1207, %1206 : vector<1x1x256xf32>
    %1209 = arith.addf %1203, %1208 : vector<1x1x256xf32>
    %1210 = vector.extract_strided_slice %902 {offsets = [0, 46], sizes = [1, 1], strides = [1, 1]} : vector<1x72xf32> to vector<1x1xf32>
    %1211 = vector.shape_cast %1210 : vector<1x1xf32> to vector<1x1x1xf32>
    %1212 = vector.extract_strided_slice %1173 {offsets = [0, 6, 0], sizes = [1, 1, 256], strides = [1, 1, 1]} : vector<1x8x256xf32> to vector<1x1x256xf32>
    %1213 = vector.broadcast %1211 : vector<1x1x1xf32> to vector<1x1x256xf32>
    %1214 = arith.mulf %1213, %1212 : vector<1x1x256xf32>
    %1215 = arith.addf %1209, %1214 : vector<1x1x256xf32>
    %1216 = vector.extract_strided_slice %902 {offsets = [0, 47], sizes = [1, 1], strides = [1, 1]} : vector<1x72xf32> to vector<1x1xf32>
    %1217 = vector.shape_cast %1216 : vector<1x1xf32> to vector<1x1x1xf32>
    %1218 = vector.extract_strided_slice %1173 {offsets = [0, 7, 0], sizes = [1, 1, 256], strides = [1, 1, 1]} : vector<1x8x256xf32> to vector<1x1x256xf32>
    %1219 = vector.broadcast %1217 : vector<1x1x1xf32> to vector<1x1x256xf32>
    %1220 = arith.mulf %1219, %1218 : vector<1x1x256xf32>
    %1221 = arith.addf %1215, %1220 : vector<1x1x256xf32>
    %c241_i32_88 = arith.constant 241 : i32
    %1222 = tpu.dynamic_rotate %901 by %c241_i32_88 dim 2 : vector<1x8x256xf32>, i32 -> vector<1x8x256xf32>
    %cst_89 = arith.constant 0.000000e+00 : f32
    %1223 = vector.shape_cast %79 : vector<1x1x256xi1> to vector<1x1x256xi1>
    %1224 = vector.broadcast %1223 : vector<1x1x256xi1> to vector<1x8x256xi1>
    %1225 = vector.broadcast %cst_89 : f32 to vector<1x8x256xf32>
    %1226 = arith.select %1224, %1222, %1225 : vector<1x8x256xi1>, vector<1x8x256xf32>
    %1227 = vector.extract_strided_slice %902 {offsets = [0, 48], sizes = [1, 1], strides = [1, 1]} : vector<1x72xf32> to vector<1x1xf32>
    %1228 = vector.shape_cast %1227 : vector<1x1xf32> to vector<1x1x1xf32>
    %1229 = vector.extract_strided_slice %1226 {offsets = [0, 0, 0], sizes = [1, 1, 256], strides = [1, 1, 1]} : vector<1x8x256xf32> to vector<1x1x256xf32>
    %1230 = vector.broadcast %1228 : vector<1x1x1xf32> to vector<1x1x256xf32>
    %1231 = arith.mulf %1230, %1229 : vector<1x1x256xf32>
    %1232 = arith.addf %1221, %1231 : vector<1x1x256xf32>
    %1233 = vector.extract_strided_slice %902 {offsets = [0, 49], sizes = [1, 1], strides = [1, 1]} : vector<1x72xf32> to vector<1x1xf32>
    %1234 = vector.shape_cast %1233 : vector<1x1xf32> to vector<1x1x1xf32>
    %1235 = vector.extract_strided_slice %1226 {offsets = [0, 1, 0], sizes = [1, 1, 256], strides = [1, 1, 1]} : vector<1x8x256xf32> to vector<1x1x256xf32>
    %1236 = vector.broadcast %1234 : vector<1x1x1xf32> to vector<1x1x256xf32>
    %1237 = arith.mulf %1236, %1235 : vector<1x1x256xf32>
    %1238 = arith.addf %1232, %1237 : vector<1x1x256xf32>
    %1239 = vector.extract_strided_slice %902 {offsets = [0, 50], sizes = [1, 1], strides = [1, 1]} : vector<1x72xf32> to vector<1x1xf32>
    %1240 = vector.shape_cast %1239 : vector<1x1xf32> to vector<1x1x1xf32>
    %1241 = vector.extract_strided_slice %1226 {offsets = [0, 2, 0], sizes = [1, 1, 256], strides = [1, 1, 1]} : vector<1x8x256xf32> to vector<1x1x256xf32>
    %1242 = vector.broadcast %1240 : vector<1x1x1xf32> to vector<1x1x256xf32>
    %1243 = arith.mulf %1242, %1241 : vector<1x1x256xf32>
    %1244 = arith.addf %1238, %1243 : vector<1x1x256xf32>
    %1245 = vector.extract_strided_slice %902 {offsets = [0, 51], sizes = [1, 1], strides = [1, 1]} : vector<1x72xf32> to vector<1x1xf32>
    %1246 = vector.shape_cast %1245 : vector<1x1xf32> to vector<1x1x1xf32>
    %1247 = vector.extract_strided_slice %1226 {offsets = [0, 3, 0], sizes = [1, 1, 256], strides = [1, 1, 1]} : vector<1x8x256xf32> to vector<1x1x256xf32>
    %1248 = vector.broadcast %1246 : vector<1x1x1xf32> to vector<1x1x256xf32>
    %1249 = arith.mulf %1248, %1247 : vector<1x1x256xf32>
    %1250 = arith.addf %1244, %1249 : vector<1x1x256xf32>
    %1251 = vector.extract_strided_slice %902 {offsets = [0, 52], sizes = [1, 1], strides = [1, 1]} : vector<1x72xf32> to vector<1x1xf32>
    %1252 = vector.shape_cast %1251 : vector<1x1xf32> to vector<1x1x1xf32>
    %1253 = vector.extract_strided_slice %1226 {offsets = [0, 4, 0], sizes = [1, 1, 256], strides = [1, 1, 1]} : vector<1x8x256xf32> to vector<1x1x256xf32>
    %1254 = vector.broadcast %1252 : vector<1x1x1xf32> to vector<1x1x256xf32>
    %1255 = arith.mulf %1254, %1253 : vector<1x1x256xf32>
    %1256 = arith.addf %1250, %1255 : vector<1x1x256xf32>
    %1257 = vector.extract_strided_slice %902 {offsets = [0, 53], sizes = [1, 1], strides = [1, 1]} : vector<1x72xf32> to vector<1x1xf32>
    %1258 = vector.shape_cast %1257 : vector<1x1xf32> to vector<1x1x1xf32>
    %1259 = vector.extract_strided_slice %1226 {offsets = [0, 5, 0], sizes = [1, 1, 256], strides = [1, 1, 1]} : vector<1x8x256xf32> to vector<1x1x256xf32>
    %1260 = vector.broadcast %1258 : vector<1x1x1xf32> to vector<1x1x256xf32>
    %1261 = arith.mulf %1260, %1259 : vector<1x1x256xf32>
    %1262 = arith.addf %1256, %1261 : vector<1x1x256xf32>
    %1263 = vector.extract_strided_slice %902 {offsets = [0, 54], sizes = [1, 1], strides = [1, 1]} : vector<1x72xf32> to vector<1x1xf32>
    %1264 = vector.shape_cast %1263 : vector<1x1xf32> to vector<1x1x1xf32>
    %1265 = vector.extract_strided_slice %1226 {offsets = [0, 6, 0], sizes = [1, 1, 256], strides = [1, 1, 1]} : vector<1x8x256xf32> to vector<1x1x256xf32>
    %1266 = vector.broadcast %1264 : vector<1x1x1xf32> to vector<1x1x256xf32>
    %1267 = arith.mulf %1266, %1265 : vector<1x1x256xf32>
    %1268 = arith.addf %1262, %1267 : vector<1x1x256xf32>
    %1269 = vector.extract_strided_slice %902 {offsets = [0, 55], sizes = [1, 1], strides = [1, 1]} : vector<1x72xf32> to vector<1x1xf32>
    %1270 = vector.shape_cast %1269 : vector<1x1xf32> to vector<1x1x1xf32>
    %1271 = vector.extract_strided_slice %1226 {offsets = [0, 7, 0], sizes = [1, 1, 256], strides = [1, 1, 1]} : vector<1x8x256xf32> to vector<1x1x256xf32>
    %1272 = vector.broadcast %1270 : vector<1x1x1xf32> to vector<1x1x256xf32>
    %1273 = arith.mulf %1272, %1271 : vector<1x1x256xf32>
    %1274 = arith.addf %1268, %1273 : vector<1x1x256xf32>
    %c240_i32_90 = arith.constant 240 : i32
    %1275 = tpu.dynamic_rotate %901 by %c240_i32_90 dim 2 : vector<1x8x256xf32>, i32 -> vector<1x8x256xf32>
    %cst_91 = arith.constant 0.000000e+00 : f32
    %1276 = vector.shape_cast %90 : vector<1x1x256xi1> to vector<1x1x256xi1>
    %1277 = vector.broadcast %1276 : vector<1x1x256xi1> to vector<1x8x256xi1>
    %1278 = vector.broadcast %cst_91 : f32 to vector<1x8x256xf32>
    %1279 = arith.select %1277, %1275, %1278 : vector<1x8x256xi1>, vector<1x8x256xf32>
    %1280 = vector.extract_strided_slice %902 {offsets = [0, 56], sizes = [1, 1], strides = [1, 1]} : vector<1x72xf32> to vector<1x1xf32>
    %1281 = vector.shape_cast %1280 : vector<1x1xf32> to vector<1x1x1xf32>
    %1282 = vector.extract_strided_slice %1279 {offsets = [0, 0, 0], sizes = [1, 1, 256], strides = [1, 1, 1]} : vector<1x8x256xf32> to vector<1x1x256xf32>
    %1283 = vector.broadcast %1281 : vector<1x1x1xf32> to vector<1x1x256xf32>
    %1284 = arith.mulf %1283, %1282 : vector<1x1x256xf32>
    %1285 = arith.addf %1274, %1284 : vector<1x1x256xf32>
    %1286 = vector.extract_strided_slice %902 {offsets = [0, 57], sizes = [1, 1], strides = [1, 1]} : vector<1x72xf32> to vector<1x1xf32>
    %1287 = vector.shape_cast %1286 : vector<1x1xf32> to vector<1x1x1xf32>
    %1288 = vector.extract_strided_slice %1279 {offsets = [0, 1, 0], sizes = [1, 1, 256], strides = [1, 1, 1]} : vector<1x8x256xf32> to vector<1x1x256xf32>
    %1289 = vector.broadcast %1287 : vector<1x1x1xf32> to vector<1x1x256xf32>
    %1290 = arith.mulf %1289, %1288 : vector<1x1x256xf32>
    %1291 = arith.addf %1285, %1290 : vector<1x1x256xf32>
    %1292 = vector.extract_strided_slice %902 {offsets = [0, 58], sizes = [1, 1], strides = [1, 1]} : vector<1x72xf32> to vector<1x1xf32>
    %1293 = vector.shape_cast %1292 : vector<1x1xf32> to vector<1x1x1xf32>
    %1294 = vector.extract_strided_slice %1279 {offsets = [0, 2, 0], sizes = [1, 1, 256], strides = [1, 1, 1]} : vector<1x8x256xf32> to vector<1x1x256xf32>
    %1295 = vector.broadcast %1293 : vector<1x1x1xf32> to vector<1x1x256xf32>
    %1296 = arith.mulf %1295, %1294 : vector<1x1x256xf32>
    %1297 = arith.addf %1291, %1296 : vector<1x1x256xf32>
    %1298 = vector.extract_strided_slice %902 {offsets = [0, 59], sizes = [1, 1], strides = [1, 1]} : vector<1x72xf32> to vector<1x1xf32>
    %1299 = vector.shape_cast %1298 : vector<1x1xf32> to vector<1x1x1xf32>
    %1300 = vector.extract_strided_slice %1279 {offsets = [0, 3, 0], sizes = [1, 1, 256], strides = [1, 1, 1]} : vector<1x8x256xf32> to vector<1x1x256xf32>
    %1301 = vector.broadcast %1299 : vector<1x1x1xf32> to vector<1x1x256xf32>
    %1302 = arith.mulf %1301, %1300 : vector<1x1x256xf32>
    %1303 = arith.addf %1297, %1302 : vector<1x1x256xf32>
    %1304 = vector.extract_strided_slice %902 {offsets = [0, 60], sizes = [1, 1], strides = [1, 1]} : vector<1x72xf32> to vector<1x1xf32>
    %1305 = vector.shape_cast %1304 : vector<1x1xf32> to vector<1x1x1xf32>
    %1306 = vector.extract_strided_slice %1279 {offsets = [0, 4, 0], sizes = [1, 1, 256], strides = [1, 1, 1]} : vector<1x8x256xf32> to vector<1x1x256xf32>
    %1307 = vector.broadcast %1305 : vector<1x1x1xf32> to vector<1x1x256xf32>
    %1308 = arith.mulf %1307, %1306 : vector<1x1x256xf32>
    %1309 = arith.addf %1303, %1308 : vector<1x1x256xf32>
    %1310 = vector.extract_strided_slice %902 {offsets = [0, 61], sizes = [1, 1], strides = [1, 1]} : vector<1x72xf32> to vector<1x1xf32>
    %1311 = vector.shape_cast %1310 : vector<1x1xf32> to vector<1x1x1xf32>
    %1312 = vector.extract_strided_slice %1279 {offsets = [0, 5, 0], sizes = [1, 1, 256], strides = [1, 1, 1]} : vector<1x8x256xf32> to vector<1x1x256xf32>
    %1313 = vector.broadcast %1311 : vector<1x1x1xf32> to vector<1x1x256xf32>
    %1314 = arith.mulf %1313, %1312 : vector<1x1x256xf32>
    %1315 = arith.addf %1309, %1314 : vector<1x1x256xf32>
    %1316 = vector.extract_strided_slice %902 {offsets = [0, 62], sizes = [1, 1], strides = [1, 1]} : vector<1x72xf32> to vector<1x1xf32>
    %1317 = vector.shape_cast %1316 : vector<1x1xf32> to vector<1x1x1xf32>
    %1318 = vector.extract_strided_slice %1279 {offsets = [0, 6, 0], sizes = [1, 1, 256], strides = [1, 1, 1]} : vector<1x8x256xf32> to vector<1x1x256xf32>
    %1319 = vector.broadcast %1317 : vector<1x1x1xf32> to vector<1x1x256xf32>
    %1320 = arith.mulf %1319, %1318 : vector<1x1x256xf32>
    %1321 = arith.addf %1315, %1320 : vector<1x1x256xf32>
    %1322 = vector.extract_strided_slice %902 {offsets = [0, 63], sizes = [1, 1], strides = [1, 1]} : vector<1x72xf32> to vector<1x1xf32>
    %1323 = vector.shape_cast %1322 : vector<1x1xf32> to vector<1x1x1xf32>
    %1324 = vector.extract_strided_slice %1279 {offsets = [0, 7, 0], sizes = [1, 1, 256], strides = [1, 1, 1]} : vector<1x8x256xf32> to vector<1x1x256xf32>
    %1325 = vector.broadcast %1323 : vector<1x1x1xf32> to vector<1x1x256xf32>
    %1326 = arith.mulf %1325, %1324 : vector<1x1x256xf32>
    %1327 = arith.addf %1321, %1326 : vector<1x1x256xf32>
    %c239_i32_92 = arith.constant 239 : i32
    %1328 = tpu.dynamic_rotate %901 by %c239_i32_92 dim 2 : vector<1x8x256xf32>, i32 -> vector<1x8x256xf32>
    %cst_93 = arith.constant 0.000000e+00 : f32
    %1329 = vector.shape_cast %101 : vector<1x1x256xi1> to vector<1x1x256xi1>
    %1330 = vector.broadcast %1329 : vector<1x1x256xi1> to vector<1x8x256xi1>
    %1331 = vector.broadcast %cst_93 : f32 to vector<1x8x256xf32>
    %1332 = arith.select %1330, %1328, %1331 : vector<1x8x256xi1>, vector<1x8x256xf32>
    %1333 = vector.extract_strided_slice %902 {offsets = [0, 64], sizes = [1, 1], strides = [1, 1]} : vector<1x72xf32> to vector<1x1xf32>
    %1334 = vector.shape_cast %1333 : vector<1x1xf32> to vector<1x1x1xf32>
    %1335 = vector.extract_strided_slice %1332 {offsets = [0, 0, 0], sizes = [1, 1, 256], strides = [1, 1, 1]} : vector<1x8x256xf32> to vector<1x1x256xf32>
    %1336 = vector.broadcast %1334 : vector<1x1x1xf32> to vector<1x1x256xf32>
    %1337 = arith.mulf %1336, %1335 : vector<1x1x256xf32>
    %1338 = arith.addf %1327, %1337 : vector<1x1x256xf32>
    %1339 = vector.extract_strided_slice %902 {offsets = [0, 65], sizes = [1, 1], strides = [1, 1]} : vector<1x72xf32> to vector<1x1xf32>
    %1340 = vector.shape_cast %1339 : vector<1x1xf32> to vector<1x1x1xf32>
    %1341 = vector.extract_strided_slice %1332 {offsets = [0, 1, 0], sizes = [1, 1, 256], strides = [1, 1, 1]} : vector<1x8x256xf32> to vector<1x1x256xf32>
    %1342 = vector.broadcast %1340 : vector<1x1x1xf32> to vector<1x1x256xf32>
    %1343 = arith.mulf %1342, %1341 : vector<1x1x256xf32>
    %1344 = arith.addf %1338, %1343 : vector<1x1x256xf32>
    %1345 = vector.extract_strided_slice %902 {offsets = [0, 66], sizes = [1, 1], strides = [1, 1]} : vector<1x72xf32> to vector<1x1xf32>
    %1346 = vector.shape_cast %1345 : vector<1x1xf32> to vector<1x1x1xf32>
    %1347 = vector.extract_strided_slice %1332 {offsets = [0, 2, 0], sizes = [1, 1, 256], strides = [1, 1, 1]} : vector<1x8x256xf32> to vector<1x1x256xf32>
    %1348 = vector.broadcast %1346 : vector<1x1x1xf32> to vector<1x1x256xf32>
    %1349 = arith.mulf %1348, %1347 : vector<1x1x256xf32>
    %1350 = arith.addf %1344, %1349 : vector<1x1x256xf32>
    %1351 = vector.extract_strided_slice %902 {offsets = [0, 67], sizes = [1, 1], strides = [1, 1]} : vector<1x72xf32> to vector<1x1xf32>
    %1352 = vector.shape_cast %1351 : vector<1x1xf32> to vector<1x1x1xf32>
    %1353 = vector.extract_strided_slice %1332 {offsets = [0, 3, 0], sizes = [1, 1, 256], strides = [1, 1, 1]} : vector<1x8x256xf32> to vector<1x1x256xf32>
    %1354 = vector.broadcast %1352 : vector<1x1x1xf32> to vector<1x1x256xf32>
    %1355 = arith.mulf %1354, %1353 : vector<1x1x256xf32>
    %1356 = arith.addf %1350, %1355 : vector<1x1x256xf32>
    %1357 = vector.extract_strided_slice %902 {offsets = [0, 68], sizes = [1, 1], strides = [1, 1]} : vector<1x72xf32> to vector<1x1xf32>
    %1358 = vector.shape_cast %1357 : vector<1x1xf32> to vector<1x1x1xf32>
    %1359 = vector.extract_strided_slice %1332 {offsets = [0, 4, 0], sizes = [1, 1, 256], strides = [1, 1, 1]} : vector<1x8x256xf32> to vector<1x1x256xf32>
    %1360 = vector.broadcast %1358 : vector<1x1x1xf32> to vector<1x1x256xf32>
    %1361 = arith.mulf %1360, %1359 : vector<1x1x256xf32>
    %1362 = arith.addf %1356, %1361 : vector<1x1x256xf32>
    %1363 = vector.extract_strided_slice %902 {offsets = [0, 69], sizes = [1, 1], strides = [1, 1]} : vector<1x72xf32> to vector<1x1xf32>
    %1364 = vector.shape_cast %1363 : vector<1x1xf32> to vector<1x1x1xf32>
    %1365 = vector.extract_strided_slice %1332 {offsets = [0, 5, 0], sizes = [1, 1, 256], strides = [1, 1, 1]} : vector<1x8x256xf32> to vector<1x1x256xf32>
    %1366 = vector.broadcast %1364 : vector<1x1x1xf32> to vector<1x1x256xf32>
    %1367 = arith.mulf %1366, %1365 : vector<1x1x256xf32>
    %1368 = arith.addf %1362, %1367 : vector<1x1x256xf32>
    %1369 = vector.extract_strided_slice %902 {offsets = [0, 70], sizes = [1, 1], strides = [1, 1]} : vector<1x72xf32> to vector<1x1xf32>
    %1370 = vector.shape_cast %1369 : vector<1x1xf32> to vector<1x1x1xf32>
    %1371 = vector.extract_strided_slice %1332 {offsets = [0, 6, 0], sizes = [1, 1, 256], strides = [1, 1, 1]} : vector<1x8x256xf32> to vector<1x1x256xf32>
    %1372 = vector.broadcast %1370 : vector<1x1x1xf32> to vector<1x1x256xf32>
    %1373 = arith.mulf %1372, %1371 : vector<1x1x256xf32>
    %1374 = arith.addf %1368, %1373 : vector<1x1x256xf32>
    %1375 = vector.extract_strided_slice %902 {offsets = [0, 71], sizes = [1, 1], strides = [1, 1]} : vector<1x72xf32> to vector<1x1xf32>
    %1376 = vector.shape_cast %1375 : vector<1x1xf32> to vector<1x1x1xf32>
    %1377 = vector.extract_strided_slice %1332 {offsets = [0, 7, 0], sizes = [1, 1, 256], strides = [1, 1, 1]} : vector<1x8x256xf32> to vector<1x1x256xf32>
    %1378 = vector.broadcast %1376 : vector<1x1x1xf32> to vector<1x1x256xf32>
    %1379 = arith.mulf %1378, %1377 : vector<1x1x256xf32>
    %1380 = arith.addf %1374, %1379 : vector<1x1x256xf32>
    %1381 = vector.shape_cast %903 : vector<1x1xf32> to vector<1x1x1xf32>
    %1382 = vector.broadcast %1381 : vector<1x1x1xf32> to vector<1x1x256xf32>
    %1383 = arith.addf %1380, %1382 : vector<1x1x256xf32>
    %1384 = arith.negf %1383 : vector<1x1x256xf32>
    %1385 = math.exp %1384 : vector<1x1x256xf32>
    %cst_94 = arith.constant 1.000000e+00 : f32
    %1386 = vector.broadcast %cst_94 : f32 to vector<1x1x256xf32>
    %1387 = arith.addf %1386, %1385 : vector<1x1x256xf32>
    %1388 = arith.divf %1386, %1387 : vector<1x1x256xf32>
    %c0_95 = arith.constant 0 : index
    %c0_96 = arith.constant 0 : index
    %c0_97 = arith.constant 0 : index
    %1389 = vector.load %arg8[%c0_95, %c0_96, %c0_97] : memref<1x1x256xf32, #tpu.memory_space<vmem>>, vector<1x1x256xf32>
    tpu.vector_store %arg8[%c0_95, %c0_96, %c0_97], %1388 {strides = array<i32>} : memref<1x1x256xf32, #tpu.memory_space<vmem>>, vector<1x1x256xf32>,
    return
  }
  func.func @transform_0(%arg0: i32) -> (i32, i32, i32) {
    %c0_i32 = arith.constant 0 : i32
    %c0_i32_0 = arith.constant 0 : i32
    %c0_i32_1 = arith.constant 0 : i32
    return %arg0, %c0_i32, %c0_i32_0 : i32, i32, i32
  }
  func.func @transform_1(%arg0: i32) -> (i32, i32) {
    %c0_i32 = arith.constant 0 : i32
    %c0_i32_0 = arith.constant 0 : i32
    %c0_i32_1 = arith.constant 0 : i32
    return %c0_i32, %c0_i32_0 : i32, i32
  }
  func.func @transform_2(%arg0: i32) -> (i32, i32) {
    %c0_i32 = arith.constant 0 : i32
    %c0_i32_0 = arith.constant 0 : i32
    %c0_i32_1 = arith.constant 0 : i32
    return %c0_i32, %c0_i32_0 : i32, i32
  }
  func.func @transform_3(%arg0: i32) -> (i32, i32) {
    %c0_i32 = arith.constant 0 : i32
    %c0_i32_0 = arith.constant 0 : i32
    %c0_i32_1 = arith.constant 0 : i32
    return %c0_i32, %c0_i32_0 : i32, i32
  }
  func.func @transform_4(%arg0: i32) -> (i32, i32) {
    %c0_i32 = arith.constant 0 : i32
    %c0_i32_0 = arith.constant 0 : i32
    %c0_i32_1 = arith.constant 0 : i32
    return %c0_i32, %c0_i32_0 : i32, i32
  }
  func.func @transform_5(%arg0: i32) -> (i32, i32) {
    %c0_i32 = arith.constant 0 : i32
    %c0_i32_0 = arith.constant 0 : i32
    %c0_i32_1 = arith.constant 0 : i32
    return %c0_i32, %c0_i32_0 : i32, i32
  }
  func.func @transform_6(%arg0: i32) -> (i32, i32) {
    %c0_i32 = arith.constant 0 : i32
    %c0_i32_0 = arith.constant 0 : i32
    %c0_i32_1 = arith.constant 0 : i32
    return %c0_i32, %c0_i32_0 : i32, i32
  }
  func.func @transform_7(%arg0: i32) -> (i32, i32, i32) {
    %c0_i32 = arith.constant 0 : i32
    %c0_i32_0 = arith.constant 0 : i32
    %c0_i32_1 = arith.constant 0 : i32
    return %arg0, %c0_i32, %c0_i32_0 : i32, i32, i32
  }
}

</mosaic_0001>

<llo_original>
// kernel: tpu_custom_call.1
$region0: #{tpu_custom_call.1}
  #allocation0 [shape = 'u32[]', space=smem, size = 0x4, offset = 0x4, fixed_abs, tag = 'smem constant byte address 0x4 - core index']
  #allocation1 [shape = 'u32[72,128]{1,0:T(1,128)}', space=vmem, size = 0x9000, scoped, tag = 'internal scratch']
  #allocation2 [shape = 'f32[1,1]{1,0:T(1,128)S(1)}', space=vmem, size = 0x200, scoped, tag = 'scoped memory for tpu_custom_call.1']
  %s0 = inlined_call_operand.vmem [shape: f32[2,3,256], index: 0, kind: input, shape index: {}]
  %s1 = inlined_call_operand.vmem [shape: f32[8,27], index: 1, kind: input, shape index: {}]
  %s2 = inlined_call_operand.vmem [shape: f32[8,1], index: 2, kind: input, shape index: {}]
  %s3 = inlined_call_operand.vmem [shape: f32[8,72], index: 3, kind: input, shape index: {}]
  %s4 = inlined_call_operand.vmem [shape: f32[8,1], index: 4, kind: input, shape index: {}]
  %s5 = inlined_call_operand.vmem [shape: f32[1,72], index: 5, kind: input, shape index: {}]
  %s6 = inlined_call_operand.<no memory space> [shape: f32[1,1], index: 6, kind: input, shape index: {}]
  %s7 = inlined_call_operand.hbm [shape: f32[2,1,256], index: 7, kind: output, shape index: {}]
  %s8 = sld [smem:[#allocation0]]
  $region61: #{tpu_custom_call.1} parent=0
    _
  %s10 = ssub.s32 1, %s8
  %s11 = scalar_select 0, %s10, %s8
  %v12 = vstv %s6
  %13 = vst [vmem:[#allocation2] sm:$0x1] %v12
  $region1: #{tpu_custom_call.1} parent=0
    #allocation3 [shape = 'u8[2048]{0}', space=vmem, size = 0x800, scoped, tag = 'output window, operand 0']
    #allocation4 [shape = 's32[2]{0}', space=sflag, size = 0x8, scoped, tag = 'scoped memory for tpu_custom_call.1']
    %14 = vsyncpa [#allocation4], 0
    %s15 = scalar_lea.sflag [#allocation4], 1
    %16 = vsyncpa %s15, 0
    loop: start=0, step=1, limit=4
    $region2: #{tpu_custom_call.1} parent=1 // loop_pre_header
      _
    $region3: #{tpu_custom_call.1} parent=1 // loop_header
      %s18 = sphi 0, %s22
      %p19 = scmp.ge.s32.totalorder %s18, 4
      %s28 = sphi 0, %s30
      %s31 = sphi 0, %s28
      %s32 = sphi 0, %s31
      %s48 = sphi 0, %s32
      %s52 = sphi 0, %s52
      %s54 = sphi 0, %s52
      %s55 = sphi 0, %s54
      %s69 = sphi 0, %s55
      %s73 = sphi 0, %s73
      %s75 = sphi 0, %s73
      %s76 = sphi 0, %s75
      %s90 = sphi 0, %s76
      %s94 = sphi 0, %s94
      %s96 = sphi 0, %s94
      %s97 = sphi 0, %s96
      %s111 = sphi 0, %s97
      %s115 = sphi 0, %s115
      %s117 = sphi 0, %s115
      %s118 = sphi 0, %s117
      %s132 = sphi 0, %s118
      %s136 = sphi 0, %s136
      %s138 = sphi 0, %s136
      %s139 = sphi 0, %s138
      %s153 = sphi 0, %s139
      %s157 = sphi 0, %s157
      %s159 = sphi 0, %s157
      %s160 = sphi 0, %s159
      %s174 = sphi 0, %s160
      %s180 = sphi 0, %s182
      %s183 = sphi 0, %s180
      %s184 = sphi 0, %s183
      %s200 = sphi 0, %s184
    $region4: #{tpu_custom_call.1} parent=1 // loop_header_branch
      %21 = sbr.rel (%p19) target = $region8
    $region5: #{tpu_custom_call.1} parent=1 // loop_body
      %s23 = ssub.s32 %s18, 1
      %s24 = ssub.s32 %s18, 2
      %s25 = sadd.s32 %s18, 1
      %s26 = ssub.s32 %s18, %s25
      %p27 = scmp.eq.s32.totalorder %s26, 0
      %s29 = sadd.s32 %s28, 1
      %s30 = scalar_select %p27, %s28, %s29
      %p33 = pneg %p27
      %p34 = scmp.eq.s32.totalorder %s18, 1
      %p35 = por %p33, %p34
      %p36 = scmp.ne.s32.totalorder %s28, %s31
      %p37 = scmp.eq.s32.totalorder %s18, 0
      %p38 = por %p36, %p37
      %p39 = scmp.ne.s32.totalorder %s28, %s31
      %p40 = scmp.eq.s32.totalorder %s23, 1
      %p41 = por %p39, %p40
      %p42 = scmp.ne.s32.totalorder %s31, %s32
      %p43 = scmp.eq.s32.totalorder %s23, 0
      %p44 = por %p42, %p43
      %p45 = scmp.ne.s32.totalorder %s31, %s32
      %p46 = scmp.eq.s32.totalorder %s24, 1
      %p47 = por %p45, %p46
      %p49 = scmp.ne.s32.totalorder %s32, %s48
      %p50 = scmp.eq.s32.totalorder %s24, 0
      %p51 = por %p49, %p50
      %s53 = sadd.s32 %s52, 1
      %p56 = scmp.eq.s32.totalorder %s18, 1
      %p57 = scmp.ne.s32.totalorder %s52, %s54
      %p58 = scmp.eq.s32.totalorder %s18, 0
      %p59 = por %p57, %p58
      %p60 = scmp.ne.s32.totalorder %s52, %s54
      %p61 = scmp.eq.s32.totalorder %s23, 1
      %p62 = por %p60, %p61
      %p63 = scmp.ne.s32.totalorder %s54, %s55
      %p64 = scmp.eq.s32.totalorder %s23, 0
      %p65 = por %p63, %p64
      %p66 = scmp.ne.s32.totalorder %s54, %s55
      %p67 = scmp.eq.s32.totalorder %s24, 1
      %p68 = por %p66, %p67
      %p70 = scmp.ne.s32.totalorder %s55, %s69
      %p71 = scmp.eq.s32.totalorder %s24, 0
      %p72 = por %p70, %p71
      %s74 = sadd.s32 %s73, 1
      %p77 = scmp.eq.s32.totalorder %s18, 1
      %p78 = scmp.ne.s32.totalorder %s73, %s75
      %p79 = scmp.eq.s32.totalorder %s18, 0
      %p80 = por %p78, %p79
      %p81 = scmp.ne.s32.totalorder %s73, %s75
      %p82 = scmp.eq.s32.totalorder %s23, 1
      %p83 = por %p81, %p82
      %p84 = scmp.ne.s32.totalorder %s75, %s76
      %p85 = scmp.eq.s32.totalorder %s23, 0
      %p86 = por %p84, %p85
      %p87 = scmp.ne.s32.totalorder %s75, %s76
      %p88 = scmp.eq.s32.totalorder %s24, 1
      %p89 = por %p87, %p88
      %p91 = scmp.ne.s32.totalorder %s76, %s90
      %p92 = scmp.eq.s32.totalorder %s24, 0
      %p93 = por %p91, %p92
      %s95 = sadd.s32 %s94, 1
      %p98 = scmp.eq.s32.totalorder %s18, 1
      %p99 = scmp.ne.s32.totalorder %s94, %s96
      %p100 = scmp.eq.s32.totalorder %s18, 0
      %p101 = por %p99, %p100
      %p102 = scmp.ne.s32.totalorder %s94, %s96
      %p103 = scmp.eq.s32.totalorder %s23, 1
      %p104 = por %p102, %p103
      %p105 = scmp.ne.s32.totalorder %s96, %s97
      %p106 = scmp.eq.s32.totalorder %s23, 0
      %p107 = por %p105, %p106
      %p108 = scmp.ne.s32.totalorder %s96, %s97
      %p109 = scmp.eq.s32.totalorder %s24, 1
      %p110 = por %p108, %p109
      %p112 = scmp.ne.s32.totalorder %s97, %s111
      %p113 = scmp.eq.s32.totalorder %s24, 0
      %p114 = por %p112, %p113
      %s116 = sadd.s32 %s115, 1
      %p119 = scmp.eq.s32.totalorder %s18, 1
      %p120 = scmp.ne.s32.totalorder %s115, %s117
      %p121 = scmp.eq.s32.totalorder %s18, 0
      %p122 = por %p120, %p121
      %p123 = scmp.ne.s32.totalorder %s115, %s117
      %p124 = scmp.eq.s32.totalorder %s23, 1
      %p125 = por %p123, %p124
      %p126 = scmp.ne.s32.totalorder %s117, %s118
      %p127 = scmp.eq.s32.totalorder %s23, 0
      %p128 = por %p126, %p127
      %p129 = scmp.ne.s32.totalorder %s117, %s118
      %p130 = scmp.eq.s32.totalorder %s24, 1
      %p131 = por %p129, %p130
      %p133 = scmp.ne.s32.totalorder %s118, %s132
      %p134 = scmp.eq.s32.totalorder %s24, 0
      %p135 = por %p133, %p134
      %s137 = sadd.s32 %s136, 1
      %p140 = scmp.eq.s32.totalorder %s18, 1
      %p141 = scmp.ne.s32.totalorder %s136, %s138
      %p142 = scmp.eq.s32.totalorder %s18, 0
      %p143 = por %p141, %p142
      %p144 = scmp.ne.s32.totalorder %s136, %s138
      %p145 = scmp.eq.s32.totalorder %s23, 1
      %p146 = por %p144, %p145
      %p147 = scmp.ne.s32.totalorder %s138, %s139
      %p148 = scmp.eq.s32.totalorder %s23, 0
      %p149 = por %p147, %p148
      %p150 = scmp.ne.s32.totalorder %s138, %s139
      %p151 = scmp.eq.s32.totalorder %s24, 1
      %p152 = por %p150, %p151
      %p154 = scmp.ne.s32.totalorder %s139, %s153
      %p155 = scmp.eq.s32.totalorder %s24, 0
      %p156 = por %p154, %p155
      %s158 = sadd.s32 %s157, 1
      %p161 = scmp.eq.s32.totalorder %s18, 1
      %p162 = scmp.ne.s32.totalorder %s157, %s159
      %p163 = scmp.eq.s32.totalorder %s18, 0
      %p164 = por %p162, %p163
      %p165 = scmp.ne.s32.totalorder %s157, %s159
      %p166 = scmp.eq.s32.totalorder %s23, 1
      %p167 = por %p165, %p166
      %p168 = scmp.ne.s32.totalorder %s159, %s160
      %p169 = scmp.eq.s32.totalorder %s23, 0
      %p170 = por %p168, %p169
      %p171 = scmp.ne.s32.totalorder %s159, %s160
      %p172 = scmp.eq.s32.totalorder %s24, 1
      %p173 = por %p171, %p172
      %p175 = scmp.ne.s32.totalorder %s160, %s174
      %p176 = scmp.eq.s32.totalorder %s24, 0
      %p177 = por %p175, %p176
      %s178 = ssub.s32 %s18, %s25
      %p179 = scmp.eq.s32.totalorder %s178, 0
      %s181 = sadd.s32 %s180, 1
      %s182 = scalar_select %p179, %s180, %s181
      %p185 = pneg %p179
      %p186 = scmp.eq.s32.totalorder %s18, 1
      %p187 = por %p185, %p186
      %p188 = scmp.ne.s32.totalorder %s180, %s183
      %p189 = scmp.eq.s32.totalorder %s18, 0
      %p190 = por %p188, %p189
      %p191 = scmp.ne.s32.totalorder %s180, %s183
      %p192 = scmp.eq.s32.totalorder %s23, 1
      %p193 = por %p191, %p192
      %p194 = scmp.ne.s32.totalorder %s183, %s184
      %p195 = scmp.eq.s32.totalorder %s23, 0
      %p196 = por %p194, %p195
      %p197 = scmp.ne.s32.totalorder %s183, %s184
      %p198 = scmp.eq.s32.totalorder %s24, 1
      %p199 = por %p197, %p198
      %p201 = scmp.ne.s32.totalorder %s184, %s200
      %p202 = scmp.eq.s32.totalorder %s24, 0
      %p203 = por %p201, %p202
      %p204 = scmp.le.s32.totalorder 1, %s18
      %p205 = scmp.lt.s32.totalorder %s18, 3
      %p206 = pnand %p204, %p205
      %p207 = pneg %p206
      // Predicated region
      $region9: #{tpu_custom_call.1} parent=5 // pred_check
        _
      $region10: #{tpu_custom_call.1} parent=5 // pred_check_branch
        %209 = sbr.rel (%p206) target = $region12
      $region11: #{tpu_custom_call.1} parent=5 // pred_region
        %s210 = ssub.s32 %s18, 1
        // Predicated region
        $region13: #{tpu_custom_call.1} parent=11 // pred_check
          %p211 = pneg %p65
        $region14: #{tpu_custom_call.1} parent=11 // pred_check_branch
          %213 = sbr.rel (%p211) target = $region16
        $region15: #{tpu_custom_call.1} parent=11 // pred_region
          _
        $region16: #{tpu_custom_call.1} parent=11 // pred_fallthru
          _
        // Predicated region
        $region17: #{tpu_custom_call.1} parent=11 // pred_check
          %p214 = pneg %p86
        $region18: #{tpu_custom_call.1} parent=11 // pred_check_branch
          %216 = sbr.rel (%p214) target = $region20
        $region19: #{tpu_custom_call.1} parent=11 // pred_region
          _
        $region20: #{tpu_custom_call.1} parent=11 // pred_fallthru
          _
        // Predicated region
        $region21: #{tpu_custom_call.1} parent=11 // pred_check
          %p217 = pneg %p107
        $region22: #{tpu_custom_call.1} parent=11 // pred_check_branch
          %219 = sbr.rel (%p217) target = $region24
        $region23: #{tpu_custom_call.1} parent=11 // pred_region
          _
        $region24: #{tpu_custom_call.1} parent=11 // pred_fallthru
          _
        // Predicated region
        $region25: #{tpu_custom_call.1} parent=11 // pred_check
          %p220 = pneg %p128
        $region26: #{tpu_custom_call.1} parent=11 // pred_check_branch
          %222 = sbr.rel (%p220) target = $region28
        $region27: #{tpu_custom_call.1} parent=11 // pred_region
          _
        $region28: #{tpu_custom_call.1} parent=11 // pred_fallthru
          _
        // Predicated region
        $region29: #{tpu_custom_call.1} parent=11 // pred_check
          %p223 = pneg %p149
        $region30: #{tpu_custom_call.1} parent=11 // pred_check_branch
          %225 = sbr.rel (%p223) target = $region32
        $region31: #{tpu_custom_call.1} parent=11 // pred_region
          _
        $region32: #{tpu_custom_call.1} parent=11 // pred_fallthru
          _
        // Predicated region
        $region33: #{tpu_custom_call.1} parent=11 // pred_check
          %p226 = pneg %p170
        $region34: #{tpu_custom_call.1} parent=11 // pred_check_branch
          %228 = sbr.rel (%p226) target = $region36
        $region35: #{tpu_custom_call.1} parent=11 // pred_region
          _
        $region36: #{tpu_custom_call.1} parent=11 // pred_fallthru
          _
      $region12: #{tpu_custom_call.1} parent=5 // pred_fallthru
        _
      %p229 = scmp.lt.s32.totalorder %s18, 2
      // Predicated region
      $region37: #{tpu_custom_call.1} parent=5 // pred_check
        %p230 = pneg %p229
      $region38: #{tpu_custom_call.1} parent=5 // pred_check_branch
        %232 = sbr.rel (%p230) target = $region40
      $region39: #{tpu_custom_call.1} parent=5 // pred_region
        // Predicated region
        $region41: #{tpu_custom_call.1} parent=39 // pred_check
          %p233 = pneg %p38
        $region42: #{tpu_custom_call.1} parent=39 // pred_check_branch
          %235 = sbr.rel (%p233) target = $region44
        $region43: #{tpu_custom_call.1} parent=39 // pred_region
          %p236 = scmp.lt.s32.totalorder %s18, 1
          %s237 = scalar_select %p236, %s18, 1
          %s238 = smul.addr %s237, 2
          %s239 = smul.addr %s238, 4
          %s240 = scalar_lea.vmem %s0, %s239
        $region44: #{tpu_custom_call.1} parent=39 // pred_fallthru
          _
      $region40: #{tpu_custom_call.1} parent=5 // pred_fallthru
        _
      %p241 = scmp.le.s32.totalorder 1, %s18
      %p242 = scmp.lt.s32.totalorder %s18, 3
      %p243 = pnand %p241, %p242
      %p244 = pneg %p243
      // Predicated region
      $region45: #{tpu_custom_call.1} parent=5 // pred_check
        _
      $region46: #{tpu_custom_call.1} parent=5 // pred_check_branch
        %246 = sbr.rel (%p243) target = $region48
      $region47: #{tpu_custom_call.1} parent=5 // pred_region
        %s247 = ssub.s32 %s18, 1
        %p248 = scmp.lt.s32.totalorder %s23, 1
        %s249 = scalar_select %p248, %s23, 1
        %s250 = smul.addr %s249, 2
        %s251 = smul.addr %s250, 4
        %s252 = scalar_lea.vmem %s0, %s251
        %p253 = pneg %p44
        %p254 = pneg %p41
        %p255 = pneg %p65
        %p256 = pneg %p62
        %p257 = pneg %p86
        %p258 = pneg %p83
        %p259 = pneg %p107
        %p260 = pneg %p104
        %p261 = pneg %p128
        %p262 = pneg %p125
        %p263 = pneg %p149
        %p264 = pneg %p146
        %p265 = pneg %p170
        %p266 = pneg %p167
        %p267 = pneg %p196
        %p268 = pneg %p193
        %s269 = sand.u32 %s183, 1
        %s270 = scalar_lea.sflag [#allocation4], %s269
        %s271 = sand.u32 %s183, 1
        %s272 = smul.addr %s271, 2
        %s273 = scalar_lea.vmem [#allocation3], %s272
        %p274 = scmp.lt.s32.totalorder %s23, 1
        %s275 = scalar_select %p274, %s23, 1
        %s276 = smul.addr %s275, 2
        %s277 = smul.addr %s276, 4
        %s278 = scalar_lea.vmem %s0, %s277
        %v279 = vlaneseq
        %v280 = vand.u32 %v279, 127
        %v281 = vadd.s32 %v280, 128
        %v282 = vand.u32 %v280, 15
        %v283 = vand.u32 %v281, 15
        %vm284 = vcmp.ge.s32.totalorder %v280, 16
        %vm285 = vcmp.ge.s32.totalorder %v281, 16
        %vm286 = vcmp.lt.s32.totalorder %v280, 272
        %vm287 = vcmp.lt.s32.totalorder %v281, 272
        %vm288 = vmand %vm284, %vm286
        %vm289 = vmand %vm285, %vm287
        %vm290 = vcmp.ge.s32.totalorder %v282, 1
        %vm291 = vcmp.ge.s32.totalorder %v283, 1
        %vm292 = vmand %vm288, %vm290
        %vm293 = vmand %vm289, %vm291
        %vm294 = vcmp.lt.s32.totalorder %v282, 17
        %vm295 = vcmp.lt.s32.totalorder %v283, 17
        %vm296 = vmand %vm292, %vm294
        %vm297 = vmand %vm293, %vm295
        %vm298 = vcmp.ge.s32.totalorder %v282, 0
        %vm299 = vcmp.ge.s32.totalorder %v283, 0
        %vm300 = vmand %vm288, %vm298
        %vm301 = vmand %vm289, %vm299
        %vm302 = vcmp.lt.s32.totalorder %v282, 16
        %vm303 = vcmp.lt.s32.totalorder %v283, 16
        %vm304 = vmand %vm300, %vm302
        %vm305 = vmand %vm301, %vm303
        %vm306 = vcmp.ge.s32.totalorder %v282, 4294967295
        %vm307 = vcmp.ge.s32.totalorder %v283, 4294967295
        %vm308 = vmand %vm288, %vm306
        %vm309 = vmand %vm289, %vm307
        %vm310 = vcmp.lt.s32.totalorder %v282, 15
        %vm311 = vcmp.lt.s32.totalorder %v283, 15
        %vm312 = vmand %vm308, %vm310
        %vm313 = vmand %vm309, %vm311
        %vm314 = vcmp.ge.s32.totalorder %v280, 0
        %vm315 = vcmp.ge.s32.totalorder %v281, 0
        %vm316 = vcmp.lt.s32.totalorder %v280, 256
        %vm317 = vcmp.lt.s32.totalorder %v281, 256
        %vm318 = vmand %vm314, %vm316
        %vm319 = vmand %vm315, %vm317
        %vm320 = vmand %vm318, %vm290
        %vm321 = vmand %vm319, %vm291
        %vm322 = vmand %vm320, %vm294
        %vm323 = vmand %vm321, %vm295
        %vm324 = vmand %vm318, %vm298
        %vm325 = vmand %vm319, %vm299
        %vm326 = vmand %vm324, %vm302
        %vm327 = vmand %vm325, %vm303
        %vm328 = vmand %vm318, %vm306
        %vm329 = vmand %vm319, %vm307
        %vm330 = vmand %vm328, %vm310
        %vm331 = vmand %vm329, %vm311
        %vm332 = vcmp.ge.s32.totalorder %v280, 4294967280
        %vm333 = vcmp.ge.s32.totalorder %v281, 4294967280
        %vm334 = vcmp.lt.s32.totalorder %v280, 240
        %vm335 = vcmp.lt.s32.totalorder %v281, 240
        %vm336 = vmand %vm332, %vm334
        %vm337 = vmand %vm333, %vm335
        %vm338 = vmand %vm336, %vm290
        %vm339 = vmand %vm337, %vm291
        %vm340 = vmand %vm338, %vm294
        %vm341 = vmand %vm339, %vm295
        %vm342 = vmand %vm336, %vm298
        %vm343 = vmand %vm337, %vm299
        %vm344 = vmand %vm342, %vm302
        %vm345 = vmand %vm343, %vm303
        %vm346 = vmand %vm336, %vm306
        %vm347 = vmand %vm337, %vm307
        %vm348 = vmand %vm346, %vm310
        %vm349 = vmand %vm347, %vm311
        %v350 = vld [vmem:[%s278] sm:$0x77]
        %v351 = vmul.f32 %v350, 0.003921569
        %v352 = vld [vmem:[%s1] sm:$0xff]
        %v353 = vld [vmem:[%s2] sm:$0xff]
        %355 = vst [vmem:[#allocation1] ss:$2 sm:$0xff] %v351
        %v356 = vld.sshfl [vmem:[#allocation1] sm:$0xff pattern:$0x75316420]
        %v357 = vld.sshfl [vmem:[#allocation1 + $0x8] sm:$0xff pattern:$0x75316420]
        %360 = vrot.lane.b32.xlu0 %v356, 17
        %v361 = vpop.permute.xlu0 %360
        %362 = vrot.lane.b32.xlu0 %v357, 17
        %v363 = vpop.permute.xlu0 %362
        %vm364 = vcmp.lt.s32.totalorder %v280, 17
        %v365 = vsel %vm364, %v361, %v363
        %v366 = vsel %vm364, %v363, %v361
        %v367 = vsel %vm296, 1, 0
        %v368 = vsel %vm297, 1, 0
        %vm369 = vcmp.eq.s32.totalorder %v367, 1
        %vm370 = vcmp.eq.s32.totalorder %v368, 1
        %v371 = vsel %vm369, %v366, 0.0
        %v372 = vsel %vm370, %v365, 0.0
        %374 = vset.pattern.permute.xlu0 0
        %375 = vperm.xlu0 %374, %v352
        %v376 = vpop.permute.xlu0 %375
        %v378 = vperm.slane %v371, 0
        %v379 = vperm.slane %v372, 0
        %v380 = vmul.f32 %v376, %v378
        %v381 = vmul.f32 %v376, %v379
        %v382 = vadd.f32 %v380, 0.0
        %v383 = vadd.f32 %v381, 0.0
        %384 = vset.pattern.permute.xlu0 1
        %385 = vperm.xlu0 %384, %v352
        %v386 = vpop.permute.xlu0 %385
        %v388 = vperm.slane %v371, 1
        %v389 = vperm.slane %v372, 1
        %v390 = vmul.f32 %v386, %v388
        %v391 = vmul.f32 %v386, %v389
        %v392 = vadd.f32 %v382, %v390
        %v393 = vadd.f32 %v383, %v391
        %394 = vset.pattern.permute.xlu0 2
        %395 = vperm.xlu0 %394, %v352
        %v396 = vpop.permute.xlu0 %395
        %v398 = vperm.slane %v371, 2
        %v399 = vperm.slane %v372, 2
        %v400 = vmul.f32 %v396, %v398
        %v401 = vmul.f32 %v396, %v399
        %v402 = vadd.f32 %v392, %v400
        %v403 = vadd.f32 %v393, %v401
        %404 = vst [vmem:[#allocation1] ss:$2 sm:$0xff] %v351
        %v405 = vld.sshfl [vmem:[#allocation1] sm:$0xff pattern:$0x75316420]
        %v406 = vld.sshfl [vmem:[#allocation1 + $0x8] sm:$0xff pattern:$0x75316420]
        %409 = vrot.lane.b32.xlu0 %v405, 16
        %v410 = vpop.permute.xlu0 %409
        %411 = vrot.lane.b32.xlu0 %v406, 16
        %v412 = vpop.permute.xlu0 %411
        %vm413 = vcmp.lt.s32.totalorder %v280, 16
        %v414 = vsel %vm413, %v410, %v412
        %v415 = vsel %vm413, %v412, %v410
        %v416 = vsel %vm304, 1, 0
        %v417 = vsel %vm305, 1, 0
        %vm418 = vcmp.eq.s32.totalorder %v416, 1
        %vm419 = vcmp.eq.s32.totalorder %v417, 1
        %v420 = vsel %vm418, %v415, 0.0
        %v421 = vsel %vm419, %v414, 0.0
        %422 = vset.pattern.permute.xlu0 3
        %423 = vperm.xlu0 %422, %v352
        %v424 = vpop.permute.xlu0 %423
        %v426 = vperm.slane %v420, 0
        %v427 = vperm.slane %v421, 0
        %v428 = vmul.f32 %v424, %v426
        %v429 = vmul.f32 %v424, %v427
        %v430 = vadd.f32 %v402, %v428
        %v431 = vadd.f32 %v403, %v429
        %432 = vset.pattern.permute.xlu0 4
        %433 = vperm.xlu0 %432, %v352
        %v434 = vpop.permute.xlu0 %433
        %v436 = vperm.slane %v420, 1
        %v437 = vperm.slane %v421, 1
        %v438 = vmul.f32 %v434, %v436
        %v439 = vmul.f32 %v434, %v437
        %v440 = vadd.f32 %v430, %v438
        %v441 = vadd.f32 %v431, %v439
        %442 = vset.pattern.permute.xlu0 5
        %443 = vperm.xlu0 %442, %v352
        %v444 = vpop.permute.xlu0 %443
        %v446 = vperm.slane %v420, 2
        %v447 = vperm.slane %v421, 2
        %v448 = vmul.f32 %v444, %v446
        %v449 = vmul.f32 %v444, %v447
        %v450 = vadd.f32 %v440, %v448
        %v451 = vadd.f32 %v441, %v449
        %452 = vst [vmem:[#allocation1] ss:$2 sm:$0xff] %v351
        %v453 = vld.sshfl [vmem:[#allocation1] sm:$0xff pattern:$0x75316420]
        %v454 = vld.sshfl [vmem:[#allocation1 + $0x8] sm:$0xff pattern:$0x75316420]
        %457 = vrot.lane.b32.xlu0 %v453, 15
        %v458 = vpop.permute.xlu0 %457
        %459 = vrot.lane.b32.xlu0 %v454, 15
        %v460 = vpop.permute.xlu0 %459
        %vm461 = vcmp.lt.s32.totalorder %v280, 15
        %v462 = vsel %vm461, %v458, %v460
        %v463 = vsel %vm461, %v460, %v458
        %v464 = vsel %vm312, 1, 0
        %v465 = vsel %vm313, 1, 0
        %vm466 = vcmp.eq.s32.totalorder %v464, 1
        %vm467 = vcmp.eq.s32.totalorder %v465, 1
        %v468 = vsel %vm466, %v463, 0.0
        %v469 = vsel %vm467, %v462, 0.0
        %470 = vset.pattern.permute.xlu0 6
        %471 = vperm.xlu0 %470, %v352
        %v472 = vpop.permute.xlu0 %471
        %v474 = vperm.slane %v468, 0
        %v475 = vperm.slane %v469, 0
        %v476 = vmul.f32 %v472, %v474
        %v477 = vmul.f32 %v472, %v475
        %v478 = vadd.f32 %v450, %v476
        %v479 = vadd.f32 %v451, %v477
        %480 = vset.pattern.permute.xlu0 7
        %481 = vperm.xlu0 %480, %v352
        %v482 = vpop.permute.xlu0 %481
        %v484 = vperm.slane %v468, 1
        %v485 = vperm.slane %v469, 1
        %v486 = vmul.f32 %v482, %v484
        %v487 = vmul.f32 %v482, %v485
        %v488 = vadd.f32 %v478, %v486
        %v489 = vadd.f32 %v479, %v487
        %490 = vset.pattern.permute.xlu0 8
        %491 = vperm.xlu0 %490, %v352
        %v492 = vpop.permute.xlu0 %491
        %v494 = vperm.slane %v468, 2
        %v495 = vperm.slane %v469, 2
        %v496 = vmul.f32 %v492, %v494
        %v497 = vmul.f32 %v492, %v495
        %v498 = vadd.f32 %v488, %v496
        %v499 = vadd.f32 %v489, %v497
        %500 = vst [vmem:[#allocation1] ss:$2 sm:$0xff] %v351
        %v501 = vld.sshfl [vmem:[#allocation1] sm:$0xff pattern:$0x75316420]
        %v502 = vld.sshfl [vmem:[#allocation1 + $0x8] sm:$0xff pattern:$0x75316420]
        %505 = vrot.lane.b32.xlu0 %v501, 1
        %v506 = vpop.permute.xlu0 %505
        %507 = vrot.lane.b32.xlu0 %v502, 1
        %v508 = vpop.permute.xlu0 %507
        %vm509 = vcmp.lt.s32.totalorder %v280, 1
        %v510 = vsel %vm509, %v506, %v508
        %v511 = vsel %vm509, %v508, %v506
        %v512 = vsel %vm322, 1, 0
        %v513 = vsel %vm323, 1, 0
        %vm514 = vcmp.eq.s32.totalorder %v512, 1
        %vm515 = vcmp.eq.s32.totalorder %v513, 1
        %v516 = vsel %vm514, %v511, 0.0
        %v517 = vsel %vm515, %v510, 0.0
        %518 = vset.pattern.permute.xlu0 9
        %519 = vperm.xlu0 %518, %v352
        %v520 = vpop.permute.xlu0 %519
        %v522 = vperm.slane %v516, 0
        %v523 = vperm.slane %v517, 0
        %v524 = vmul.f32 %v520, %v522
        %v525 = vmul.f32 %v520, %v523
        %v526 = vadd.f32 %v498, %v524
        %v527 = vadd.f32 %v499, %v525
        %528 = vset.pattern.permute.xlu0 10
        %529 = vperm.xlu0 %528, %v352
        %v530 = vpop.permute.xlu0 %529
        %v532 = vperm.slane %v516, 1
        %v533 = vperm.slane %v517, 1
        %v534 = vmul.f32 %v530, %v532
        %v535 = vmul.f32 %v530, %v533
        %v536 = vadd.f32 %v526, %v534
        %v537 = vadd.f32 %v527, %v535
        %538 = vset.pattern.permute.xlu0 11
        %539 = vperm.xlu0 %538, %v352
        %v540 = vpop.permute.xlu0 %539
        %v542 = vperm.slane %v516, 2
        %v543 = vperm.slane %v517, 2
        %v544 = vmul.f32 %v540, %v542
        %v545 = vmul.f32 %v540, %v543
        %v546 = vadd.f32 %v536, %v544
        %v547 = vadd.f32 %v537, %v545
        %v548 = vsel %vm326, 1, 0
        %v549 = vsel %vm327, 1, 0
        %vm550 = vcmp.eq.s32.totalorder %v548, 1
        %vm551 = vcmp.eq.s32.totalorder %v549, 1
        %552 = vst [vmem:[#allocation1] ss:$2 sm:$0xff] %v351
        %v553 = vld.sshfl [vmem:[#allocation1] sm:$0xff pattern:$0x75316420]
        %v554 = vld.sshfl [vmem:[#allocation1 + $0x8] sm:$0xff pattern:$0x75316420]
        %v557 = vsel %vm550, %v553, 0.0
        %v558 = vsel %vm551, %v554, 0.0
        %559 = vset.pattern.permute.xlu0 12
        %560 = vperm.xlu0 %559, %v352
        %v561 = vpop.permute.xlu0 %560
        %v563 = vperm.slane %v557, 0
        %v564 = vperm.slane %v558, 0
        %v565 = vmul.f32 %v561, %v563
        %v566 = vmul.f32 %v561, %v564
        %v567 = vadd.f32 %v546, %v565
        %v568 = vadd.f32 %v547, %v566
        %569 = vset.pattern.permute.xlu0 13
        %570 = vperm.xlu0 %569, %v352
        %v571 = vpop.permute.xlu0 %570
        %v573 = vperm.slane %v557, 1
        %v574 = vperm.slane %v558, 1
        %v575 = vmul.f32 %v571, %v573
        %v576 = vmul.f32 %v571, %v574
        %v577 = vadd.f32 %v567, %v575
        %v578 = vadd.f32 %v568, %v576
        %579 = vset.pattern.permute.xlu0 14
        %580 = vperm.xlu0 %579, %v352
        %v581 = vpop.permute.xlu0 %580
        %v583 = vperm.slane %v557, 2
        %v584 = vperm.slane %v558, 2
        %v585 = vmul.f32 %v581, %v583
        %v586 = vmul.f32 %v581, %v584
        %v587 = vadd.f32 %v577, %v585
        %v588 = vadd.f32 %v578, %v586
        %589 = vst [vmem:[#allocation1] ss:$2 sm:$0xff] %v351
        %v590 = vld.sshfl [vmem:[#allocation1] sm:$0xff pattern:$0x75316420]
        %v591 = vld.sshfl [vmem:[#allocation1 + $0x8] sm:$0xff pattern:$0x75316420]
        %594 = vrot.lane.b32.xlu0 %v590, 127
        %v595 = vpop.permute.xlu0 %594
        %596 = vrot.lane.b32.xlu0 %v591, 127
        %v597 = vpop.permute.xlu0 %596
        %vm598 = vcmp.lt.s32.totalorder %v280, 127
        %v599 = vsel %vm598, %v595, %v597
        %v600 = vsel %vm598, %v597, %v595
        %v601 = vsel %vm330, 1, 0
        %v602 = vsel %vm331, 1, 0
        %vm603 = vcmp.eq.s32.totalorder %v601, 1
        %vm604 = vcmp.eq.s32.totalorder %v602, 1
        %v605 = vsel %vm603, %v599, 0.0
        %v606 = vsel %vm604, %v600, 0.0
        %607 = vset.pattern.permute.xlu0 15
        %608 = vperm.xlu0 %607, %v352
        %v609 = vpop.permute.xlu0 %608
        %v611 = vperm.slane %v605, 0
        %v612 = vperm.slane %v606, 0
        %v613 = vmul.f32 %v609, %v611
        %v614 = vmul.f32 %v609, %v612
        %v615 = vadd.f32 %v587, %v613
        %v616 = vadd.f32 %v588, %v614
        %617 = vset.pattern.permute.xlu0 16
        %618 = vperm.xlu0 %617, %v352
        %v619 = vpop.permute.xlu0 %618
        %v621 = vperm.slane %v605, 1
        %v622 = vperm.slane %v606, 1
        %v623 = vmul.f32 %v619, %v621
        %v624 = vmul.f32 %v619, %v622
        %v625 = vadd.f32 %v615, %v623
        %v626 = vadd.f32 %v616, %v624
        %627 = vset.pattern.permute.xlu0 17
        %628 = vperm.xlu0 %627, %v352
        %v629 = vpop.permute.xlu0 %628
        %v631 = vperm.slane %v605, 2
        %v632 = vperm.slane %v606, 2
        %v633 = vmul.f32 %v629, %v631
        %v634 = vmul.f32 %v629, %v632
        %v635 = vadd.f32 %v625, %v633
        %v636 = vadd.f32 %v626, %v634
        %637 = vst [vmem:[#allocation1] ss:$2 sm:$0xff] %v351
        %v638 = vld.sshfl [vmem:[#allocation1] sm:$0xff pattern:$0x75316420]
        %v639 = vld.sshfl [vmem:[#allocation1 + $0x8] sm:$0xff pattern:$0x75316420]
        %642 = vrot.lane.b32.xlu0 %v638, 113
        %v643 = vpop.permute.xlu0 %642
        %644 = vrot.lane.b32.xlu0 %v639, 113
        %v645 = vpop.permute.xlu0 %644
        %vm646 = vcmp.lt.s32.totalorder %v280, 113
        %v647 = vsel %vm646, %v643, %v645
        %v648 = vsel %vm646, %v645, %v643
        %v649 = vsel %vm340, 1, 0
        %v650 = vsel %vm341, 1, 0
        %vm651 = vcmp.eq.s32.totalorder %v649, 1
        %vm652 = vcmp.eq.s32.totalorder %v650, 1
        %v653 = vsel %vm651, %v647, 0.0
        %v654 = vsel %vm652, %v648, 0.0
        %655 = vset.pattern.permute.xlu0 18
        %656 = vperm.xlu0 %655, %v352
        %v657 = vpop.permute.xlu0 %656
        %v659 = vperm.slane %v653, 0
        %v660 = vperm.slane %v654, 0
        %v661 = vmul.f32 %v657, %v659
        %v662 = vmul.f32 %v657, %v660
        %v663 = vadd.f32 %v635, %v661
        %v664 = vadd.f32 %v636, %v662
        %665 = vset.pattern.permute.xlu0 19
        %666 = vperm.xlu0 %665, %v352
        %v667 = vpop.permute.xlu0 %666
        %v669 = vperm.slane %v653, 1
        %v670 = vperm.slane %v654, 1
        %v671 = vmul.f32 %v667, %v669
        %v672 = vmul.f32 %v667, %v670
        %v673 = vadd.f32 %v663, %v671
        %v674 = vadd.f32 %v664, %v672
        %675 = vset.pattern.permute.xlu0 20
        %676 = vperm.xlu0 %675, %v352
        %v677 = vpop.permute.xlu0 %676
        %v679 = vperm.slane %v653, 2
        %v680 = vperm.slane %v654, 2
        %v681 = vmul.f32 %v677, %v679
        %v682 = vmul.f32 %v677, %v680
        %v683 = vadd.f32 %v673, %v681
        %v684 = vadd.f32 %v674, %v682
        %685 = vst [vmem:[#allocation1] ss:$2 sm:$0xff] %v351
        %v686 = vld.sshfl [vmem:[#allocation1] sm:$0xff pattern:$0x75316420]
        %v687 = vld.sshfl [vmem:[#allocation1 + $0x8] sm:$0xff pattern:$0x75316420]
        %690 = vrot.lane.b32.xlu0 %v686, 112
        %v691 = vpop.permute.xlu0 %690
        %692 = vrot.lane.b32.xlu0 %v687, 112
        %v693 = vpop.permute.xlu0 %692
        %vm694 = vcmp.lt.s32.totalorder %v280, 112
        %v695 = vsel %vm694, %v691, %v693
        %v696 = vsel %vm694, %v693, %v691
        %v697 = vsel %vm344, 1, 0
        %v698 = vsel %vm345, 1, 0
        %vm699 = vcmp.eq.s32.totalorder %v697, 1
        %vm700 = vcmp.eq.s32.totalorder %v698, 1
        %v701 = vsel %vm699, %v695, 0.0
        %v702 = vsel %vm700, %v696, 0.0
        %703 = vset.pattern.permute.xlu0 21
        %704 = vperm.xlu0 %703, %v352
        %v705 = vpop.permute.xlu0 %704
        %v707 = vperm.slane %v701, 0
        %v708 = vperm.slane %v702, 0
        %v709 = vmul.f32 %v705, %v707
        %v710 = vmul.f32 %v705, %v708
        %v711 = vadd.f32 %v683, %v709
        %v712 = vadd.f32 %v684, %v710
        %713 = vset.pattern.permute.xlu0 22
        %714 = vperm.xlu0 %713, %v352
        %v715 = vpop.permute.xlu0 %714
        %v717 = vperm.slane %v701, 1
        %v718 = vperm.slane %v702, 1
        %v719 = vmul.f32 %v715, %v717
        %v720 = vmul.f32 %v715, %v718
        %v721 = vadd.f32 %v711, %v719
        %v722 = vadd.f32 %v712, %v720
        %723 = vset.pattern.permute.xlu0 23
        %724 = vperm.xlu0 %723, %v352
        %v725 = vpop.permute.xlu0 %724
        %v727 = vperm.slane %v701, 2
        %v728 = vperm.slane %v702, 2
        %v729 = vmul.f32 %v725, %v727
        %v730 = vmul.f32 %v725, %v728
        %v731 = vadd.f32 %v721, %v729
        %v732 = vadd.f32 %v722, %v730
        %733 = vst [vmem:[#allocation1] ss:$2 sm:$0xff] %v351
        %v734 = vld.sshfl [vmem:[#allocation1] sm:$0xff pattern:$0x75316420]
        %v735 = vld.sshfl [vmem:[#allocation1 + $0x8] sm:$0xff pattern:$0x75316420]
        %738 = vrot.lane.b32.xlu0 %v734, 111
        %v739 = vpop.permute.xlu0 %738
        %740 = vrot.lane.b32.xlu0 %v735, 111
        %v741 = vpop.permute.xlu0 %740
        %vm742 = vcmp.lt.s32.totalorder %v280, 111
        %v743 = vsel %vm742, %v739, %v741
        %v744 = vsel %vm742, %v741, %v739
        %v745 = vsel %vm348, 1, 0
        %v746 = vsel %vm349, 1, 0
        %vm747 = vcmp.eq.s32.totalorder %v745, 1
        %vm748 = vcmp.eq.s32.totalorder %v746, 1
        %v749 = vsel %vm747, %v743, 0.0
        %v750 = vsel %vm748, %v744, 0.0
        %751 = vset.pattern.permute.xlu0 24
        %752 = vperm.xlu0 %751, %v352
        %v753 = vpop.permute.xlu0 %752
        %v755 = vperm.slane %v749, 0
        %v756 = vperm.slane %v750, 0
        %v757 = vmul.f32 %v753, %v755
        %v758 = vmul.f32 %v753, %v756
        %v759 = vadd.f32 %v731, %v757
        %v760 = vadd.f32 %v732, %v758
        %761 = vset.pattern.permute.xlu0 25
        %762 = vperm.xlu0 %761, %v352
        %v763 = vpop.permute.xlu0 %762
        %v765 = vperm.slane %v749, 1
        %v766 = vperm.slane %v750, 1
        %v767 = vmul.f32 %v763, %v765
        %v768 = vmul.f32 %v763, %v766
        %v769 = vadd.f32 %v759, %v767
        %v770 = vadd.f32 %v760, %v768
        %771 = vset.pattern.permute.xlu0 26
        %772 = vperm.xlu0 %771, %v352
        %v773 = vpop.permute.xlu0 %772
        %v775 = vperm.slane %v749, 2
        %v776 = vperm.slane %v750, 2
        %v777 = vmul.f32 %v773, %v775
        %v778 = vmul.f32 %v773, %v776
        %v779 = vadd.f32 %v769, %v777
        %v780 = vadd.f32 %v770, %v778
        %782 = vset.pattern.permute.xlu0 0
        %783 = vperm.xlu0 %782, %v353
        %v784 = vpop.permute.xlu0 %783
        %v786 = vadd.f32 %v779, %v784
        %v787 = vadd.f32 %v780, %v784
        %v788 = vmax.f32 %v786, 0.0
        %v789 = vmax.f32 %v787, 0.0
        %v790 = vld [vmem:[%s3] sm:$0xff]
        %v791 = vld [vmem:[%s4] sm:$0xff]
        %792 = vrot.lane.b32.xlu0 %v788, 17
        %v793 = vpop.permute.xlu0 %792
        %794 = vrot.lane.b32.xlu0 %v789, 17
        %v795 = vpop.permute.xlu0 %794
        %v796 = vsel %vm364, %v793, %v795
        %v797 = vsel %vm364, %v795, %v793
        %v798 = vsel %vm369, %v797, 0.0
        %v799 = vsel %vm370, %v796, 0.0
        %801 = vset.pattern.permute.xlu0 0
        %802 = vperm.xlu0 %801, %v790
        %v803 = vpop.permute.xlu0 %802
        %v805 = vperm.slane %v798, 0
        %v806 = vperm.slane %v799, 0
        %v807 = vmul.f32 %v803, %v805
        %v808 = vmul.f32 %v803, %v806
        %v809 = vadd.f32 %v807, 0.0
        %v810 = vadd.f32 %v808, 0.0
        %811 = vset.pattern.permute.xlu0 1
        %812 = vperm.xlu0 %811, %v790
        %v813 = vpop.permute.xlu0 %812
        %v815 = vperm.slane %v798, 1
        %v816 = vperm.slane %v799, 1
        %v817 = vmul.f32 %v813, %v815
        %v818 = vmul.f32 %v813, %v816
        %v819 = vadd.f32 %v809, %v817
        %v820 = vadd.f32 %v810, %v818
        %821 = vset.pattern.permute.xlu0 2
        %822 = vperm.xlu0 %821, %v790
        %v823 = vpop.permute.xlu0 %822
        %v825 = vperm.slane %v798, 2
        %v826 = vperm.slane %v799, 2
        %v827 = vmul.f32 %v823, %v825
        %v828 = vmul.f32 %v823, %v826
        %v829 = vadd.f32 %v819, %v827
        %v830 = vadd.f32 %v820, %v828
        %831 = vset.pattern.permute.xlu0 3
        %832 = vperm.xlu0 %831, %v790
        %v833 = vpop.permute.xlu0 %832
        %v835 = vperm.slane %v798, 3
        %v836 = vperm.slane %v799, 3
        %v837 = vmul.f32 %v833, %v835
        %v838 = vmul.f32 %v833, %v836
        %v839 = vadd.f32 %v829, %v837
        %v840 = vadd.f32 %v830, %v838
        %841 = vset.pattern.permute.xlu0 4
        %842 = vperm.xlu0 %841, %v790
        %v843 = vpop.permute.xlu0 %842
        %v845 = vperm.slane %v798, 4
        %v846 = vperm.slane %v799, 4
        %v847 = vmul.f32 %v843, %v845
        %v848 = vmul.f32 %v843, %v846
        %v849 = vadd.f32 %v839, %v847
        %v850 = vadd.f32 %v840, %v848
        %851 = vset.pattern.permute.xlu0 5
        %852 = vperm.xlu0 %851, %v790
        %v853 = vpop.permute.xlu0 %852
        %v855 = vperm.slane %v798, 5
        %v856 = vperm.slane %v799, 5
        %v857 = vmul.f32 %v853, %v855
        %v858 = vmul.f32 %v853, %v856
        %v859 = vadd.f32 %v849, %v857
        %v860 = vadd.f32 %v850, %v858
        %861 = vset.pattern.permute.xlu0 6
        %862 = vperm.xlu0 %861, %v790
        %v863 = vpop.permute.xlu0 %862
        %v865 = vperm.slane %v798, 6
        %v866 = vperm.slane %v799, 6
        %v867 = vmul.f32 %v863, %v865
        %v868 = vmul.f32 %v863, %v866
        %v869 = vadd.f32 %v859, %v867
        %v870 = vadd.f32 %v860, %v868
        %871 = vset.pattern.permute.xlu0 7
        %872 = vperm.xlu0 %871, %v790
        %v873 = vpop.permute.xlu0 %872
        %v875 = vperm.slane %v798, 7
        %v876 = vperm.slane %v799, 7
        %v877 = vmul.f32 %v873, %v875
        %v878 = vmul.f32 %v873, %v876
        %v879 = vadd.f32 %v869, %v877
        %v880 = vadd.f32 %v870, %v878
        %881 = vrot.lane.b32.xlu0 %v788, 16
        %v882 = vpop.permute.xlu0 %881
        %883 = vrot.lane.b32.xlu0 %v789, 16
        %v884 = vpop.permute.xlu0 %883
        %v885 = vsel %vm413, %v882, %v884
        %v886 = vsel %vm413, %v884, %v882
        %v887 = vsel %vm418, %v886, 0.0
        %v888 = vsel %vm419, %v885, 0.0
        %889 = vset.pattern.permute.xlu0 8
        %890 = vperm.xlu0 %889, %v790
        %v891 = vpop.permute.xlu0 %890
        %v893 = vperm.slane %v887, 0
        %v894 = vperm.slane %v888, 0
        %v895 = vmul.f32 %v891, %v893
        %v896 = vmul.f32 %v891, %v894
        %v897 = vadd.f32 %v879, %v895
        %v898 = vadd.f32 %v880, %v896
        %899 = vset.pattern.permute.xlu0 9
        %900 = vperm.xlu0 %899, %v790
        %v901 = vpop.permute.xlu0 %900
        %v903 = vperm.slane %v887, 1
        %v904 = vperm.slane %v888, 1
        %v905 = vmul.f32 %v901, %v903
        %v906 = vmul.f32 %v901, %v904
        %v907 = vadd.f32 %v897, %v905
        %v908 = vadd.f32 %v898, %v906
        %909 = vset.pattern.permute.xlu0 10
        %910 = vperm.xlu0 %909, %v790
        %v911 = vpop.permute.xlu0 %910
        %v913 = vperm.slane %v887, 2
        %v914 = vperm.slane %v888, 2
        %v915 = vmul.f32 %v911, %v913
        %v916 = vmul.f32 %v911, %v914
        %v917 = vadd.f32 %v907, %v915
        %v918 = vadd.f32 %v908, %v916
        %919 = vset.pattern.permute.xlu0 11
        %920 = vperm.xlu0 %919, %v790
        %v921 = vpop.permute.xlu0 %920
        %v923 = vperm.slane %v887, 3
        %v924 = vperm.slane %v888, 3
        %v925 = vmul.f32 %v921, %v923
        %v926 = vmul.f32 %v921, %v924
        %v927 = vadd.f32 %v917, %v925
        %v928 = vadd.f32 %v918, %v926
        %929 = vset.pattern.permute.xlu0 12
        %930 = vperm.xlu0 %929, %v790
        %v931 = vpop.permute.xlu0 %930
        %v933 = vperm.slane %v887, 4
        %v934 = vperm.slane %v888, 4
        %v935 = vmul.f32 %v931, %v933
        %v936 = vmul.f32 %v931, %v934
        %v937 = vadd.f32 %v927, %v935
        %v938 = vadd.f32 %v928, %v936
        %939 = vset.pattern.permute.xlu0 13
        %940 = vperm.xlu0 %939, %v790
        %v941 = vpop.permute.xlu0 %940
        %v943 = vperm.slane %v887, 5
        %v944 = vperm.slane %v888, 5
        %v945 = vmul.f32 %v941, %v943
        %v946 = vmul.f32 %v941, %v944
        %v947 = vadd.f32 %v937, %v945
        %v948 = vadd.f32 %v938, %v946
        %949 = vset.pattern.permute.xlu0 14
        %950 = vperm.xlu0 %949, %v790
        %v951 = vpop.permute.xlu0 %950
        %v953 = vperm.slane %v887, 6
        %v954 = vperm.slane %v888, 6
        %v955 = vmul.f32 %v951, %v953
        %v956 = vmul.f32 %v951, %v954
        %v957 = vadd.f32 %v947, %v955
        %v958 = vadd.f32 %v948, %v956
        %959 = vset.pattern.permute.xlu0 15
        %960 = vperm.xlu0 %959, %v790
        %v961 = vpop.permute.xlu0 %960
        %v963 = vperm.slane %v887, 7
        %v964 = vperm.slane %v888, 7
        %v965 = vmul.f32 %v961, %v963
        %v966 = vmul.f32 %v961, %v964
        %v967 = vadd.f32 %v957, %v965
        %v968 = vadd.f32 %v958, %v966
        %969 = vrot.lane.b32.xlu0 %v788, 15
        %v970 = vpop.permute.xlu0 %969
        %971 = vrot.lane.b32.xlu0 %v789, 15
        %v972 = vpop.permute.xlu0 %971
        %v973 = vsel %vm461, %v970, %v972
        %v974 = vsel %vm461, %v972, %v970
        %v975 = vsel %vm466, %v974, 0.0
        %v976 = vsel %vm467, %v973, 0.0
        %977 = vset.pattern.permute.xlu0 16
        %978 = vperm.xlu0 %977, %v790
        %v979 = vpop.permute.xlu0 %978
        %v981 = vperm.slane %v975, 0
        %v982 = vperm.slane %v976, 0
        %v983 = vmul.f32 %v979, %v981
        %v984 = vmul.f32 %v979, %v982
        %v985 = vadd.f32 %v967, %v983
        %v986 = vadd.f32 %v968, %v984
        %987 = vset.pattern.permute.xlu0 17
        %988 = vperm.xlu0 %987, %v790
        %v989 = vpop.permute.xlu0 %988
        %v991 = vperm.slane %v975, 1
        %v992 = vperm.slane %v976, 1
        %v993 = vmul.f32 %v989, %v991
        %v994 = vmul.f32 %v989, %v992
        %v995 = vadd.f32 %v985, %v993
        %v996 = vadd.f32 %v986, %v994
        %997 = vset.pattern.permute.xlu0 18
        %998 = vperm.xlu0 %997, %v790
        %v999 = vpop.permute.xlu0 %998
        %v1001 = vperm.slane %v975, 2
        %v1002 = vperm.slane %v976, 2
        %v1003 = vmul.f32 %v999, %v1001
        %v1004 = vmul.f32 %v999, %v1002
        %v1005 = vadd.f32 %v995, %v1003
        %v1006 = vadd.f32 %v996, %v1004
        %1007 = vset.pattern.permute.xlu0 19
        %1008 = vperm.xlu0 %1007, %v790
        %v1009 = vpop.permute.xlu0 %1008
        %v1011 = vperm.slane %v975, 3
        %v1012 = vperm.slane %v976, 3
        %v1013 = vmul.f32 %v1009, %v1011
        %v1014 = vmul.f32 %v1009, %v1012
        %v1015 = vadd.f32 %v1005, %v1013
        %v1016 = vadd.f32 %v1006, %v1014
        %1017 = vset.pattern.permute.xlu0 20
        %1018 = vperm.xlu0 %1017, %v790
        %v1019 = vpop.permute.xlu0 %1018
        %v1021 = vperm.slane %v975, 4
        %v1022 = vperm.slane %v976, 4
        %v1023 = vmul.f32 %v1019, %v1021
        %v1024 = vmul.f32 %v1019, %v1022
        %v1025 = vadd.f32 %v1015, %v1023
        %v1026 = vadd.f32 %v1016, %v1024
        %1027 = vset.pattern.permute.xlu0 21
        %1028 = vperm.xlu0 %1027, %v790
        %v1029 = vpop.permute.xlu0 %1028
        %v1031 = vperm.slane %v975, 5
        %v1032 = vperm.slane %v976, 5
        %v1033 = vmul.f32 %v1029, %v1031
        %v1034 = vmul.f32 %v1029, %v1032
        %v1035 = vadd.f32 %v1025, %v1033
        %v1036 = vadd.f32 %v1026, %v1034
        %1037 = vset.pattern.permute.xlu0 22
        %1038 = vperm.xlu0 %1037, %v790
        %v1039 = vpop.permute.xlu0 %1038
        %v1041 = vperm.slane %v975, 6
        %v1042 = vperm.slane %v976, 6
        %v1043 = vmul.f32 %v1039, %v1041
        %v1044 = vmul.f32 %v1039, %v1042
        %v1045 = vadd.f32 %v1035, %v1043
        %v1046 = vadd.f32 %v1036, %v1044
        %1047 = vset.pattern.permute.xlu0 23
        %1048 = vperm.xlu0 %1047, %v790
        %v1049 = vpop.permute.xlu0 %1048
        %v1051 = vperm.slane %v975, 7
        %v1052 = vperm.slane %v976, 7
        %v1053 = vmul.f32 %v1049, %v1051
        %v1054 = vmul.f32 %v1049, %v1052
        %v1055 = vadd.f32 %v1045, %v1053
        %v1056 = vadd.f32 %v1046, %v1054
        %1057 = vrot.lane.b32.xlu0 %v788, 1
        %v1058 = vpop.permute.xlu0 %1057
        %1059 = vrot.lane.b32.xlu0 %v789, 1
        %v1060 = vpop.permute.xlu0 %1059
        %v1061 = vsel %vm509, %v1058, %v1060
        %v1062 = vsel %vm509, %v1060, %v1058
        %v1063 = vsel %vm514, %v1062, 0.0
        %v1064 = vsel %vm515, %v1061, 0.0
        %1065 = vset.pattern.permute.xlu0 24
        %1066 = vperm.xlu0 %1065, %v790
        %v1067 = vpop.permute.xlu0 %1066
        %v1069 = vperm.slane %v1063, 0
        %v1070 = vperm.slane %v1064, 0
        %v1071 = vmul.f32 %v1067, %v1069
        %v1072 = vmul.f32 %v1067, %v1070
        %v1073 = vadd.f32 %v1055, %v1071
        %v1074 = vadd.f32 %v1056, %v1072
        %1075 = vset.pattern.permute.xlu0 25
        %1076 = vperm.xlu0 %1075, %v790
        %v1077 = vpop.permute.xlu0 %1076
        %v1079 = vperm.slane %v1063, 1
        %v1080 = vperm.slane %v1064, 1
        %v1081 = vmul.f32 %v1077, %v1079
        %v1082 = vmul.f32 %v1077, %v1080
        %v1083 = vadd.f32 %v1073, %v1081
        %v1084 = vadd.f32 %v1074, %v1082
        %1085 = vset.pattern.permute.xlu0 26
        %1086 = vperm.xlu0 %1085, %v790
        %v1087 = vpop.permute.xlu0 %1086
        %v1089 = vperm.slane %v1063, 2
        %v1090 = vperm.slane %v1064, 2
        %v1091 = vmul.f32 %v1087, %v1089
        %v1092 = vmul.f32 %v1087, %v1090
        %v1093 = vadd.f32 %v1083, %v1091
        %v1094 = vadd.f32 %v1084, %v1092
        %1095 = vset.pattern.permute.xlu0 27
        %1096 = vperm.xlu0 %1095, %v790
        %v1097 = vpop.permute.xlu0 %1096
        %v1099 = vperm.slane %v1063, 3
        %v1100 = vperm.slane %v1064, 3
        %v1101 = vmul.f32 %v1097, %v1099
        %v1102 = vmul.f32 %v1097, %v1100
        %v1103 = vadd.f32 %v1093, %v1101
        %v1104 = vadd.f32 %v1094, %v1102
        %1105 = vset.pattern.permute.xlu0 28
        %1106 = vperm.xlu0 %1105, %v790
        %v1107 = vpop.permute.xlu0 %1106
        %v1109 = vperm.slane %v1063, 4
        %v1110 = vperm.slane %v1064, 4
        %v1111 = vmul.f32 %v1107, %v1109
        %v1112 = vmul.f32 %v1107, %v1110
        %v1113 = vadd.f32 %v1103, %v1111
        %v1114 = vadd.f32 %v1104, %v1112
        %1115 = vset.pattern.permute.xlu0 29
        %1116 = vperm.xlu0 %1115, %v790
        %v1117 = vpop.permute.xlu0 %1116
        %v1119 = vperm.slane %v1063, 5
        %v1120 = vperm.slane %v1064, 5
        %v1121 = vmul.f32 %v1117, %v1119
        %v1122 = vmul.f32 %v1117, %v1120
        %v1123 = vadd.f32 %v1113, %v1121
        %v1124 = vadd.f32 %v1114, %v1122
        %1125 = vset.pattern.permute.xlu0 30
        %1126 = vperm.xlu0 %1125, %v790
        %v1127 = vpop.permute.xlu0 %1126
        %v1129 = vperm.slane %v1063, 6
        %v1130 = vperm.slane %v1064, 6
        %v1131 = vmul.f32 %v1127, %v1129
        %v1132 = vmul.f32 %v1127, %v1130
        %v1133 = vadd.f32 %v1123, %v1131
        %v1134 = vadd.f32 %v1124, %v1132
        %1135 = vset.pattern.permute.xlu0 31
        %1136 = vperm.xlu0 %1135, %v790
        %v1137 = vpop.permute.xlu0 %1136
        %v1139 = vperm.slane %v1063, 7
        %v1140 = vperm.slane %v1064, 7
        %v1141 = vmul.f32 %v1137, %v1139
        %v1142 = vmul.f32 %v1137, %v1140
        %v1143 = vadd.f32 %v1133, %v1141
        %v1144 = vadd.f32 %v1134, %v1142
        %v1145 = vsel %vm550, %v788, 0.0
        %v1146 = vsel %vm551, %v789, 0.0
        %1147 = vset.pattern.permute.xlu0 32
        %1148 = vperm.xlu0 %1147, %v790
        %v1149 = vpop.permute.xlu0 %1148
        %v1151 = vperm.slane %v1145, 0
        %v1152 = vperm.slane %v1146, 0
        %v1153 = vmul.f32 %v1149, %v1151
        %v1154 = vmul.f32 %v1149, %v1152
        %v1155 = vadd.f32 %v1143, %v1153
        %v1156 = vadd.f32 %v1144, %v1154
        %1157 = vset.pattern.permute.xlu0 33
        %1158 = vperm.xlu0 %1157, %v790
        %v1159 = vpop.permute.xlu0 %1158
        %v1161 = vperm.slane %v1145, 1
        %v1162 = vperm.slane %v1146, 1
        %v1163 = vmul.f32 %v1159, %v1161
        %v1164 = vmul.f32 %v1159, %v1162
        %v1165 = vadd.f32 %v1155, %v1163
        %v1166 = vadd.f32 %v1156, %v1164
        %1167 = vset.pattern.permute.xlu0 34
        %1168 = vperm.xlu0 %1167, %v790
        %v1169 = vpop.permute.xlu0 %1168
        %v1171 = vperm.slane %v1145, 2
        %v1172 = vperm.slane %v1146, 2
        %v1173 = vmul.f32 %v1169, %v1171
        %v1174 = vmul.f32 %v1169, %v1172
        %v1175 = vadd.f32 %v1165, %v1173
        %v1176 = vadd.f32 %v1166, %v1174
        %1177 = vset.pattern.permute.xlu0 35
        %1178 = vperm.xlu0 %1177, %v790
        %v1179 = vpop.permute.xlu0 %1178
        %v1181 = vperm.slane %v1145, 3
        %v1182 = vperm.slane %v1146, 3
        %v1183 = vmul.f32 %v1179, %v1181
        %v1184 = vmul.f32 %v1179, %v1182
        %v1185 = vadd.f32 %v1175, %v1183
        %v1186 = vadd.f32 %v1176, %v1184
        %1187 = vset.pattern.permute.xlu0 36
        %1188 = vperm.xlu0 %1187, %v790
        %v1189 = vpop.permute.xlu0 %1188
        %v1191 = vperm.slane %v1145, 4
        %v1192 = vperm.slane %v1146, 4
        %v1193 = vmul.f32 %v1189, %v1191
        %v1194 = vmul.f32 %v1189, %v1192
        %v1195 = vadd.f32 %v1185, %v1193
        %v1196 = vadd.f32 %v1186, %v1194
        %1197 = vset.pattern.permute.xlu0 37
        %1198 = vperm.xlu0 %1197, %v790
        %v1199 = vpop.permute.xlu0 %1198
        %v1201 = vperm.slane %v1145, 5
        %v1202 = vperm.slane %v1146, 5
        %v1203 = vmul.f32 %v1199, %v1201
        %v1204 = vmul.f32 %v1199, %v1202
        %v1205 = vadd.f32 %v1195, %v1203
        %v1206 = vadd.f32 %v1196, %v1204
        %1207 = vset.pattern.permute.xlu0 38
        %1208 = vperm.xlu0 %1207, %v790
        %v1209 = vpop.permute.xlu0 %1208
        %v1211 = vperm.slane %v1145, 6
        %v1212 = vperm.slane %v1146, 6
        %v1213 = vmul.f32 %v1209, %v1211
        %v1214 = vmul.f32 %v1209, %v1212
        %v1215 = vadd.f32 %v1205, %v1213
        %v1216 = vadd.f32 %v1206, %v1214
        %1217 = vset.pattern.permute.xlu0 39
        %1218 = vperm.xlu0 %1217, %v790
        %v1219 = vpop.permute.xlu0 %1218
        %v1221 = vperm.slane %v1145, 7
        %v1222 = vperm.slane %v1146, 7
        %v1223 = vmul.f32 %v1219, %v1221
        %v1224 = vmul.f32 %v1219, %v1222
        %v1225 = vadd.f32 %v1215, %v1223
        %v1226 = vadd.f32 %v1216, %v1224
        %1227 = vrot.lane.b32.xlu0 %v788, 127
        %v1228 = vpop.permute.xlu0 %1227
        %1229 = vrot.lane.b32.xlu0 %v789, 127
        %v1230 = vpop.permute.xlu0 %1229
        %v1231 = vsel %vm598, %v1228, %v1230
        %v1232 = vsel %vm598, %v1230, %v1228
        %v1233 = vsel %vm603, %v1231, 0.0
        %v1234 = vsel %vm604, %v1232, 0.0
        %1235 = vset.pattern.permute.xlu0 40
        %1236 = vperm.xlu0 %1235, %v790
        %v1237 = vpop.permute.xlu0 %1236
        %v1239 = vperm.slane %v1233, 0
        %v1240 = vperm.slane %v1234, 0
        %v1241 = vmul.f32 %v1237, %v1239
        %v1242 = vmul.f32 %v1237, %v1240
        %v1243 = vadd.f32 %v1225, %v1241
        %v1244 = vadd.f32 %v1226, %v1242
        %1245 = vset.pattern.permute.xlu0 41
        %1246 = vperm.xlu0 %1245, %v790
        %v1247 = vpop.permute.xlu0 %1246
        %v1249 = vperm.slane %v1233, 1
        %v1250 = vperm.slane %v1234, 1
        %v1251 = vmul.f32 %v1247, %v1249
        %v1252 = vmul.f32 %v1247, %v1250
        %v1253 = vadd.f32 %v1243, %v1251
        %v1254 = vadd.f32 %v1244, %v1252
        %1255 = vset.pattern.permute.xlu0 42
        %1256 = vperm.xlu0 %1255, %v790
        %v1257 = vpop.permute.xlu0 %1256
        %v1259 = vperm.slane %v1233, 2
        %v1260 = vperm.slane %v1234, 2
        %v1261 = vmul.f32 %v1257, %v1259
        %v1262 = vmul.f32 %v1257, %v1260
        %v1263 = vadd.f32 %v1253, %v1261
        %v1264 = vadd.f32 %v1254, %v1262
        %1265 = vset.pattern.permute.xlu0 43
        %1266 = vperm.xlu0 %1265, %v790
        %v1267 = vpop.permute.xlu0 %1266
        %v1269 = vperm.slane %v1233, 3
        %v1270 = vperm.slane %v1234, 3
        %v1271 = vmul.f32 %v1267, %v1269
        %v1272 = vmul.f32 %v1267, %v1270
        %v1273 = vadd.f32 %v1263, %v1271
        %v1274 = vadd.f32 %v1264, %v1272
        %1275 = vset.pattern.permute.xlu0 44
        %1276 = vperm.xlu0 %1275, %v790
        %v1277 = vpop.permute.xlu0 %1276
        %v1279 = vperm.slane %v1233, 4
        %v1280 = vperm.slane %v1234, 4
        %v1281 = vmul.f32 %v1277, %v1279
        %v1282 = vmul.f32 %v1277, %v1280
        %v1283 = vadd.f32 %v1273, %v1281
        %v1284 = vadd.f32 %v1274, %v1282
        %1285 = vset.pattern.permute.xlu0 45
        %1286 = vperm.xlu0 %1285, %v790
        %v1287 = vpop.permute.xlu0 %1286
        %v1289 = vperm.slane %v1233, 5
        %v1290 = vperm.slane %v1234, 5
        %v1291 = vmul.f32 %v1287, %v1289
        %v1292 = vmul.f32 %v1287, %v1290
        %v1293 = vadd.f32 %v1283, %v1291
        %v1294 = vadd.f32 %v1284, %v1292
        %1295 = vset.pattern.permute.xlu0 46
        %1296 = vperm.xlu0 %1295, %v790
        %v1297 = vpop.permute.xlu0 %1296
        %v1299 = vperm.slane %v1233, 6
        %v1300 = vperm.slane %v1234, 6
        %v1301 = vmul.f32 %v1297, %v1299
        %v1302 = vmul.f32 %v1297, %v1300
        %v1303 = vadd.f32 %v1293, %v1301
        %v1304 = vadd.f32 %v1294, %v1302
        %1305 = vset.pattern.permute.xlu0 47
        %1306 = vperm.xlu0 %1305, %v790
        %v1307 = vpop.permute.xlu0 %1306
        %v1309 = vperm.slane %v1233, 7
        %v1310 = vperm.slane %v1234, 7
        %v1311 = vmul.f32 %v1307, %v1309
        %v1312 = vmul.f32 %v1307, %v1310
        %v1313 = vadd.f32 %v1303, %v1311
        %v1314 = vadd.f32 %v1304, %v1312
        %1315 = vrot.lane.b32.xlu0 %v788, 113
        %v1316 = vpop.permute.xlu0 %1315
        %1317 = vrot.lane.b32.xlu0 %v789, 113
        %v1318 = vpop.permute.xlu0 %1317
        %v1319 = vsel %vm646, %v1316, %v1318
        %v1320 = vsel %vm646, %v1318, %v1316
        %v1321 = vsel %vm651, %v1319, 0.0
        %v1322 = vsel %vm652, %v1320, 0.0
        %1323 = vset.pattern.permute.xlu0 48
        %1324 = vperm.xlu0 %1323, %v790
        %v1325 = vpop.permute.xlu0 %1324
        %v1327 = vperm.slane %v1321, 0
        %v1328 = vperm.slane %v1322, 0
        %v1329 = vmul.f32 %v1325, %v1327
        %v1330 = vmul.f32 %v1325, %v1328
        %v1331 = vadd.f32 %v1313, %v1329
        %v1332 = vadd.f32 %v1314, %v1330
        %1333 = vset.pattern.permute.xlu0 49
        %1334 = vperm.xlu0 %1333, %v790
        %v1335 = vpop.permute.xlu0 %1334
        %v1337 = vperm.slane %v1321, 1
        %v1338 = vperm.slane %v1322, 1
        %v1339 = vmul.f32 %v1335, %v1337
        %v1340 = vmul.f32 %v1335, %v1338
        %v1341 = vadd.f32 %v1331, %v1339
        %v1342 = vadd.f32 %v1332, %v1340
        %1343 = vset.pattern.permute.xlu0 50
        %1344 = vperm.xlu0 %1343, %v790
        %v1345 = vpop.permute.xlu0 %1344
        %v1347 = vperm.slane %v1321, 2
        %v1348 = vperm.slane %v1322, 2
        %v1349 = vmul.f32 %v1345, %v1347
        %v1350 = vmul.f32 %v1345, %v1348
        %v1351 = vadd.f32 %v1341, %v1349
        %v1352 = vadd.f32 %v1342, %v1350
        %1353 = vset.pattern.permute.xlu0 51
        %1354 = vperm.xlu0 %1353, %v790
        %v1355 = vpop.permute.xlu0 %1354
        %v1357 = vperm.slane %v1321, 3
        %v1358 = vperm.slane %v1322, 3
        %v1359 = vmul.f32 %v1355, %v1357
        %v1360 = vmul.f32 %v1355, %v1358
        %v1361 = vadd.f32 %v1351, %v1359
        %v1362 = vadd.f32 %v1352, %v1360
        %1363 = vset.pattern.permute.xlu0 52
        %1364 = vperm.xlu0 %1363, %v790
        %v1365 = vpop.permute.xlu0 %1364
        %v1367 = vperm.slane %v1321, 4
        %v1368 = vperm.slane %v1322, 4
        %v1369 = vmul.f32 %v1365, %v1367
        %v1370 = vmul.f32 %v1365, %v1368
        %v1371 = vadd.f32 %v1361, %v1369
        %v1372 = vadd.f32 %v1362, %v1370
        %1373 = vset.pattern.permute.xlu0 53
        %1374 = vperm.xlu0 %1373, %v790
        %v1375 = vpop.permute.xlu0 %1374
        %v1377 = vperm.slane %v1321, 5
        %v1378 = vperm.slane %v1322, 5
        %v1379 = vmul.f32 %v1375, %v1377
        %v1380 = vmul.f32 %v1375, %v1378
        %v1381 = vadd.f32 %v1371, %v1379
        %v1382 = vadd.f32 %v1372, %v1380
        %1383 = vset.pattern.permute.xlu0 54
        %1384 = vperm.xlu0 %1383, %v790
        %v1385 = vpop.permute.xlu0 %1384
        %v1387 = vperm.slane %v1321, 6
        %v1388 = vperm.slane %v1322, 6
        %v1389 = vmul.f32 %v1385, %v1387
        %v1390 = vmul.f32 %v1385, %v1388
        %v1391 = vadd.f32 %v1381, %v1389
        %v1392 = vadd.f32 %v1382, %v1390
        %1393 = vset.pattern.permute.xlu0 55
        %1394 = vperm.xlu0 %1393, %v790
        %v1395 = vpop.permute.xlu0 %1394
        %v1397 = vperm.slane %v1321, 7
        %v1398 = vperm.slane %v1322, 7
        %v1399 = vmul.f32 %v1395, %v1397
        %v1400 = vmul.f32 %v1395, %v1398
        %v1401 = vadd.f32 %v1391, %v1399
        %v1402 = vadd.f32 %v1392, %v1400
        %1403 = vrot.lane.b32.xlu0 %v788, 112
        %v1404 = vpop.permute.xlu0 %1403
        %1405 = vrot.lane.b32.xlu0 %v789, 112
        %v1406 = vpop.permute.xlu0 %1405
        %v1407 = vsel %vm694, %v1404, %v1406
        %v1408 = vsel %vm694, %v1406, %v1404
        %v1409 = vsel %vm699, %v1407, 0.0
        %v1410 = vsel %vm700, %v1408, 0.0
        %1411 = vset.pattern.permute.xlu0 56
        %1412 = vperm.xlu0 %1411, %v790
        %v1413 = vpop.permute.xlu0 %1412
        %v1415 = vperm.slane %v1409, 0
        %v1416 = vperm.slane %v1410, 0
        %v1417 = vmul.f32 %v1413, %v1415
        %v1418 = vmul.f32 %v1413, %v1416
        %v1419 = vadd.f32 %v1401, %v1417
        %v1420 = vadd.f32 %v1402, %v1418
        %1421 = vset.pattern.permute.xlu0 57
        %1422 = vperm.xlu0 %1421, %v790
        %v1423 = vpop.permute.xlu0 %1422
        %v1425 = vperm.slane %v1409, 1
        %v1426 = vperm.slane %v1410, 1
        %v1427 = vmul.f32 %v1423, %v1425
        %v1428 = vmul.f32 %v1423, %v1426
        %v1429 = vadd.f32 %v1419, %v1427
        %v1430 = vadd.f32 %v1420, %v1428
        %1431 = vset.pattern.permute.xlu0 58
        %1432 = vperm.xlu0 %1431, %v790
        %v1433 = vpop.permute.xlu0 %1432
        %v1435 = vperm.slane %v1409, 2
        %v1436 = vperm.slane %v1410, 2
        %v1437 = vmul.f32 %v1433, %v1435
        %v1438 = vmul.f32 %v1433, %v1436
        %v1439 = vadd.f32 %v1429, %v1437
        %v1440 = vadd.f32 %v1430, %v1438
        %1441 = vset.pattern.permute.xlu0 59
        %1442 = vperm.xlu0 %1441, %v790
        %v1443 = vpop.permute.xlu0 %1442
        %v1445 = vperm.slane %v1409, 3
        %v1446 = vperm.slane %v1410, 3
        %v1447 = vmul.f32 %v1443, %v1445
        %v1448 = vmul.f32 %v1443, %v1446
        %v1449 = vadd.f32 %v1439, %v1447
        %v1450 = vadd.f32 %v1440, %v1448
        %1451 = vset.pattern.permute.xlu0 60
        %1452 = vperm.xlu0 %1451, %v790
        %v1453 = vpop.permute.xlu0 %1452
        %v1455 = vperm.slane %v1409, 4
        %v1456 = vperm.slane %v1410, 4
        %v1457 = vmul.f32 %v1453, %v1455
        %v1458 = vmul.f32 %v1453, %v1456
        %v1459 = vadd.f32 %v1449, %v1457
        %v1460 = vadd.f32 %v1450, %v1458
        %1461 = vset.pattern.permute.xlu0 61
        %1462 = vperm.xlu0 %1461, %v790
        %v1463 = vpop.permute.xlu0 %1462
        %v1465 = vperm.slane %v1409, 5
        %v1466 = vperm.slane %v1410, 5
        %v1467 = vmul.f32 %v1463, %v1465
        %v1468 = vmul.f32 %v1463, %v1466
        %v1469 = vadd.f32 %v1459, %v1467
        %v1470 = vadd.f32 %v1460, %v1468
        %1471 = vset.pattern.permute.xlu0 62
        %1472 = vperm.xlu0 %1471, %v790
        %v1473 = vpop.permute.xlu0 %1472
        %v1475 = vperm.slane %v1409, 6
        %v1476 = vperm.slane %v1410, 6
        %v1477 = vmul.f32 %v1473, %v1475
        %v1478 = vmul.f32 %v1473, %v1476
        %v1479 = vadd.f32 %v1469, %v1477
        %v1480 = vadd.f32 %v1470, %v1478
        %1481 = vset.pattern.permute.xlu0 63
        %1482 = vperm.xlu0 %1481, %v790
        %v1483 = vpop.permute.xlu0 %1482
        %v1485 = vperm.slane %v1409, 7
        %v1486 = vperm.slane %v1410, 7
        %v1487 = vmul.f32 %v1483, %v1485
        %v1488 = vmul.f32 %v1483, %v1486
        %v1489 = vadd.f32 %v1479, %v1487
        %v1490 = vadd.f32 %v1480, %v1488
        %1491 = vrot.lane.b32.xlu0 %v788, 111
        %v1492 = vpop.permute.xlu0 %1491
        %1493 = vrot.lane.b32.xlu0 %v789, 111
        %v1494 = vpop.permute.xlu0 %1493
        %v1495 = vsel %vm742, %v1492, %v1494
        %v1496 = vsel %vm742, %v1494, %v1492
        %v1497 = vsel %vm747, %v1495, 0.0
        %v1498 = vsel %vm748, %v1496, 0.0
        %1499 = vset.pattern.permute.xlu0 64
        %1500 = vperm.xlu0 %1499, %v790
        %v1501 = vpop.permute.xlu0 %1500
        %v1503 = vperm.slane %v1497, 0
        %v1504 = vperm.slane %v1498, 0
        %v1505 = vmul.f32 %v1501, %v1503
        %v1506 = vmul.f32 %v1501, %v1504
        %v1507 = vadd.f32 %v1489, %v1505
        %v1508 = vadd.f32 %v1490, %v1506
        %1509 = vset.pattern.permute.xlu0 65
        %1510 = vperm.xlu0 %1509, %v790
        %v1511 = vpop.permute.xlu0 %1510
        %v1513 = vperm.slane %v1497, 1
        %v1514 = vperm.slane %v1498, 1
        %v1515 = vmul.f32 %v1511, %v1513
        %v1516 = vmul.f32 %v1511, %v1514
        %v1517 = vadd.f32 %v1507, %v1515
        %v1518 = vadd.f32 %v1508, %v1516
        %1519 = vset.pattern.permute.xlu0 66
        %1520 = vperm.xlu0 %1519, %v790
        %v1521 = vpop.permute.xlu0 %1520
        %v1523 = vperm.slane %v1497, 2
        %v1524 = vperm.slane %v1498, 2
        %v1525 = vmul.f32 %v1521, %v1523
        %v1526 = vmul.f32 %v1521, %v1524
        %v1527 = vadd.f32 %v1517, %v1525
        %v1528 = vadd.f32 %v1518, %v1526
        %1529 = vset.pattern.permute.xlu0 67
        %1530 = vperm.xlu0 %1529, %v790
        %v1531 = vpop.permute.xlu0 %1530
        %v1533 = vperm.slane %v1497, 3
        %v1534 = vperm.slane %v1498, 3
        %v1535 = vmul.f32 %v1531, %v1533
        %v1536 = vmul.f32 %v1531, %v1534
        %v1537 = vadd.f32 %v1527, %v1535
        %v1538 = vadd.f32 %v1528, %v1536
        %1539 = vset.pattern.permute.xlu0 68
        %1540 = vperm.xlu0 %1539, %v790
        %v1541 = vpop.permute.xlu0 %1540
        %v1543 = vperm.slane %v1497, 4
        %v1544 = vperm.slane %v1498, 4
        %v1545 = vmul.f32 %v1541, %v1543
        %v1546 = vmul.f32 %v1541, %v1544
        %v1547 = vadd.f32 %v1537, %v1545
        %v1548 = vadd.f32 %v1538, %v1546
        %1549 = vset.pattern.permute.xlu0 69
        %1550 = vperm.xlu0 %1549, %v790
        %v1551 = vpop.permute.xlu0 %1550
        %v1553 = vperm.slane %v1497, 5
        %v1554 = vperm.slane %v1498, 5
        %v1555 = vmul.f32 %v1551, %v1553
        %v1556 = vmul.f32 %v1551, %v1554
        %v1557 = vadd.f32 %v1547, %v1555
        %v1558 = vadd.f32 %v1548, %v1556
        %1559 = vset.pattern.permute.xlu0 70
        %1560 = vperm.xlu0 %1559, %v790
        %v1561 = vpop.permute.xlu0 %1560
        %v1563 = vperm.slane %v1497, 6
        %v1564 = vperm.slane %v1498, 6
        %v1565 = vmul.f32 %v1561, %v1563
        %v1566 = vmul.f32 %v1561, %v1564
        %v1567 = vadd.f32 %v1557, %v1565
        %v1568 = vadd.f32 %v1558, %v1566
        %1569 = vset.pattern.permute.xlu0 71
        %1570 = vperm.xlu0 %1569, %v790
        %v1571 = vpop.permute.xlu0 %1570
        %v1573 = vperm.slane %v1497, 7
        %v1574 = vperm.slane %v1498, 7
        %v1575 = vmul.f32 %v1571, %v1573
        %v1576 = vmul.f32 %v1571, %v1574
        %v1577 = vadd.f32 %v1567, %v1575
        %v1578 = vadd.f32 %v1568, %v1576
        %1580 = vset.pattern.permute.xlu0 0
        %1581 = vperm.xlu0 %1580, %v791
        %v1582 = vpop.permute.xlu0 %1581
        %v1584 = vadd.f32 %v1577, %v1582
        %v1585 = vadd.f32 %v1578, %v1582
        %v1586 = vmax.f32 %v1584, 0.0
        %v1587 = vmax.f32 %v1585, 0.0
        %v1588 = vld [vmem:[%s5] sm:$0x1]
        %v1589 = vld [vmem:[#allocation2] sm:$0x1]
        %1590 = vrot.lane.b32.xlu0 %v1586, 17
        %v1591 = vpop.permute.xlu0 %1590
        %1592 = vrot.lane.b32.xlu0 %v1587, 17
        %v1593 = vpop.permute.xlu0 %1592
        %v1594 = vsel %vm364, %v1591, %v1593
        %v1595 = vsel %vm364, %v1593, %v1591
        %v1596 = vsel %vm369, %v1595, 0.0
        %v1597 = vsel %vm370, %v1594, 0.0
        %1599 = vset.pattern.permute.xlu0 0
        %1600 = vperm.xlu0 %1599, %v1588
        %v1601 = vpop.permute.xlu0 %1600
        %v1603 = vperm.slane %v1601, 0
        %v1604 = vmul.f32 %v1603, %v1596
        %v1605 = vmul.f32 %v1603, %v1597
        %v1606 = vadd.f32 %v1604, 0.0
        %v1607 = vadd.f32 %v1605, 0.0
        %1608 = vset.pattern.permute.xlu0 1
        %1609 = vperm.xlu0 %1608, %v1588
        %v1610 = vpop.permute.xlu0 %1609
        %v1612 = vperm.slane %v1610, 0
        %v1613 = vmul.f32 %v1612, %v1596
        %v1614 = vmul.f32 %v1612, %v1597
        %v1617 = vrot.slane %v1613, 1
        %v1618 = vrot.slane %v1614, 1
        %v1621 = vadd.f32 %v1606, %v1617
        %v1622 = vadd.f32 %v1607, %v1618
        %1623 = vset.pattern.permute.xlu0 2
        %1624 = vperm.xlu0 %1623, %v1588
        %v1625 = vpop.permute.xlu0 %1624
        %v1627 = vperm.slane %v1625, 0
        %v1628 = vmul.f32 %v1627, %v1596
        %v1629 = vmul.f32 %v1627, %v1597
        %v1632 = vrot.slane %v1628, 2
        %v1633 = vrot.slane %v1629, 2
        %v1636 = vadd.f32 %v1621, %v1632
        %v1637 = vadd.f32 %v1622, %v1633
        %1638 = vset.pattern.permute.xlu0 3
        %1639 = vperm.xlu0 %1638, %v1588
        %v1640 = vpop.permute.xlu0 %1639
        %v1642 = vperm.slane %v1640, 0
        %v1643 = vmul.f32 %v1642, %v1596
        %v1644 = vmul.f32 %v1642, %v1597
        %v1647 = vrot.slane %v1643, 3
        %v1648 = vrot.slane %v1644, 3
        %v1651 = vadd.f32 %v1636, %v1647
        %v1652 = vadd.f32 %v1637, %v1648
        %1653 = vset.pattern.permute.xlu0 4
        %1654 = vperm.xlu0 %1653, %v1588
        %v1655 = vpop.permute.xlu0 %1654
        %v1657 = vperm.slane %v1655, 0
        %v1658 = vmul.f32 %v1657, %v1596
        %v1659 = vmul.f32 %v1657, %v1597
        %v1662 = vrot.slane %v1658, 4
        %v1663 = vrot.slane %v1659, 4
        %v1666 = vadd.f32 %v1651, %v1662
        %v1667 = vadd.f32 %v1652, %v1663
        %1668 = vset.pattern.permute.xlu0 5
        %1669 = vperm.xlu0 %1668, %v1588
        %v1670 = vpop.permute.xlu0 %1669
        %v1672 = vperm.slane %v1670, 0
        %v1673 = vmul.f32 %v1672, %v1596
        %v1674 = vmul.f32 %v1672, %v1597
        %v1677 = vrot.slane %v1673, 5
        %v1678 = vrot.slane %v1674, 5
        %v1681 = vadd.f32 %v1666, %v1677
        %v1682 = vadd.f32 %v1667, %v1678
        %1683 = vset.pattern.permute.xlu0 6
        %1684 = vperm.xlu0 %1683, %v1588
        %v1685 = vpop.permute.xlu0 %1684
        %v1687 = vperm.slane %v1685, 0
        %v1688 = vmul.f32 %v1687, %v1596
        %v1689 = vmul.f32 %v1687, %v1597
        %v1692 = vrot.slane %v1688, 6
        %v1693 = vrot.slane %v1689, 6
        %v1696 = vadd.f32 %v1681, %v1692
        %v1697 = vadd.f32 %v1682, %v1693
        %1698 = vset.pattern.permute.xlu0 7
        %1699 = vperm.xlu0 %1698, %v1588
        %v1700 = vpop.permute.xlu0 %1699
        %v1702 = vperm.slane %v1700, 0
        %v1703 = vmul.f32 %v1702, %v1596
        %v1704 = vmul.f32 %v1702, %v1597
        %v1707 = vrot.slane %v1703, 7
        %v1708 = vrot.slane %v1704, 7
        %v1711 = vadd.f32 %v1696, %v1707
        %v1712 = vadd.f32 %v1697, %v1708
        %1713 = vrot.lane.b32.xlu0 %v1586, 16
        %v1714 = vpop.permute.xlu0 %1713
        %1715 = vrot.lane.b32.xlu0 %v1587, 16
        %v1716 = vpop.permute.xlu0 %1715
        %v1717 = vsel %vm413, %v1714, %v1716
        %v1718 = vsel %vm413, %v1716, %v1714
        %v1719 = vsel %vm418, %v1718, 0.0
        %v1720 = vsel %vm419, %v1717, 0.0
        %1721 = vset.pattern.permute.xlu0 8
        %1722 = vperm.xlu0 %1721, %v1588
        %v1723 = vpop.permute.xlu0 %1722
        %v1725 = vperm.slane %v1723, 0
        %v1726 = vmul.f32 %v1725, %v1719
        %v1727 = vmul.f32 %v1725, %v1720
        %v1728 = vadd.f32 %v1711, %v1726
        %v1729 = vadd.f32 %v1712, %v1727
        %1730 = vset.pattern.permute.xlu0 9
        %1731 = vperm.xlu0 %1730, %v1588
        %v1732 = vpop.permute.xlu0 %1731
        %v1734 = vperm.slane %v1732, 0
        %v1735 = vmul.f32 %v1734, %v1719
        %v1736 = vmul.f32 %v1734, %v1720
        %v1739 = vrot.slane %v1735, 1
        %v1740 = vrot.slane %v1736, 1
        %v1743 = vadd.f32 %v1728, %v1739
        %v1744 = vadd.f32 %v1729, %v1740
        %1745 = vset.pattern.permute.xlu0 10
        %1746 = vperm.xlu0 %1745, %v1588
        %v1747 = vpop.permute.xlu0 %1746
        %v1749 = vperm.slane %v1747, 0
        %v1750 = vmul.f32 %v1749, %v1719
        %v1751 = vmul.f32 %v1749, %v1720
        %v1754 = vrot.slane %v1750, 2
        %v1755 = vrot.slane %v1751, 2
        %v1758 = vadd.f32 %v1743, %v1754
        %v1759 = vadd.f32 %v1744, %v1755
        %1760 = vset.pattern.permute.xlu0 11
        %1761 = vperm.xlu0 %1760, %v1588
        %v1762 = vpop.permute.xlu0 %1761
        %v1764 = vperm.slane %v1762, 0
        %v1765 = vmul.f32 %v1764, %v1719
        %v1766 = vmul.f32 %v1764, %v1720
        %v1769 = vrot.slane %v1765, 3
        %v1770 = vrot.slane %v1766, 3
        %v1773 = vadd.f32 %v1758, %v1769
        %v1774 = vadd.f32 %v1759, %v1770
        %1775 = vset.pattern.permute.xlu0 12
        %1776 = vperm.xlu0 %1775, %v1588
        %v1777 = vpop.permute.xlu0 %1776
        %v1779 = vperm.slane %v1777, 0
        %v1780 = vmul.f32 %v1779, %v1719
        %v1781 = vmul.f32 %v1779, %v1720
        %v1784 = vrot.slane %v1780, 4
        %v1785 = vrot.slane %v1781, 4
        %v1788 = vadd.f32 %v1773, %v1784
        %v1789 = vadd.f32 %v1774, %v1785
        %1790 = vset.pattern.permute.xlu0 13
        %1791 = vperm.xlu0 %1790, %v1588
        %v1792 = vpop.permute.xlu0 %1791
        %v1794 = vperm.slane %v1792, 0
        %v1795 = vmul.f32 %v1794, %v1719
        %v1796 = vmul.f32 %v1794, %v1720
        %v1799 = vrot.slane %v1795, 5
        %v1800 = vrot.slane %v1796, 5
        %v1803 = vadd.f32 %v1788, %v1799
        %v1804 = vadd.f32 %v1789, %v1800
        %1805 = vset.pattern.permute.xlu0 14
        %1806 = vperm.xlu0 %1805, %v1588
        %v1807 = vpop.permute.xlu0 %1806
        %v1809 = vperm.slane %v1807, 0
        %v1810 = vmul.f32 %v1809, %v1719
        %v1811 = vmul.f32 %v1809, %v1720
        %v1814 = vrot.slane %v1810, 6
        %v1815 = vrot.slane %v1811, 6
        %v1818 = vadd.f32 %v1803, %v1814
        %v1819 = vadd.f32 %v1804, %v1815
        %1820 = vset.pattern.permute.xlu0 15
        %1821 = vperm.xlu0 %1820, %v1588
        %v1822 = vpop.permute.xlu0 %1821
        %v1824 = vperm.slane %v1822, 0
        %v1825 = vmul.f32 %v1824, %v1719
        %v1826 = vmul.f32 %v1824, %v1720
        %v1829 = vrot.slane %v1825, 7
        %v1830 = vrot.slane %v1826, 7
        %v1833 = vadd.f32 %v1818, %v1829
        %v1834 = vadd.f32 %v1819, %v1830
        %1835 = vrot.lane.b32.xlu0 %v1586, 15
        %v1836 = vpop.permute.xlu0 %1835
        %1837 = vrot.lane.b32.xlu0 %v1587, 15
        %v1838 = vpop.permute.xlu0 %1837
        %v1839 = vsel %vm461, %v1836, %v1838
        %v1840 = vsel %vm461, %v1838, %v1836
        %v1841 = vsel %vm466, %v1840, 0.0
        %v1842 = vsel %vm467, %v1839, 0.0
        %1843 = vset.pattern.permute.xlu0 16
        %1844 = vperm.xlu0 %1843, %v1588
        %v1845 = vpop.permute.xlu0 %1844
        %v1847 = vperm.slane %v1845, 0
        %v1848 = vmul.f32 %v1847, %v1841
        %v1849 = vmul.f32 %v1847, %v1842
        %v1850 = vadd.f32 %v1833, %v1848
        %v1851 = vadd.f32 %v1834, %v1849
        %1852 = vset.pattern.permute.xlu0 17
        %1853 = vperm.xlu0 %1852, %v1588
        %v1854 = vpop.permute.xlu0 %1853
        %v1856 = vperm.slane %v1854, 0
        %v1857 = vmul.f32 %v1856, %v1841
        %v1858 = vmul.f32 %v1856, %v1842
        %v1861 = vrot.slane %v1857, 1
        %v1862 = vrot.slane %v1858, 1
        %v1865 = vadd.f32 %v1850, %v1861
        %v1866 = vadd.f32 %v1851, %v1862
        %1867 = vset.pattern.permute.xlu0 18
        %1868 = vperm.xlu0 %1867, %v1588
        %v1869 = vpop.permute.xlu0 %1868
        %v1871 = vperm.slane %v1869, 0
        %v1872 = vmul.f32 %v1871, %v1841
        %v1873 = vmul.f32 %v1871, %v1842
        %v1876 = vrot.slane %v1872, 2
        %v1877 = vrot.slane %v1873, 2
        %v1880 = vadd.f32 %v1865, %v1876
        %v1881 = vadd.f32 %v1866, %v1877
        %1882 = vset.pattern.permute.xlu0 19
        %1883 = vperm.xlu0 %1882, %v1588
        %v1884 = vpop.permute.xlu0 %1883
        %v1886 = vperm.slane %v1884, 0
        %v1887 = vmul.f32 %v1886, %v1841
        %v1888 = vmul.f32 %v1886, %v1842
        %v1891 = vrot.slane %v1887, 3
        %v1892 = vrot.slane %v1888, 3
        %v1895 = vadd.f32 %v1880, %v1891
        %v1896 = vadd.f32 %v1881, %v1892
        %1897 = vset.pattern.permute.xlu0 20
        %1898 = vperm.xlu0 %1897, %v1588
        %v1899 = vpop.permute.xlu0 %1898
        %v1901 = vperm.slane %v1899, 0
        %v1902 = vmul.f32 %v1901, %v1841
        %v1903 = vmul.f32 %v1901, %v1842
        %v1906 = vrot.slane %v1902, 4
        %v1907 = vrot.slane %v1903, 4
        %v1910 = vadd.f32 %v1895, %v1906
        %v1911 = vadd.f32 %v1896, %v1907
        %1912 = vset.pattern.permute.xlu0 21
        %1913 = vperm.xlu0 %1912, %v1588
        %v1914 = vpop.permute.xlu0 %1913
        %v1916 = vperm.slane %v1914, 0
        %v1917 = vmul.f32 %v1916, %v1841
        %v1918 = vmul.f32 %v1916, %v1842
        %v1921 = vrot.slane %v1917, 5
        %v1922 = vrot.slane %v1918, 5
        %v1925 = vadd.f32 %v1910, %v1921
        %v1926 = vadd.f32 %v1911, %v1922
        %1927 = vset.pattern.permute.xlu0 22
        %1928 = vperm.xlu0 %1927, %v1588
        %v1929 = vpop.permute.xlu0 %1928
        %v1931 = vperm.slane %v1929, 0
        %v1932 = vmul.f32 %v1931, %v1841
        %v1933 = vmul.f32 %v1931, %v1842
        %v1936 = vrot.slane %v1932, 6
        %v1937 = vrot.slane %v1933, 6
        %v1940 = vadd.f32 %v1925, %v1936
        %v1941 = vadd.f32 %v1926, %v1937
        %1942 = vset.pattern.permute.xlu0 23
        %1943 = vperm.xlu0 %1942, %v1588
        %v1944 = vpop.permute.xlu0 %1943
        %v1946 = vperm.slane %v1944, 0
        %v1947 = vmul.f32 %v1946, %v1841
        %v1948 = vmul.f32 %v1946, %v1842
        %v1951 = vrot.slane %v1947, 7
        %v1952 = vrot.slane %v1948, 7
        %v1955 = vadd.f32 %v1940, %v1951
        %v1956 = vadd.f32 %v1941, %v1952
        %1957 = vrot.lane.b32.xlu0 %v1586, 1
        %v1958 = vpop.permute.xlu0 %1957
        %1959 = vrot.lane.b32.xlu0 %v1587, 1
        %v1960 = vpop.permute.xlu0 %1959
        %v1961 = vsel %vm509, %v1958, %v1960
        %v1962 = vsel %vm509, %v1960, %v1958
        %v1963 = vsel %vm514, %v1962, 0.0
        %v1964 = vsel %vm515, %v1961, 0.0
        %1965 = vset.pattern.permute.xlu0 24
        %1966 = vperm.xlu0 %1965, %v1588
        %v1967 = vpop.permute.xlu0 %1966
        %v1969 = vperm.slane %v1967, 0
        %v1970 = vmul.f32 %v1969, %v1963
        %v1971 = vmul.f32 %v1969, %v1964
        %v1972 = vadd.f32 %v1955, %v1970
        %v1973 = vadd.f32 %v1956, %v1971
        %1974 = vset.pattern.permute.xlu0 25
        %1975 = vperm.xlu0 %1974, %v1588
        %v1976 = vpop.permute.xlu0 %1975
        %v1978 = vperm.slane %v1976, 0
        %v1979 = vmul.f32 %v1978, %v1963
        %v1980 = vmul.f32 %v1978, %v1964
        %v1983 = vrot.slane %v1979, 1
        %v1984 = vrot.slane %v1980, 1
        %v1987 = vadd.f32 %v1972, %v1983
        %v1988 = vadd.f32 %v1973, %v1984
        %1989 = vset.pattern.permute.xlu0 26
        %1990 = vperm.xlu0 %1989, %v1588
        %v1991 = vpop.permute.xlu0 %1990
        %v1993 = vperm.slane %v1991, 0
        %v1994 = vmul.f32 %v1993, %v1963
        %v1995 = vmul.f32 %v1993, %v1964
        %v1998 = vrot.slane %v1994, 2
        %v1999 = vrot.slane %v1995, 2
        %v2002 = vadd.f32 %v1987, %v1998
        %v2003 = vadd.f32 %v1988, %v1999
        %2004 = vset.pattern.permute.xlu0 27
        %2005 = vperm.xlu0 %2004, %v1588
        %v2006 = vpop.permute.xlu0 %2005
        %v2008 = vperm.slane %v2006, 0
        %v2009 = vmul.f32 %v2008, %v1963
        %v2010 = vmul.f32 %v2008, %v1964
        %v2013 = vrot.slane %v2009, 3
        %v2014 = vrot.slane %v2010, 3
        %v2017 = vadd.f32 %v2002, %v2013
        %v2018 = vadd.f32 %v2003, %v2014
        %2019 = vset.pattern.permute.xlu0 28
        %2020 = vperm.xlu0 %2019, %v1588
        %v2021 = vpop.permute.xlu0 %2020
        %v2023 = vperm.slane %v2021, 0
        %v2024 = vmul.f32 %v2023, %v1963
        %v2025 = vmul.f32 %v2023, %v1964
        %v2028 = vrot.slane %v2024, 4
        %v2029 = vrot.slane %v2025, 4
        %v2032 = vadd.f32 %v2017, %v2028
        %v2033 = vadd.f32 %v2018, %v2029
        %2034 = vset.pattern.permute.xlu0 29
        %2035 = vperm.xlu0 %2034, %v1588
        %v2036 = vpop.permute.xlu0 %2035
        %v2038 = vperm.slane %v2036, 0
        %v2039 = vmul.f32 %v2038, %v1963
        %v2040 = vmul.f32 %v2038, %v1964
        %v2043 = vrot.slane %v2039, 5
        %v2044 = vrot.slane %v2040, 5
        %v2047 = vadd.f32 %v2032, %v2043
        %v2048 = vadd.f32 %v2033, %v2044
        %2049 = vset.pattern.permute.xlu0 30
        %2050 = vperm.xlu0 %2049, %v1588
        %v2051 = vpop.permute.xlu0 %2050
        %v2053 = vperm.slane %v2051, 0
        %v2054 = vmul.f32 %v2053, %v1963
        %v2055 = vmul.f32 %v2053, %v1964
        %v2058 = vrot.slane %v2054, 6
        %v2059 = vrot.slane %v2055, 6
        %v2062 = vadd.f32 %v2047, %v2058
        %v2063 = vadd.f32 %v2048, %v2059
        %2064 = vset.pattern.permute.xlu0 31
        %2065 = vperm.xlu0 %2064, %v1588
        %v2066 = vpop.permute.xlu0 %2065
        %v2068 = vperm.slane %v2066, 0
        %v2069 = vmul.f32 %v2068, %v1963
        %v2070 = vmul.f32 %v2068, %v1964
        %v2073 = vrot.slane %v2069, 7
        %v2074 = vrot.slane %v2070, 7
        %v2077 = vadd.f32 %v2062, %v2073
        %v2078 = vadd.f32 %v2063, %v2074
        %v2079 = vsel %vm550, %v1586, 0.0
        %v2080 = vsel %vm551, %v1587, 0.0
        %2081 = vset.pattern.permute.xlu0 32
        %2082 = vperm.xlu0 %2081, %v1588
        %v2083 = vpop.permute.xlu0 %2082
        %v2085 = vperm.slane %v2083, 0
        %v2086 = vmul.f32 %v2085, %v2079
        %v2087 = vmul.f32 %v2085, %v2080
        %v2088 = vadd.f32 %v2077, %v2086
        %v2089 = vadd.f32 %v2078, %v2087
        %2090 = vset.pattern.permute.xlu0 33
        %2091 = vperm.xlu0 %2090, %v1588
        %v2092 = vpop.permute.xlu0 %2091
        %v2094 = vperm.slane %v2092, 0
        %v2095 = vmul.f32 %v2094, %v2079
        %v2096 = vmul.f32 %v2094, %v2080
        %v2099 = vrot.slane %v2095, 1
        %v2100 = vrot.slane %v2096, 1
        %v2103 = vadd.f32 %v2088, %v2099
        %v2104 = vadd.f32 %v2089, %v2100
        %2105 = vset.pattern.permute.xlu0 34
        %2106 = vperm.xlu0 %2105, %v1588
        %v2107 = vpop.permute.xlu0 %2106
        %v2109 = vperm.slane %v2107, 0
        %v2110 = vmul.f32 %v2109, %v2079
        %v2111 = vmul.f32 %v2109, %v2080
        %v2114 = vrot.slane %v2110, 2
        %v2115 = vrot.slane %v2111, 2
        %v2118 = vadd.f32 %v2103, %v2114
        %v2119 = vadd.f32 %v2104, %v2115
        %2120 = vset.pattern.permute.xlu0 35
        %2121 = vperm.xlu0 %2120, %v1588
        %v2122 = vpop.permute.xlu0 %2121
        %v2124 = vperm.slane %v2122, 0
        %v2125 = vmul.f32 %v2124, %v2079
        %v2126 = vmul.f32 %v2124, %v2080
        %v2129 = vrot.slane %v2125, 3
        %v2130 = vrot.slane %v2126, 3
        %v2133 = vadd.f32 %v2118, %v2129
        %v2134 = vadd.f32 %v2119, %v2130
        %2135 = vset.pattern.permute.xlu0 36
        %2136 = vperm.xlu0 %2135, %v1588
        %v2137 = vpop.permute.xlu0 %2136
        %v2139 = vperm.slane %v2137, 0
        %v2140 = vmul.f32 %v2139, %v2079
        %v2141 = vmul.f32 %v2139, %v2080
        %v2144 = vrot.slane %v2140, 4
        %v2145 = vrot.slane %v2141, 4
        %v2148 = vadd.f32 %v2133, %v2144
        %v2149 = vadd.f32 %v2134, %v2145
        %2150 = vset.pattern.permute.xlu0 37
        %2151 = vperm.xlu0 %2150, %v1588
        %v2152 = vpop.permute.xlu0 %2151
        %v2154 = vperm.slane %v2152, 0
        %v2155 = vmul.f32 %v2154, %v2079
        %v2156 = vmul.f32 %v2154, %v2080
        %v2159 = vrot.slane %v2155, 5
        %v2160 = vrot.slane %v2156, 5
        %v2163 = vadd.f32 %v2148, %v2159
        %v2164 = vadd.f32 %v2149, %v2160
        %2165 = vset.pattern.permute.xlu0 38
        %2166 = vperm.xlu0 %2165, %v1588
        %v2167 = vpop.permute.xlu0 %2166
        %v2169 = vperm.slane %v2167, 0
        %v2170 = vmul.f32 %v2169, %v2079
        %v2171 = vmul.f32 %v2169, %v2080
        %v2174 = vrot.slane %v2170, 6
        %v2175 = vrot.slane %v2171, 6
        %v2178 = vadd.f32 %v2163, %v2174
        %v2179 = vadd.f32 %v2164, %v2175
        %2180 = vset.pattern.permute.xlu0 39
        %2181 = vperm.xlu0 %2180, %v1588
        %v2182 = vpop.permute.xlu0 %2181
        %v2184 = vperm.slane %v2182, 0
        %v2185 = vmul.f32 %v2184, %v2079
        %v2186 = vmul.f32 %v2184, %v2080
        %v2189 = vrot.slane %v2185, 7
        %v2190 = vrot.slane %v2186, 7
        %v2193 = vadd.f32 %v2178, %v2189
        %v2194 = vadd.f32 %v2179, %v2190
        %2195 = vrot.lane.b32.xlu0 %v1586, 127
        %v2196 = vpop.permute.xlu0 %2195
        %2197 = vrot.lane.b32.xlu0 %v1587, 127
        %v2198 = vpop.permute.xlu0 %2197
        %v2199 = vsel %vm598, %v2196, %v2198
        %v2200 = vsel %vm598, %v2198, %v2196
        %v2201 = vsel %vm603, %v2199, 0.0
        %v2202 = vsel %vm604, %v2200, 0.0
        %2203 = vset.pattern.permute.xlu0 40
        %2204 = vperm.xlu0 %2203, %v1588
        %v2205 = vpop.permute.xlu0 %2204
        %v2207 = vperm.slane %v2205, 0
        %v2208 = vmul.f32 %v2207, %v2201
        %v2209 = vmul.f32 %v2207, %v2202
        %v2210 = vadd.f32 %v2193, %v2208
        %v2211 = vadd.f32 %v2194, %v2209
        %2212 = vset.pattern.permute.xlu0 41
        %2213 = vperm.xlu0 %2212, %v1588
        %v2214 = vpop.permute.xlu0 %2213
        %v2216 = vperm.slane %v2214, 0
        %v2217 = vmul.f32 %v2216, %v2201
        %v2218 = vmul.f32 %v2216, %v2202
        %v2221 = vrot.slane %v2217, 1
        %v2222 = vrot.slane %v2218, 1
        %v2225 = vadd.f32 %v2210, %v2221
        %v2226 = vadd.f32 %v2211, %v2222
        %2227 = vset.pattern.permute.xlu0 42
        %2228 = vperm.xlu0 %2227, %v1588
        %v2229 = vpop.permute.xlu0 %2228
        %v2231 = vperm.slane %v2229, 0
        %v2232 = vmul.f32 %v2231, %v2201
        %v2233 = vmul.f32 %v2231, %v2202
        %v2236 = vrot.slane %v2232, 2
        %v2237 = vrot.slane %v2233, 2
        %v2240 = vadd.f32 %v2225, %v2236
        %v2241 = vadd.f32 %v2226, %v2237
        %2242 = vset.pattern.permute.xlu0 43
        %2243 = vperm.xlu0 %2242, %v1588
        %v2244 = vpop.permute.xlu0 %2243
        %v2246 = vperm.slane %v2244, 0
        %v2247 = vmul.f32 %v2246, %v2201
        %v2248 = vmul.f32 %v2246, %v2202
        %v2251 = vrot.slane %v2247, 3
        %v2252 = vrot.slane %v2248, 3
        %v2255 = vadd.f32 %v2240, %v2251
        %v2256 = vadd.f32 %v2241, %v2252
        %2257 = vset.pattern.permute.xlu0 44
        %2258 = vperm.xlu0 %2257, %v1588
        %v2259 = vpop.permute.xlu0 %2258
        %v2261 = vperm.slane %v2259, 0
        %v2262 = vmul.f32 %v2261, %v2201
        %v2263 = vmul.f32 %v2261, %v2202
        %v2266 = vrot.slane %v2262, 4
        %v2267 = vrot.slane %v2263, 4
        %v2270 = vadd.f32 %v2255, %v2266
        %v2271 = vadd.f32 %v2256, %v2267
        %2272 = vset.pattern.permute.xlu0 45
        %2273 = vperm.xlu0 %2272, %v1588
        %v2274 = vpop.permute.xlu0 %2273
        %v2276 = vperm.slane %v2274, 0
        %v2277 = vmul.f32 %v2276, %v2201
        %v2278 = vmul.f32 %v2276, %v2202
        %v2281 = vrot.slane %v2277, 5
        %v2282 = vrot.slane %v2278, 5
        %v2285 = vadd.f32 %v2270, %v2281
        %v2286 = vadd.f32 %v2271, %v2282
        %2287 = vset.pattern.permute.xlu0 46
        %2288 = vperm.xlu0 %2287, %v1588
        %v2289 = vpop.permute.xlu0 %2288
        %v2291 = vperm.slane %v2289, 0
        %v2292 = vmul.f32 %v2291, %v2201
        %v2293 = vmul.f32 %v2291, %v2202
        %v2296 = vrot.slane %v2292, 6
        %v2297 = vrot.slane %v2293, 6
        %v2300 = vadd.f32 %v2285, %v2296
        %v2301 = vadd.f32 %v2286, %v2297
        %2302 = vset.pattern.permute.xlu0 47
        %2303 = vperm.xlu0 %2302, %v1588
        %v2304 = vpop.permute.xlu0 %2303
        %v2306 = vperm.slane %v2304, 0
        %v2307 = vmul.f32 %v2306, %v2201
        %v2308 = vmul.f32 %v2306, %v2202
        %v2311 = vrot.slane %v2307, 7
        %v2312 = vrot.slane %v2308, 7
        %v2315 = vadd.f32 %v2300, %v2311
        %v2316 = vadd.f32 %v2301, %v2312
        %2317 = vrot.lane.b32.xlu0 %v1586, 113
        %v2318 = vpop.permute.xlu0 %2317
        %2319 = vrot.lane.b32.xlu0 %v1587, 113
        %v2320 = vpop.permute.xlu0 %2319
        %v2321 = vsel %vm646, %v2318, %v2320
        %v2322 = vsel %vm646, %v2320, %v2318
        %v2323 = vsel %vm651, %v2321, 0.0
        %v2324 = vsel %vm652, %v2322, 0.0
        %2325 = vset.pattern.permute.xlu0 48
        %2326 = vperm.xlu0 %2325, %v1588
        %v2327 = vpop.permute.xlu0 %2326
        %v2329 = vperm.slane %v2327, 0
        %v2330 = vmul.f32 %v2329, %v2323
        %v2331 = vmul.f32 %v2329, %v2324
        %v2332 = vadd.f32 %v2315, %v2330
        %v2333 = vadd.f32 %v2316, %v2331
        %2334 = vset.pattern.permute.xlu0 49
        %2335 = vperm.xlu0 %2334, %v1588
        %v2336 = vpop.permute.xlu0 %2335
        %v2338 = vperm.slane %v2336, 0
        %v2339 = vmul.f32 %v2338, %v2323
        %v2340 = vmul.f32 %v2338, %v2324
        %v2343 = vrot.slane %v2339, 1
        %v2344 = vrot.slane %v2340, 1
        %v2347 = vadd.f32 %v2332, %v2343
        %v2348 = vadd.f32 %v2333, %v2344
        %2349 = vset.pattern.permute.xlu0 50
        %2350 = vperm.xlu0 %2349, %v1588
        %v2351 = vpop.permute.xlu0 %2350
        %v2353 = vperm.slane %v2351, 0
        %v2354 = vmul.f32 %v2353, %v2323
        %v2355 = vmul.f32 %v2353, %v2324
        %v2358 = vrot.slane %v2354, 2
        %v2359 = vrot.slane %v2355, 2
        %v2362 = vadd.f32 %v2347, %v2358
        %v2363 = vadd.f32 %v2348, %v2359
        %2364 = vset.pattern.permute.xlu0 51
        %2365 = vperm.xlu0 %2364, %v1588
        %v2366 = vpop.permute.xlu0 %2365
        %v2368 = vperm.slane %v2366, 0
        %v2369 = vmul.f32 %v2368, %v2323
        %v2370 = vmul.f32 %v2368, %v2324
        %v2373 = vrot.slane %v2369, 3
        %v2374 = vrot.slane %v2370, 3
        %v2377 = vadd.f32 %v2362, %v2373
        %v2378 = vadd.f32 %v2363, %v2374
        %2379 = vset.pattern.permute.xlu0 52
        %2380 = vperm.xlu0 %2379, %v1588
        %v2381 = vpop.permute.xlu0 %2380
        %v2383 = vperm.slane %v2381, 0
        %v2384 = vmul.f32 %v2383, %v2323
        %v2385 = vmul.f32 %v2383, %v2324
        %v2388 = vrot.slane %v2384, 4
        %v2389 = vrot.slane %v2385, 4
        %v2392 = vadd.f32 %v2377, %v2388
        %v2393 = vadd.f32 %v2378, %v2389
        %2394 = vset.pattern.permute.xlu0 53
        %2395 = vperm.xlu0 %2394, %v1588
        %v2396 = vpop.permute.xlu0 %2395
        %v2398 = vperm.slane %v2396, 0
        %v2399 = vmul.f32 %v2398, %v2323
        %v2400 = vmul.f32 %v2398, %v2324
        %v2403 = vrot.slane %v2399, 5
        %v2404 = vrot.slane %v2400, 5
        %v2407 = vadd.f32 %v2392, %v2403
        %v2408 = vadd.f32 %v2393, %v2404
        %2409 = vset.pattern.permute.xlu0 54
        %2410 = vperm.xlu0 %2409, %v1588
        %v2411 = vpop.permute.xlu0 %2410
        %v2413 = vperm.slane %v2411, 0
        %v2414 = vmul.f32 %v2413, %v2323
        %v2415 = vmul.f32 %v2413, %v2324
        %v2418 = vrot.slane %v2414, 6
        %v2419 = vrot.slane %v2415, 6
        %v2422 = vadd.f32 %v2407, %v2418
        %v2423 = vadd.f32 %v2408, %v2419
        %2424 = vset.pattern.permute.xlu0 55
        %2425 = vperm.xlu0 %2424, %v1588
        %v2426 = vpop.permute.xlu0 %2425
        %v2428 = vperm.slane %v2426, 0
        %v2429 = vmul.f32 %v2428, %v2323
        %v2430 = vmul.f32 %v2428, %v2324
        %v2433 = vrot.slane %v2429, 7
        %v2434 = vrot.slane %v2430, 7
        %v2437 = vadd.f32 %v2422, %v2433
        %v2438 = vadd.f32 %v2423, %v2434
        %2439 = vrot.lane.b32.xlu0 %v1586, 112
        %v2440 = vpop.permute.xlu0 %2439
        %2441 = vrot.lane.b32.xlu0 %v1587, 112
        %v2442 = vpop.permute.xlu0 %2441
        %v2443 = vsel %vm694, %v2440, %v2442
        %v2444 = vsel %vm694, %v2442, %v2440
        %v2445 = vsel %vm699, %v2443, 0.0
        %v2446 = vsel %vm700, %v2444, 0.0
        %2447 = vset.pattern.permute.xlu0 56
        %2448 = vperm.xlu0 %2447, %v1588
        %v2449 = vpop.permute.xlu0 %2448
        %v2451 = vperm.slane %v2449, 0
        %v2452 = vmul.f32 %v2451, %v2445
        %v2453 = vmul.f32 %v2451, %v2446
        %v2454 = vadd.f32 %v2437, %v2452
        %v2455 = vadd.f32 %v2438, %v2453
        %2456 = vset.pattern.permute.xlu0 57
        %2457 = vperm.xlu0 %2456, %v1588
        %v2458 = vpop.permute.xlu0 %2457
        %v2460 = vperm.slane %v2458, 0
        %v2461 = vmul.f32 %v2460, %v2445
        %v2462 = vmul.f32 %v2460, %v2446
        %v2465 = vrot.slane %v2461, 1
        %v2466 = vrot.slane %v2462, 1
        %v2469 = vadd.f32 %v2454, %v2465
        %v2470 = vadd.f32 %v2455, %v2466
        %2471 = vset.pattern.permute.xlu0 58
        %2472 = vperm.xlu0 %2471, %v1588
        %v2473 = vpop.permute.xlu0 %2472
        %v2475 = vperm.slane %v2473, 0
        %v2476 = vmul.f32 %v2475, %v2445
        %v2477 = vmul.f32 %v2475, %v2446
        %v2480 = vrot.slane %v2476, 2
        %v2481 = vrot.slane %v2477, 2
        %v2484 = vadd.f32 %v2469, %v2480
        %v2485 = vadd.f32 %v2470, %v2481
        %2486 = vset.pattern.permute.xlu0 59
        %2487 = vperm.xlu0 %2486, %v1588
        %v2488 = vpop.permute.xlu0 %2487
        %v2490 = vperm.slane %v2488, 0
        %v2491 = vmul.f32 %v2490, %v2445
        %v2492 = vmul.f32 %v2490, %v2446
        %v2495 = vrot.slane %v2491, 3
        %v2496 = vrot.slane %v2492, 3
        %v2499 = vadd.f32 %v2484, %v2495
        %v2500 = vadd.f32 %v2485, %v2496
        %2501 = vset.pattern.permute.xlu0 60
        %2502 = vperm.xlu0 %2501, %v1588
        %v2503 = vpop.permute.xlu0 %2502
        %v2505 = vperm.slane %v2503, 0
        %v2506 = vmul.f32 %v2505, %v2445
        %v2507 = vmul.f32 %v2505, %v2446
        %v2510 = vrot.slane %v2506, 4
        %v2511 = vrot.slane %v2507, 4
        %v2514 = vadd.f32 %v2499, %v2510
        %v2515 = vadd.f32 %v2500, %v2511
        %2516 = vset.pattern.permute.xlu0 61
        %2517 = vperm.xlu0 %2516, %v1588
        %v2518 = vpop.permute.xlu0 %2517
        %v2520 = vperm.slane %v2518, 0
        %v2521 = vmul.f32 %v2520, %v2445
        %v2522 = vmul.f32 %v2520, %v2446
        %v2525 = vrot.slane %v2521, 5
        %v2526 = vrot.slane %v2522, 5
        %v2529 = vadd.f32 %v2514, %v2525
        %v2530 = vadd.f32 %v2515, %v2526
        %2531 = vset.pattern.permute.xlu0 62
        %2532 = vperm.xlu0 %2531, %v1588
        %v2533 = vpop.permute.xlu0 %2532
        %v2535 = vperm.slane %v2533, 0
        %v2536 = vmul.f32 %v2535, %v2445
        %v2537 = vmul.f32 %v2535, %v2446
        %v2540 = vrot.slane %v2536, 6
        %v2541 = vrot.slane %v2537, 6
        %v2544 = vadd.f32 %v2529, %v2540
        %v2545 = vadd.f32 %v2530, %v2541
        %2546 = vset.pattern.permute.xlu0 63
        %2547 = vperm.xlu0 %2546, %v1588
        %v2548 = vpop.permute.xlu0 %2547
        %v2550 = vperm.slane %v2548, 0
        %v2551 = vmul.f32 %v2550, %v2445
        %v2552 = vmul.f32 %v2550, %v2446
        %v2555 = vrot.slane %v2551, 7
        %v2556 = vrot.slane %v2552, 7
        %v2559 = vadd.f32 %v2544, %v2555
        %v2560 = vadd.f32 %v2545, %v2556
        %2561 = vrot.lane.b32.xlu0 %v1586, 111
        %v2562 = vpop.permute.xlu0 %2561
        %2563 = vrot.lane.b32.xlu0 %v1587, 111
        %v2564 = vpop.permute.xlu0 %2563
        %v2565 = vsel %vm742, %v2562, %v2564
        %v2566 = vsel %vm742, %v2564, %v2562
        %v2567 = vsel %vm747, %v2565, 0.0
        %v2568 = vsel %vm748, %v2566, 0.0
        %2569 = vset.pattern.permute.xlu0 64
        %2570 = vperm.xlu0 %2569, %v1588
        %v2571 = vpop.permute.xlu0 %2570
        %v2573 = vperm.slane %v2571, 0
        %v2574 = vmul.f32 %v2573, %v2567
        %v2575 = vmul.f32 %v2573, %v2568
        %v2576 = vadd.f32 %v2559, %v2574
        %v2577 = vadd.f32 %v2560, %v2575
        %2578 = vset.pattern.permute.xlu0 65
        %2579 = vperm.xlu0 %2578, %v1588
        %v2580 = vpop.permute.xlu0 %2579
        %v2582 = vperm.slane %v2580, 0
        %v2583 = vmul.f32 %v2582, %v2567
        %v2584 = vmul.f32 %v2582, %v2568
        %v2587 = vrot.slane %v2583, 1
        %v2588 = vrot.slane %v2584, 1
        %v2591 = vadd.f32 %v2576, %v2587
        %v2592 = vadd.f32 %v2577, %v2588
        %2593 = vset.pattern.permute.xlu0 66
        %2594 = vperm.xlu0 %2593, %v1588
        %v2595 = vpop.permute.xlu0 %2594
        %v2597 = vperm.slane %v2595, 0
        %v2598 = vmul.f32 %v2597, %v2567
        %v2599 = vmul.f32 %v2597, %v2568
        %v2602 = vrot.slane %v2598, 2
        %v2603 = vrot.slane %v2599, 2
        %v2606 = vadd.f32 %v2591, %v2602
        %v2607 = vadd.f32 %v2592, %v2603
        %2608 = vset.pattern.permute.xlu0 67
        %2609 = vperm.xlu0 %2608, %v1588
        %v2610 = vpop.permute.xlu0 %2609
        %v2612 = vperm.slane %v2610, 0
        %v2613 = vmul.f32 %v2612, %v2567
        %v2614 = vmul.f32 %v2612, %v2568
        %v2617 = vrot.slane %v2613, 3
        %v2618 = vrot.slane %v2614, 3
        %v2621 = vadd.f32 %v2606, %v2617
        %v2622 = vadd.f32 %v2607, %v2618
        %2623 = vset.pattern.permute.xlu0 68
        %2624 = vperm.xlu0 %2623, %v1588
        %v2625 = vpop.permute.xlu0 %2624
        %v2627 = vperm.slane %v2625, 0
        %v2628 = vmul.f32 %v2627, %v2567
        %v2629 = vmul.f32 %v2627, %v2568
        %v2632 = vrot.slane %v2628, 4
        %v2633 = vrot.slane %v2629, 4
        %v2636 = vadd.f32 %v2621, %v2632
        %v2637 = vadd.f32 %v2622, %v2633
        %2638 = vset.pattern.permute.xlu0 69
        %2639 = vperm.xlu0 %2638, %v1588
        %v2640 = vpop.permute.xlu0 %2639
        %v2642 = vperm.slane %v2640, 0
        %v2643 = vmul.f32 %v2642, %v2567
        %v2644 = vmul.f32 %v2642, %v2568
        %v2647 = vrot.slane %v2643, 5
        %v2648 = vrot.slane %v2644, 5
        %v2651 = vadd.f32 %v2636, %v2647
        %v2652 = vadd.f32 %v2637, %v2648
        %2653 = vset.pattern.permute.xlu0 70
        %2654 = vperm.xlu0 %2653, %v1588
        %v2655 = vpop.permute.xlu0 %2654
        %v2657 = vperm.slane %v2655, 0
        %v2658 = vmul.f32 %v2657, %v2567
        %v2659 = vmul.f32 %v2657, %v2568
        %v2662 = vrot.slane %v2658, 6
        %v2663 = vrot.slane %v2659, 6
        %v2666 = vadd.f32 %v2651, %v2662
        %v2667 = vadd.f32 %v2652, %v2663
        %2668 = vset.pattern.permute.xlu0 71
        %2669 = vperm.xlu0 %2668, %v1588
        %v2670 = vpop.permute.xlu0 %2669
        %v2672 = vperm.slane %v2670, 0
        %v2673 = vmul.f32 %v2672, %v2567
        %v2674 = vmul.f32 %v2672, %v2568
        %v2677 = vrot.slane %v2673, 7
        %v2678 = vrot.slane %v2674, 7
        %v2681 = vadd.f32 %v2666, %v2677
        %v2682 = vadd.f32 %v2667, %v2678
        %2684 = vset.pattern.permute.xlu0 0
        %2685 = vperm.xlu0 %2684, %v1589
        %v2686 = vpop.permute.xlu0 %2685
        %v2688 = vperm.slane %v2686, 0
        %v2689 = vadd.f32 %v2681, %v2688
        %v2690 = vadd.f32 %v2682, %v2688
        %v2691 = vxor.u32 %v2689, 2147483648
        %v2692 = vxor.u32 %v2690, 2147483648
        %v2693 = vmul.f32 %v2691, 1.442695
        %v2694 = vpow.pop %v2693
        %v2695 = vmul.f32 %v2692, 1.442695
        %v2696 = vpow.pop %v2695
        %v2697 = vadd.f32 %v2694, 1.0
        %v2698 = vadd.f32 %v2696, 1.0
        %v2699 = vrcp.pop %v2697
        %v2700 = vmul.f32 %v2697, %v2699
        %v2701 = vsub.f32 1.0, %v2700
        %v2702 = vmul.f32 %v2699, %v2701
        %v2703 = vadd.f32 %v2699, %v2702
        %vm2704 = vweird.f32 %v2697
        %vm2705 = vweird.f32 %v2699
        %vm2706 = vmor %vm2704, %vm2705
        %v2707 = vsel %vm2706, %v2699, %v2703
        %v2708 = vand.u32 2147483647, %v2697
        %vm2709 = vcmp.eq.f32.partialorder %v2708, 8.507059e+37
        %v2710 = vand.u32 %v2697, 2147483648
        %v2711 = vor.u32 1.1754944e-38, %v2710
        %v2712 = vsel %vm2709, %v2711, %v2707
        %v2713 = vmul.f32 1.0, %v2712
        %v2714 = vrcp.pop %v2698
        %v2715 = vmul.f32 %v2698, %v2714
        %v2716 = vsub.f32 1.0, %v2715
        %v2717 = vmul.f32 %v2714, %v2716
        %v2718 = vadd.f32 %v2714, %v2717
        %vm2719 = vweird.f32 %v2698
        %vm2720 = vweird.f32 %v2714
        %vm2721 = vmor %vm2719, %vm2720
        %v2722 = vsel %vm2721, %v2714, %v2718
        %v2723 = vand.u32 2147483647, %v2698
        %vm2724 = vcmp.eq.f32.partialorder %v2723, 8.507059e+37
        %v2725 = vand.u32 %v2698, 2147483648
        %v2726 = vor.u32 1.1754944e-38, %v2725
        %v2727 = vsel %vm2724, %v2726, %v2722
        %v2728 = vmul.f32 1.0, %v2727
        %v2731 = vrot.slane %v2728, 7
        %vm2732 = vcmask 1040384
        %v2733 = vsel %vm2732, %v2713, %v2731
        %v2735 = vlaneseq
        %vm2736 = vcmp.ge.s32.totalorder %v2735, 0
        %vm2737 = vcmp.lt.s32.totalorder %v2735, 256
        %vm2738 = vmand %vm2736, %vm2737
        %2739 = vst.msk [vmem:[%s273] sm:$0x3] %vm2738, %v2733
        %s2740 = sand.u32 %s183, 1
        %s2741 = scalar_lea.sflag [#allocation4], %s2740
        %s2742 = sand.u32 %s183, 1
        %s2743 = smul.addr %s2742, 2
        %s2744 = scalar_lea.vmem [#allocation3], %s2743
        // Predicated region
        $region49: #{tpu_custom_call.1} parent=47 // pred_check
          %p2745 = pneg %p193
        $region50: #{tpu_custom_call.1} parent=47 // pred_check_branch
          %2747 = sbr.rel (%p2745) target = $region52
        $region51: #{tpu_custom_call.1} parent=47 // pred_region
          %2749 = vsyncadd %s2741, 0
          %s2750 = smul.addr %s23, 2
          %s2751 = scalar_lea.hbm %s7, %s2750
          %s2753 = sshll.u32 %s2744, 4
          %s2754 = int_to_ptr.vmem [resolvable:$true] %s2753
          %s2755 = sshll.u32 %s2751, 4
          %s2756 = int_to_ptr.hbm [resolvable:$true] %s2755
          %2758 = dma.vmem_to_hbm [thread:$0]  %s2754, 32, %s2756, %s2741
        $region52: #{tpu_custom_call.1} parent=47 // pred_fallthru
          _
      $region48: #{tpu_custom_call.1} parent=5 // pred_fallthru
        _
      %p2759 = scmp.le.s32.totalorder 2, %s18
      // Predicated region
      $region53: #{tpu_custom_call.1} parent=5 // pred_check
        %p2760 = pneg %p2759
      $region54: #{tpu_custom_call.1} parent=5 // pred_check_branch
        %2762 = sbr.rel (%p2760) target = $region56
      $region55: #{tpu_custom_call.1} parent=5 // pred_region
        %s2763 = ssub.s32 %s18, 2
        // Predicated region
        $region57: #{tpu_custom_call.1} parent=55 // pred_check
          %p2764 = pneg %p199
        $region58: #{tpu_custom_call.1} parent=55 // pred_check_branch
          %2766 = sbr.rel (%p2764) target = $region60
        $region59: #{tpu_custom_call.1} parent=55 // pred_region
          %s2767 = sand.u32 %s184, 1
          %s2768 = scalar_lea.sflag [#allocation4], %s2767
          %s2769 = sand.u32 %s184, 1
          %s2770 = smul.addr %s2769, 2
          %s2771 = scalar_lea.vmem [#allocation3], %s2770
          %2773 = dma.done %s2768, 32
        $region60: #{tpu_custom_call.1} parent=55 // pred_fallthru
          _
      $region56: #{tpu_custom_call.1} parent=5 // pred_fallthru
        _
    $region6: #{tpu_custom_call.1} parent=1 // loop_footer
      %s22 = sadd.s32 1, %s18
    $region7: #{tpu_custom_call.1} parent=1 // loop_footer_branch
      %17 = sbr.rel target = $region3
    $region8: #{tpu_custom_call.1} parent=1 // loop_exit
      _
    %2774 = vsyncpa [#allocation4], 1
    %s2775 = scalar_lea.sflag [#allocation4], 1
    %2776 = vsyncpa %s2775, 1

</llo_original>
